<compile_context>
chip_gen: v6e
topology: v6e:2x2x1
jax: 0.10.0
libtpu: 0.0.40
codegen_flags: <defaults>
</compile_context>

<pallas_src>
import functools

import jax
import jax.numpy as jnp
from jax.experimental import pallas as pl
from jax.experimental.pallas import tpu as pltpu

NUM_REGIONS = 4
NUM_BRANCHES = NUM_REGIONS + 1      # 4 regions + 1 global branch
C_FEAT = 192                        # backbone feature channels
HIDDEN = 256
NUM_CLASSES = 7
S_SCALE = 30.0                      # region logits scale (global branch unscaled)

# bf16 weight/activation quantization at the first Linear (inference-time
# optimization from the perf review).  The reference mirrors the quantization
# points so the correctness check stays tight.  Use jnp.float32 to disable.
W1_DTYPE = jnp.bfloat16


def _fernet_kernel(eca_ref, feats_ref, w1_ref, b1_ref, w2_ref, out_ref,
                   *, p_region):
    """Single invocation: all 5 branches (regions 0..3, global == 4)."""
    x = feats_ref[...]                                   # (4, bs, p_region, C) f32
    region_sums = jnp.sum(x, axis=2)                     # (4, bs, C) sublane reduce
    total_sum = (region_sums[0] + region_sums[1]
                 + region_sums[2] + region_sums[3])      # (bs, C)
    inv_pr = 1.0 / float(p_region)                       # folded reciprocals
    inv_pg = 1.0 / float(NUM_REGIONS * p_region)

    # Shift masks for the 3-tap zero-padded Conv1d over channels, built
    # in-kernel (no HBM traffic).  conv[c] = w0*gap[c-1] + w1*gap[c] + w2*gap[c+1]
    # via conv = gap @ band with band[j, c] = w0*(c==j+1) + w1*(c==j) + w2*(c==j-1);
    # the missing off-diagonals at the channel edges give the zero padding.
    row = jax.lax.broadcasted_iota(jnp.int32, (C_FEAT, C_FEAT), 0)
    col = jax.lax.broadcasted_iota(jnp.int32, (C_FEAT, C_FEAT), 1)
    m_sup = (col == row + 1).astype(jnp.float32)         # picks gap[c-1]
    m_eq = (col == row).astype(jnp.float32)              # picks gap[c]
    m_sub = (col == row - 1).astype(jnp.float32)         # picks gap[c+1]

    for i in range(NUM_BRANCHES):                        # unrolled at trace time
        if i < NUM_REGIONS:
            gap = region_sums[i] * inv_pr                # (bs, C)
            scale = S_SCALE
        else:
            gap = total_sum * inv_pg                     # global GAP = mean of all pixels
            scale = 1.0

        # ECA: banded matmul (tiny MXU op), scalar taps read from SMEM.
        band = (eca_ref[i, 0] * m_sup
                + eca_ref[i, 1] * m_eq
                + eca_ref[i, 2] * m_sub)                 # (C, C)
        conv = jnp.dot(gap, band, preferred_element_type=jnp.float32)
        pooled = gap * jax.nn.sigmoid(conv)              # == GAP(eca(x)) exactly

        # region_net: Linear(192,256) + ReLU  (bf16 operands, f32 accumulate)
        h = jnp.dot(pooled.astype(w1_ref.dtype), w1_ref[i],
                    preferred_element_type=jnp.float32) + b1_ref[i]
        h = jnp.maximum(h, 0.0)

        # F.normalize(p=2, dim=1): 1/max(||h||, 1e-12) via EUP rsqrt.
        ssq = jnp.sum(h * h, axis=1, keepdims=True)
        hn = h * jax.lax.rsqrt(jnp.maximum(ssq, 1e-24))

        # classifier: Linear(256, 7, bias=False); regions scaled by s=30.
        logits = jnp.dot(hn, w2_ref[i], preferred_element_type=jnp.float32)
        out_ref[i] = (scale * logits).astype(out_ref.dtype)


@jax.jit
def fernet_heads(x1, eca_w, w1, b1, w2):
    """x1: (bs, 192, H, W) backbone features (NCHW).  Returns (bs, 7, 5)."""
    bs, C, H, W = x1.shape
    assert C == C_FEAT and H == W and H % 2 == 0
    rs = H // (NUM_REGIONS // 2)
    p_region = rs * rs

    # Glue: region-ordered NHWC map, loaded ONCE by the kernel.
    # region index = row_block*2 + col_block (matches torch unfold semantics).
    feats = x1.reshape(bs, C, 2, rs, 2, rs).transpose(2, 4, 0, 3, 5, 1)
    feats = feats.reshape(NUM_REGIONS, bs, p_region, C).astype(jnp.float32)

    kernel = functools.partial(_fernet_kernel, p_region=p_region)

    out = pl.pallas_call(
        kernel,
        out_shape=jax.ShapeDtypeStruct((NUM_BRANCHES, bs, NUM_CLASSES),
                                       jnp.float32),
        in_specs=[
            pl.BlockSpec(memory_space=pltpu.MemorySpace.SMEM),   # eca taps (5,3)
            pl.BlockSpec(memory_space=pltpu.MemorySpace.VMEM),   # feats
            pl.BlockSpec(memory_space=pltpu.MemorySpace.VMEM),   # w1 (bf16)
            pl.BlockSpec(memory_space=pltpu.MemorySpace.VMEM),   # b1
            pl.BlockSpec(memory_space=pltpu.MemorySpace.VMEM),   # w2
        ],
        out_specs=pl.BlockSpec(memory_space=pltpu.MemorySpace.VMEM),
    )(eca_w.astype(jnp.float32),
      feats,
      w1.astype(W1_DTYPE),
      b1.reshape(NUM_BRANCHES, 1, HIDDEN).astype(jnp.float32),
      w2.astype(jnp.float32))

    # TODO(synk): for production batch sizes >> 2, tile bs on the sublane/M axis
    # (the matmuls only become non-latency-bound once M grows).

    # torch.cat((stack(regions, dim=2), global.unsqueeze(2)), dim=2) -> (bs,7,5)
    return jnp.transpose(out, (1, 2, 0))


def _reference(x1, eca_w, w1, b1, w2):
    """Pure-JAX reference of the same forward semantics (for sanity check).

    Mirrors the kernel's deliberate bf16 quantization points (w1 and the pooled
    activation at the first Linear); everything else is f32 module semantics.
    """
    bs, C, H, W = x1.shape
    rs = H // 2
    patches = x1.reshape(bs, C, 2, rs, 2, rs).transpose(
        0, 2, 4, 1, 3, 5).reshape(bs, 4, C, rs, rs)
    w1q = w1.astype(W1_DTYPE).astype(jnp.float32)

    def branch(fmap, i, scale):
        gap = fmap.mean(axis=(2, 3))
        pad = jnp.pad(gap, ((0, 0), (1, 1)))
        conv = (eca_w[i, 0] * pad[:, :-2] + eca_w[i, 1] * pad[:, 1:-1]
                + eca_w[i, 2] * pad[:, 2:])
        pooled = gap * jax.nn.sigmoid(conv)
        pooled = pooled.astype(W1_DTYPE).astype(jnp.float32)
        h = jnp.maximum(
            jnp.dot(pooled, w1q[i], precision=jax.lax.Precision.HIGHEST) + b1[i],
            0.0)
        hn = h / jnp.maximum(jnp.linalg.norm(h, axis=1, keepdims=True), 1e-12)
        return scale * jnp.dot(hn, w2[i], precision=jax.lax.Precision.HIGHEST)

    regions = jnp.stack([branch(patches[:, i], i, S_SCALE) for i in range(4)], 2)
    glob = branch(x1, 4, 1.0)[:, :, None]
    return jnp.concatenate([regions, glob], axis=2)


if __name__ == "__main__":
    key = jax.random.PRNGKey(0)
    k1, k2, k3, k4, kx = jax.random.split(key, 5)

    # Deterministic synthetic parameters (shapes implied by the module __init__).
    eca_w = jax.random.normal(k1, (NUM_BRANCHES, 3), jnp.float32) * 0.5
    w1 = jax.random.normal(k2, (NUM_BRANCHES, C_FEAT, HIDDEN), jnp.float32) * 0.05
    b1 = jax.random.normal(k3, (NUM_BRANCHES, HIDDEN), jnp.float32) * 0.05
    w2 = jax.random.normal(k4, (NUM_BRANCHES, HIDDEN, NUM_CLASSES), jnp.float32) * 0.05

    # Small backbone feature map standing in for mobilenet_v2 output (NCHW).
    x1 = jax.random.normal(kx, (2, C_FEAT, 8, 8), jnp.float32)

    out = jax.block_until_ready(fernet_heads(x1, eca_w, w1, b1, w2))
    ref = jax.block_until_ready(_reference(x1, eca_w, w1, b1, w2))

    assert out.shape == (2, NUM_CLASSES, NUM_BRANCHES), out.shape
    err = float(jnp.max(jnp.abs(out - ref)))
    assert err < 1e-3, f"mismatch vs reference: {err}"
    print("KERNEL_OK")
</pallas_src>

<mosaic_0001>
module attributes {stable_mosaic.version = 11 : i64} {
  func.func @_fernet_kernel(%arg0: memref<5x3xf32, #tpu.memory_space<smem>>, %arg1: memref<4x2x16x192xf32, #tpu.memory_space<vmem>>, %arg2: memref<5x192x256xbf16, #tpu.memory_space<vmem>>, %arg3: memref<5x1x256xf32, #tpu.memory_space<vmem>>, %arg4: memref<5x256x7xf32, #tpu.memory_space<vmem>>, %arg5: memref<5x2x7xf32, #tpu.memory_space<vmem>>) attributes {dimension_semantics = [], scalar_prefetch = 0 : i64, scratch_operands = 0 : i64, tpu.core_type = #tpu.core_type<tc>} {
    %c0 = arith.constant 0 : index
    %c0_0 = arith.constant 0 : index
    %c0_1 = arith.constant 0 : index
    %c0_2 = arith.constant 0 : index
    %0 = vector.load %arg1[%c0, %c0_0, %c0_1, %c0_2] : memref<4x2x16x192xf32, #tpu.memory_space<vmem>>, vector<4x2x16x192xf32>
    %cst = arith.constant dense<0.000000e+00> : vector<4x2x192xf32>
    %1 = vector.multi_reduction <add>, %0, %cst [2] : vector<4x2x16x192xf32> to vector<4x2x192xf32>
    %2 = vector.extract_strided_slice %1 {offsets = [0, 0, 0], sizes = [1, 2, 192], strides = [1, 1, 1]} : vector<4x2x192xf32> to vector<1x2x192xf32>
    %3 = vector.shape_cast %2 : vector<1x2x192xf32> to vector<2x192xf32>
    %4 = vector.extract_strided_slice %1 {offsets = [1, 0, 0], sizes = [1, 2, 192], strides = [1, 1, 1]} : vector<4x2x192xf32> to vector<1x2x192xf32>
    %5 = vector.shape_cast %4 : vector<1x2x192xf32> to vector<2x192xf32>
    %6 = arith.addf %3, %5 : vector<2x192xf32>
    %7 = vector.extract_strided_slice %1 {offsets = [2, 0, 0], sizes = [1, 2, 192], strides = [1, 1, 1]} : vector<4x2x192xf32> to vector<1x2x192xf32>
    %8 = vector.shape_cast %7 : vector<1x2x192xf32> to vector<2x192xf32>
    %9 = arith.addf %6, %8 : vector<2x192xf32>
    %10 = vector.extract_strided_slice %1 {offsets = [3, 0, 0], sizes = [1, 2, 192], strides = [1, 1, 1]} : vector<4x2x192xf32> to vector<1x2x192xf32>
    %11 = vector.shape_cast %10 : vector<1x2x192xf32> to vector<2x192xf32>
    %12 = arith.addf %9, %11 : vector<2x192xf32>
    %13 = tpu.iota {dimensions = array<i32: 0>} : vector<192x192xi32>
    %14 = tpu.iota {dimensions = array<i32: 1>} : vector<192x192xi32>
    %c1_i32 = arith.constant 1 : i32
    %15 = vector.broadcast %c1_i32 : i32 to vector<192x192xi32>
    %16 = arith.addi %13, %15 : vector<192x192xi32>
    %17 = arith.cmpi eq, %14, %16 : vector<192x192xi32>
    %18 = arith.extui %17 : vector<192x192xi1> to vector<192x192xi32>
    %19 = arith.sitofp %18 : vector<192x192xi32> to vector<192x192xf32>
    %20 = arith.cmpi eq, %14, %13 : vector<192x192xi32>
    %21 = arith.extui %20 : vector<192x192xi1> to vector<192x192xi32>
    %22 = arith.sitofp %21 : vector<192x192xi32> to vector<192x192xf32>
    %c1_i32_3 = arith.constant 1 : i32
    %23 = vector.broadcast %c1_i32_3 : i32 to vector<192x192xi32>
    %24 = arith.subi %13, %23 : vector<192x192xi32>
    %25 = arith.cmpi eq, %14, %24 : vector<192x192xi32>
    %26 = arith.extui %25 : vector<192x192xi1> to vector<192x192xi32>
    %27 = arith.sitofp %26 : vector<192x192xi32> to vector<192x192xf32>
    %28 = vector.extract_strided_slice %1 {offsets = [0, 0, 0], sizes = [1, 2, 192], strides = [1, 1, 1]} : vector<4x2x192xf32> to vector<1x2x192xf32>
    %29 = vector.shape_cast %28 : vector<1x2x192xf32> to vector<2x192xf32>
    %cst_4 = arith.constant 6.250000e-02 : f32
    %30 = vector.broadcast %cst_4 : f32 to vector<2x192xf32>
    %31 = arith.mulf %29, %30 : vector<2x192xf32>
    %c0_5 = arith.constant 0 : index
    %c0_6 = arith.constant 0 : index
    %32 = memref.load %arg0[%c0_5, %c0_6] : memref<5x3xf32, #tpu.memory_space<smem>>
    %33 = vector.broadcast %32 : f32 to vector<192x192xf32>
    %34 = arith.mulf %33, %19 : vector<192x192xf32>
    %c0_7 = arith.constant 0 : index
    %c1 = arith.constant 1 : index
    %35 = memref.load %arg0[%c0_7, %c1] : memref<5x3xf32, #tpu.memory_space<smem>>
    %36 = vector.broadcast %35 : f32 to vector<192x192xf32>
    %37 = arith.mulf %36, %22 : vector<192x192xf32>
    %38 = arith.addf %34, %37 : vector<192x192xf32>
    %c0_8 = arith.constant 0 : index
    %c2 = arith.constant 2 : index
    %39 = memref.load %arg0[%c0_8, %c2] : memref<5x3xf32, #tpu.memory_space<smem>>
    %40 = vector.broadcast %39 : f32 to vector<192x192xf32>
    %41 = arith.mulf %40, %27 : vector<192x192xf32>
    %42 = arith.addf %38, %41 : vector<192x192xf32>
    %cst_9 = arith.constant dense<0.000000e+00> : vector<2x192xf32>
    %43 = tpu.matmul %31, %42, %cst_9 {dimension_numbers = #tpu.dot_dimension_numbers<[1], [0], [0], [1], [0, 0, 1, 1], [], []>} : vector<2x192xf32>, vector<192x192xf32>, vector<2x192xf32> -> vector<2x192xf32>
    %44 = arith.negf %43 : vector<2x192xf32>
    %45 = math.exp %44 : vector<2x192xf32>
    %cst_10 = arith.constant 1.000000e+00 : f32
    %46 = vector.broadcast %cst_10 : f32 to vector<2x192xf32>
    %47 = arith.addf %46, %45 : vector<2x192xf32>
    %48 = arith.divf %46, %47 : vector<2x192xf32>
    %49 = arith.mulf %31, %48 : vector<2x192xf32>
    %50 = arith.truncf %49 : vector<2x192xf32> to vector<2x192xbf16>
    %c0_11 = arith.constant 0 : index
    %c0_12 = arith.constant 0 : index
    %c0_13 = arith.constant 0 : index
    %51 = vector.load %arg2[%c0_11, %c0_12, %c0_13] : memref<5x192x256xbf16, #tpu.memory_space<vmem>>, vector<1x192x256xbf16>
    %52 = vector.shape_cast %51 : vector<1x192x256xbf16> to vector<192x256xbf16>
    %cst_14 = arith.constant dense<0.000000e+00> : vector<2x256xf32>
    %53 = tpu.matmul %50, %52, %cst_14 {dimension_numbers = #tpu.dot_dimension_numbers<[1], [0], [0], [1], [0, 0, 1, 1], [], []>} : vector<2x192xbf16>, vector<192x256xbf16>, vector<2x256xf32> -> vector<2x256xf32>
    %c0_15 = arith.constant 0 : index
    %c0_16 = arith.constant 0 : index
    %c0_17 = arith.constant 0 : index
    %54 = vector.load %arg3[%c0_15, %c0_16, %c0_17] : memref<5x1x256xf32, #tpu.memory_space<vmem>>, vector<1x1x256xf32>
    %55 = vector.shape_cast %54 : vector<1x1x256xf32> to vector<1x256xf32>
    %56 = vector.broadcast %55 : vector<1x256xf32> to vector<2x256xf32>
    %57 = arith.addf %53, %56 : vector<2x256xf32>
    %cst_18 = arith.constant 0.000000e+00 : f32
    %58 = vector.broadcast %cst_18 : f32 to vector<2x256xf32>
    %59 = arith.maximumf %57, %58 : vector<2x256xf32>
    %60 = arith.mulf %59, %59 : vector<2x256xf32>
    %cst_19 = arith.constant dense<0.000000e+00> : vector<2xf32>
    %61 = vector.multi_reduction <add>, %60, %cst_19 [1] : vector<2x256xf32> to vector<2xf32>
    %62 = vector.shape_cast %61 : vector<2xf32> to vector<2x1xf32>
    %cst_20 = arith.constant 1.000000e-24 : f32
    %63 = vector.broadcast %cst_20 : f32 to vector<2x1xf32>
    %64 = arith.maximumf %62, %63 : vector<2x1xf32>
    %65 = math.rsqrt %64 : vector<2x1xf32>
    %66 = vector.broadcast %65 : vector<2x1xf32> to vector<2x256xf32>
    %67 = arith.mulf %59, %66 : vector<2x256xf32>
    %c0_21 = arith.constant 0 : index
    %c0_22 = arith.constant 0 : index
    %c0_23 = arith.constant 0 : index
    %68 = vector.load %arg4[%c0_21, %c0_22, %c0_23] : memref<5x256x7xf32, #tpu.memory_space<vmem>>, vector<1x256x7xf32>
    %69 = vector.shape_cast %68 : vector<1x256x7xf32> to vector<256x7xf32>
    %cst_24 = arith.constant dense<0.000000e+00> : vector<2x7xf32>
    %70 = tpu.matmul %67, %69, %cst_24 {dimension_numbers = #tpu.dot_dimension_numbers<[1], [0], [0], [1], [0, 0, 1, 1], [], []>} : vector<2x256xf32>, vector<256x7xf32>, vector<2x7xf32> -> vector<2x7xf32>
    %cst_25 = arith.constant 3.000000e+01 : f32
    %71 = vector.broadcast %cst_25 : f32 to vector<2x7xf32>
    %72 = arith.mulf %71, %70 : vector<2x7xf32>
    %c0_26 = arith.constant 0 : index
    %c0_27 = arith.constant 0 : index
    %c0_28 = arith.constant 0 : index
    %73 = vector.load %arg5[%c0_26, %c0_27, %c0_28] : memref<5x2x7xf32, #tpu.memory_space<vmem>>, vector<1x2x7xf32>
    %74 = vector.shape_cast %73 : vector<1x2x7xf32> to vector<2x7xf32>
    %75 = vector.shape_cast %72 : vector<2x7xf32> to vector<1x2x7xf32>
    tpu.vector_store %arg5[%c0_26, %c0_27, %c0_28], %75 {strides = array<i32>} : memref<5x2x7xf32, #tpu.memory_space<vmem>>, vector<1x2x7xf32>,
    %76 = vector.extract_strided_slice %1 {offsets = [1, 0, 0], sizes = [1, 2, 192], strides = [1, 1, 1]} : vector<4x2x192xf32> to vector<1x2x192xf32>
    %77 = vector.shape_cast %76 : vector<1x2x192xf32> to vector<2x192xf32>
    %cst_29 = arith.constant 6.250000e-02 : f32
    %78 = vector.broadcast %cst_29 : f32 to vector<2x192xf32>
    %79 = arith.mulf %77, %78 : vector<2x192xf32>
    %c1_30 = arith.constant 1 : index
    %c0_31 = arith.constant 0 : index
    %80 = memref.load %arg0[%c1_30, %c0_31] : memref<5x3xf32, #tpu.memory_space<smem>>
    %81 = vector.broadcast %80 : f32 to vector<192x192xf32>
    %82 = arith.mulf %81, %19 : vector<192x192xf32>
    %c1_32 = arith.constant 1 : index
    %c1_33 = arith.constant 1 : index
    %83 = memref.load %arg0[%c1_32, %c1_33] : memref<5x3xf32, #tpu.memory_space<smem>>
    %84 = vector.broadcast %83 : f32 to vector<192x192xf32>
    %85 = arith.mulf %84, %22 : vector<192x192xf32>
    %86 = arith.addf %82, %85 : vector<192x192xf32>
    %c1_34 = arith.constant 1 : index
    %c2_35 = arith.constant 2 : index
    %87 = memref.load %arg0[%c1_34, %c2_35] : memref<5x3xf32, #tpu.memory_space<smem>>
    %88 = vector.broadcast %87 : f32 to vector<192x192xf32>
    %89 = arith.mulf %88, %27 : vector<192x192xf32>
    %90 = arith.addf %86, %89 : vector<192x192xf32>
    %cst_36 = arith.constant dense<0.000000e+00> : vector<2x192xf32>
    %91 = tpu.matmul %79, %90, %cst_36 {dimension_numbers = #tpu.dot_dimension_numbers<[1], [0], [0], [1], [0, 0, 1, 1], [], []>} : vector<2x192xf32>, vector<192x192xf32>, vector<2x192xf32> -> vector<2x192xf32>
    %92 = arith.negf %91 : vector<2x192xf32>
    %93 = math.exp %92 : vector<2x192xf32>
    %cst_37 = arith.constant 1.000000e+00 : f32
    %94 = vector.broadcast %cst_37 : f32 to vector<2x192xf32>
    %95 = arith.addf %94, %93 : vector<2x192xf32>
    %96 = arith.divf %94, %95 : vector<2x192xf32>
    %97 = arith.mulf %79, %96 : vector<2x192xf32>
    %98 = arith.truncf %97 : vector<2x192xf32> to vector<2x192xbf16>
    %c1_38 = arith.constant 1 : index
    %c0_39 = arith.constant 0 : index
    %c0_40 = arith.constant 0 : index
    %99 = vector.load %arg2[%c1_38, %c0_39, %c0_40] : memref<5x192x256xbf16, #tpu.memory_space<vmem>>, vector<1x192x256xbf16>
    %100 = vector.shape_cast %99 : vector<1x192x256xbf16> to vector<192x256xbf16>
    %cst_41 = arith.constant dense<0.000000e+00> : vector<2x256xf32>
    %101 = tpu.matmul %98, %100, %cst_41 {dimension_numbers = #tpu.dot_dimension_numbers<[1], [0], [0], [1], [0, 0, 1, 1], [], []>} : vector<2x192xbf16>, vector<192x256xbf16>, vector<2x256xf32> -> vector<2x256xf32>
    %c1_42 = arith.constant 1 : index
    %c0_43 = arith.constant 0 : index
    %c0_44 = arith.constant 0 : index
    %102 = vector.load %arg3[%c1_42, %c0_43, %c0_44] : memref<5x1x256xf32, #tpu.memory_space<vmem>>, vector<1x1x256xf32>
    %103 = vector.shape_cast %102 : vector<1x1x256xf32> to vector<1x256xf32>
    %104 = vector.broadcast %103 : vector<1x256xf32> to vector<2x256xf32>
    %105 = arith.addf %101, %104 : vector<2x256xf32>
    %cst_45 = arith.constant 0.000000e+00 : f32
    %106 = vector.broadcast %cst_45 : f32 to vector<2x256xf32>
    %107 = arith.maximumf %105, %106 : vector<2x256xf32>
    %108 = arith.mulf %107, %107 : vector<2x256xf32>
    %cst_46 = arith.constant dense<0.000000e+00> : vector<2xf32>
    %109 = vector.multi_reduction <add>, %108, %cst_46 [1] : vector<2x256xf32> to vector<2xf32>
    %110 = vector.shape_cast %109 : vector<2xf32> to vector<2x1xf32>
    %cst_47 = arith.constant 1.000000e-24 : f32
    %111 = vector.broadcast %cst_47 : f32 to vector<2x1xf32>
    %112 = arith.maximumf %110, %111 : vector<2x1xf32>
    %113 = math.rsqrt %112 : vector<2x1xf32>
    %114 = vector.broadcast %113 : vector<2x1xf32> to vector<2x256xf32>
    %115 = arith.mulf %107, %114 : vector<2x256xf32>
    %c1_48 = arith.constant 1 : index
    %c0_49 = arith.constant 0 : index
    %c0_50 = arith.constant 0 : index
    %116 = vector.load %arg4[%c1_48, %c0_49, %c0_50] : memref<5x256x7xf32, #tpu.memory_space<vmem>>, vector<1x256x7xf32>
    %117 = vector.shape_cast %116 : vector<1x256x7xf32> to vector<256x7xf32>
    %cst_51 = arith.constant dense<0.000000e+00> : vector<2x7xf32>
    %118 = tpu.matmul %115, %117, %cst_51 {dimension_numbers = #tpu.dot_dimension_numbers<[1], [0], [0], [1], [0, 0, 1, 1], [], []>} : vector<2x256xf32>, vector<256x7xf32>, vector<2x7xf32> -> vector<2x7xf32>
    %cst_52 = arith.constant 3.000000e+01 : f32
    %119 = vector.broadcast %cst_52 : f32 to vector<2x7xf32>
    %120 = arith.mulf %119, %118 : vector<2x7xf32>
    %c1_53 = arith.constant 1 : index
    %c0_54 = arith.constant 0 : index
    %c0_55 = arith.constant 0 : index
    %121 = vector.load %arg5[%c1_53, %c0_54, %c0_55] : memref<5x2x7xf32, #tpu.memory_space<vmem>>, vector<1x2x7xf32>
    %122 = vector.shape_cast %121 : vector<1x2x7xf32> to vector<2x7xf32>
    %123 = vector.shape_cast %120 : vector<2x7xf32> to vector<1x2x7xf32>
    tpu.vector_store %arg5[%c1_53, %c0_54, %c0_55], %123 {strides = array<i32>} : memref<5x2x7xf32, #tpu.memory_space<vmem>>, vector<1x2x7xf32>,
    %124 = vector.extract_strided_slice %1 {offsets = [2, 0, 0], sizes = [1, 2, 192], strides = [1, 1, 1]} : vector<4x2x192xf32> to vector<1x2x192xf32>
    %125 = vector.shape_cast %124 : vector<1x2x192xf32> to vector<2x192xf32>
    %cst_56 = arith.constant 6.250000e-02 : f32
    %126 = vector.broadcast %cst_56 : f32 to vector<2x192xf32>
    %127 = arith.mulf %125, %126 : vector<2x192xf32>
    %c2_57 = arith.constant 2 : index
    %c0_58 = arith.constant 0 : index
    %128 = memref.load %arg0[%c2_57, %c0_58] : memref<5x3xf32, #tpu.memory_space<smem>>
    %129 = vector.broadcast %128 : f32 to vector<192x192xf32>
    %130 = arith.mulf %129, %19 : vector<192x192xf32>
    %c2_59 = arith.constant 2 : index
    %c1_60 = arith.constant 1 : index
    %131 = memref.load %arg0[%c2_59, %c1_60] : memref<5x3xf32, #tpu.memory_space<smem>>
    %132 = vector.broadcast %131 : f32 to vector<192x192xf32>
    %133 = arith.mulf %132, %22 : vector<192x192xf32>
    %134 = arith.addf %130, %133 : vector<192x192xf32>
    %c2_61 = arith.constant 2 : index
    %c2_62 = arith.constant 2 : index
    %135 = memref.load %arg0[%c2_61, %c2_62] : memref<5x3xf32, #tpu.memory_space<smem>>
    %136 = vector.broadcast %135 : f32 to vector<192x192xf32>
    %137 = arith.mulf %136, %27 : vector<192x192xf32>
    %138 = arith.addf %134, %137 : vector<192x192xf32>
    %cst_63 = arith.constant dense<0.000000e+00> : vector<2x192xf32>
    %139 = tpu.matmul %127, %138, %cst_63 {dimension_numbers = #tpu.dot_dimension_numbers<[1], [0], [0], [1], [0, 0, 1, 1], [], []>} : vector<2x192xf32>, vector<192x192xf32>, vector<2x192xf32> -> vector<2x192xf32>
    %140 = arith.negf %139 : vector<2x192xf32>
    %141 = math.exp %140 : vector<2x192xf32>
    %cst_64 = arith.constant 1.000000e+00 : f32
    %142 = vector.broadcast %cst_64 : f32 to vector<2x192xf32>
    %143 = arith.addf %142, %141 : vector<2x192xf32>
    %144 = arith.divf %142, %143 : vector<2x192xf32>
    %145 = arith.mulf %127, %144 : vector<2x192xf32>
    %146 = arith.truncf %145 : vector<2x192xf32> to vector<2x192xbf16>
    %c2_65 = arith.constant 2 : index
    %c0_66 = arith.constant 0 : index
    %c0_67 = arith.constant 0 : index
    %147 = vector.load %arg2[%c2_65, %c0_66, %c0_67] : memref<5x192x256xbf16, #tpu.memory_space<vmem>>, vector<1x192x256xbf16>
    %148 = vector.shape_cast %147 : vector<1x192x256xbf16> to vector<192x256xbf16>
    %cst_68 = arith.constant dense<0.000000e+00> : vector<2x256xf32>
    %149 = tpu.matmul %146, %148, %cst_68 {dimension_numbers = #tpu.dot_dimension_numbers<[1], [0], [0], [1], [0, 0, 1, 1], [], []>} : vector<2x192xbf16>, vector<192x256xbf16>, vector<2x256xf32> -> vector<2x256xf32>
    %c2_69 = arith.constant 2 : index
    %c0_70 = arith.constant 0 : index
    %c0_71 = arith.constant 0 : index
    %150 = vector.load %arg3[%c2_69, %c0_70, %c0_71] : memref<5x1x256xf32, #tpu.memory_space<vmem>>, vector<1x1x256xf32>
    %151 = vector.shape_cast %150 : vector<1x1x256xf32> to vector<1x256xf32>
    %152 = vector.broadcast %151 : vector<1x256xf32> to vector<2x256xf32>
    %153 = arith.addf %149, %152 : vector<2x256xf32>
    %cst_72 = arith.constant 0.000000e+00 : f32
    %154 = vector.broadcast %cst_72 : f32 to vector<2x256xf32>
    %155 = arith.maximumf %153, %154 : vector<2x256xf32>
    %156 = arith.mulf %155, %155 : vector<2x256xf32>
    %cst_73 = arith.constant dense<0.000000e+00> : vector<2xf32>
    %157 = vector.multi_reduction <add>, %156, %cst_73 [1] : vector<2x256xf32> to vector<2xf32>
    %158 = vector.shape_cast %157 : vector<2xf32> to vector<2x1xf32>
    %cst_74 = arith.constant 1.000000e-24 : f32
    %159 = vector.broadcast %cst_74 : f32 to vector<2x1xf32>
    %160 = arith.maximumf %158, %159 : vector<2x1xf32>
    %161 = math.rsqrt %160 : vector<2x1xf32>
    %162 = vector.broadcast %161 : vector<2x1xf32> to vector<2x256xf32>
    %163 = arith.mulf %155, %162 : vector<2x256xf32>
    %c2_75 = arith.constant 2 : index
    %c0_76 = arith.constant 0 : index
    %c0_77 = arith.constant 0 : index
    %164 = vector.load %arg4[%c2_75, %c0_76, %c0_77] : memref<5x256x7xf32, #tpu.memory_space<vmem>>, vector<1x256x7xf32>
    %165 = vector.shape_cast %164 : vector<1x256x7xf32> to vector<256x7xf32>
    %cst_78 = arith.constant dense<0.000000e+00> : vector<2x7xf32>
    %166 = tpu.matmul %163, %165, %cst_78 {dimension_numbers = #tpu.dot_dimension_numbers<[1], [0], [0], [1], [0, 0, 1, 1], [], []>} : vector<2x256xf32>, vector<256x7xf32>, vector<2x7xf32> -> vector<2x7xf32>
    %cst_79 = arith.constant 3.000000e+01 : f32
    %167 = vector.broadcast %cst_79 : f32 to vector<2x7xf32>
    %168 = arith.mulf %167, %166 : vector<2x7xf32>
    %c2_80 = arith.constant 2 : index
    %c0_81 = arith.constant 0 : index
    %c0_82 = arith.constant 0 : index
    %169 = vector.load %arg5[%c2_80, %c0_81, %c0_82] : memref<5x2x7xf32, #tpu.memory_space<vmem>>, vector<1x2x7xf32>
    %170 = vector.shape_cast %169 : vector<1x2x7xf32> to vector<2x7xf32>
    %171 = vector.shape_cast %168 : vector<2x7xf32> to vector<1x2x7xf32>
    tpu.vector_store %arg5[%c2_80, %c0_81, %c0_82], %171 {strides = array<i32>} : memref<5x2x7xf32, #tpu.memory_space<vmem>>, vector<1x2x7xf32>,
    %172 = vector.extract_strided_slice %1 {offsets = [3, 0, 0], sizes = [1, 2, 192], strides = [1, 1, 1]} : vector<4x2x192xf32> to vector<1x2x192xf32>
    %173 = vector.shape_cast %172 : vector<1x2x192xf32> to vector<2x192xf32>
    %cst_83 = arith.constant 6.250000e-02 : f32
    %174 = vector.broadcast %cst_83 : f32 to vector<2x192xf32>
    %175 = arith.mulf %173, %174 : vector<2x192xf32>
    %c3 = arith.constant 3 : index
    %c0_84 = arith.constant 0 : index
    %176 = memref.load %arg0[%c3, %c0_84] : memref<5x3xf32, #tpu.memory_space<smem>>
    %177 = vector.broadcast %176 : f32 to vector<192x192xf32>
    %178 = arith.mulf %177, %19 : vector<192x192xf32>
    %c3_85 = arith.constant 3 : index
    %c1_86 = arith.constant 1 : index
    %179 = memref.load %arg0[%c3_85, %c1_86] : memref<5x3xf32, #tpu.memory_space<smem>>
    %180 = vector.broadcast %179 : f32 to vector<192x192xf32>
    %181 = arith.mulf %180, %22 : vector<192x192xf32>
    %182 = arith.addf %178, %181 : vector<192x192xf32>
    %c3_87 = arith.constant 3 : index
    %c2_88 = arith.constant 2 : index
    %183 = memref.load %arg0[%c3_87, %c2_88] : memref<5x3xf32, #tpu.memory_space<smem>>
    %184 = vector.broadcast %183 : f32 to vector<192x192xf32>
    %185 = arith.mulf %184, %27 : vector<192x192xf32>
    %186 = arith.addf %182, %185 : vector<192x192xf32>
    %cst_89 = arith.constant dense<0.000000e+00> : vector<2x192xf32>
    %187 = tpu.matmul %175, %186, %cst_89 {dimension_numbers = #tpu.dot_dimension_numbers<[1], [0], [0], [1], [0, 0, 1, 1], [], []>} : vector<2x192xf32>, vector<192x192xf32>, vector<2x192xf32> -> vector<2x192xf32>
    %188 = arith.negf %187 : vector<2x192xf32>
    %189 = math.exp %188 : vector<2x192xf32>
    %cst_90 = arith.constant 1.000000e+00 : f32
    %190 = vector.broadcast %cst_90 : f32 to vector<2x192xf32>
    %191 = arith.addf %190, %189 : vector<2x192xf32>
    %192 = arith.divf %190, %191 : vector<2x192xf32>
    %193 = arith.mulf %175, %192 : vector<2x192xf32>
    %194 = arith.truncf %193 : vector<2x192xf32> to vector<2x192xbf16>
    %c3_91 = arith.constant 3 : index
    %c0_92 = arith.constant 0 : index
    %c0_93 = arith.constant 0 : index
    %195 = vector.load %arg2[%c3_91, %c0_92, %c0_93] : memref<5x192x256xbf16, #tpu.memory_space<vmem>>, vector<1x192x256xbf16>
    %196 = vector.shape_cast %195 : vector<1x192x256xbf16> to vector<192x256xbf16>
    %cst_94 = arith.constant dense<0.000000e+00> : vector<2x256xf32>
    %197 = tpu.matmul %194, %196, %cst_94 {dimension_numbers = #tpu.dot_dimension_numbers<[1], [0], [0], [1], [0, 0, 1, 1], [], []>} : vector<2x192xbf16>, vector<192x256xbf16>, vector<2x256xf32> -> vector<2x256xf32>
    %c3_95 = arith.constant 3 : index
    %c0_96 = arith.constant 0 : index
    %c0_97 = arith.constant 0 : index
    %198 = vector.load %arg3[%c3_95, %c0_96, %c0_97] : memref<5x1x256xf32, #tpu.memory_space<vmem>>, vector<1x1x256xf32>
    %199 = vector.shape_cast %198 : vector<1x1x256xf32> to vector<1x256xf32>
    %200 = vector.broadcast %199 : vector<1x256xf32> to vector<2x256xf32>
    %201 = arith.addf %197, %200 : vector<2x256xf32>
    %cst_98 = arith.constant 0.000000e+00 : f32
    %202 = vector.broadcast %cst_98 : f32 to vector<2x256xf32>
    %203 = arith.maximumf %201, %202 : vector<2x256xf32>
    %204 = arith.mulf %203, %203 : vector<2x256xf32>
    %cst_99 = arith.constant dense<0.000000e+00> : vector<2xf32>
    %205 = vector.multi_reduction <add>, %204, %cst_99 [1] : vector<2x256xf32> to vector<2xf32>
    %206 = vector.shape_cast %205 : vector<2xf32> to vector<2x1xf32>
    %cst_100 = arith.constant 1.000000e-24 : f32
    %207 = vector.broadcast %cst_100 : f32 to vector<2x1xf32>
    %208 = arith.maximumf %206, %207 : vector<2x1xf32>
    %209 = math.rsqrt %208 : vector<2x1xf32>
    %210 = vector.broadcast %209 : vector<2x1xf32> to vector<2x256xf32>
    %211 = arith.mulf %203, %210 : vector<2x256xf32>
    %c3_101 = arith.constant 3 : index
    %c0_102 = arith.constant 0 : index
    %c0_103 = arith.constant 0 : index
    %212 = vector.load %arg4[%c3_101, %c0_102, %c0_103] : memref<5x256x7xf32, #tpu.memory_space<vmem>>, vector<1x256x7xf32>
    %213 = vector.shape_cast %212 : vector<1x256x7xf32> to vector<256x7xf32>
    %cst_104 = arith.constant dense<0.000000e+00> : vector<2x7xf32>
    %214 = tpu.matmul %211, %213, %cst_104 {dimension_numbers = #tpu.dot_dimension_numbers<[1], [0], [0], [1], [0, 0, 1, 1], [], []>} : vector<2x256xf32>, vector<256x7xf32>, vector<2x7xf32> -> vector<2x7xf32>
    %cst_105 = arith.constant 3.000000e+01 : f32
    %215 = vector.broadcast %cst_105 : f32 to vector<2x7xf32>
    %216 = arith.mulf %215, %214 : vector<2x7xf32>
    %c3_106 = arith.constant 3 : index
    %c0_107 = arith.constant 0 : index
    %c0_108 = arith.constant 0 : index
    %217 = vector.load %arg5[%c3_106, %c0_107, %c0_108] : memref<5x2x7xf32, #tpu.memory_space<vmem>>, vector<1x2x7xf32>
    %218 = vector.shape_cast %217 : vector<1x2x7xf32> to vector<2x7xf32>
    %219 = vector.shape_cast %216 : vector<2x7xf32> to vector<1x2x7xf32>
    tpu.vector_store %arg5[%c3_106, %c0_107, %c0_108], %219 {strides = array<i32>} : memref<5x2x7xf32, #tpu.memory_space<vmem>>, vector<1x2x7xf32>,
    %cst_109 = arith.constant 1.562500e-02 : f32
    %220 = vector.broadcast %cst_109 : f32 to vector<2x192xf32>
    %221 = arith.mulf %12, %220 : vector<2x192xf32>
    %c4 = arith.constant 4 : index
    %c0_110 = arith.constant 0 : index
    %222 = memref.load %arg0[%c4, %c0_110] : memref<5x3xf32, #tpu.memory_space<smem>>
    %223 = vector.broadcast %222 : f32 to vector<192x192xf32>
    %224 = arith.mulf %223, %19 : vector<192x192xf32>
    %c4_111 = arith.constant 4 : index
    %c1_112 = arith.constant 1 : index
    %225 = memref.load %arg0[%c4_111, %c1_112] : memref<5x3xf32, #tpu.memory_space<smem>>
    %226 = vector.broadcast %225 : f32 to vector<192x192xf32>
    %227 = arith.mulf %226, %22 : vector<192x192xf32>
    %228 = arith.addf %224, %227 : vector<192x192xf32>
    %c4_113 = arith.constant 4 : index
    %c2_114 = arith.constant 2 : index
    %229 = memref.load %arg0[%c4_113, %c2_114] : memref<5x3xf32, #tpu.memory_space<smem>>
    %230 = vector.broadcast %229 : f32 to vector<192x192xf32>
    %231 = arith.mulf %230, %27 : vector<192x192xf32>
    %232 = arith.addf %228, %231 : vector<192x192xf32>
    %cst_115 = arith.constant dense<0.000000e+00> : vector<2x192xf32>
    %233 = tpu.matmul %221, %232, %cst_115 {dimension_numbers = #tpu.dot_dimension_numbers<[1], [0], [0], [1], [0, 0, 1, 1], [], []>} : vector<2x192xf32>, vector<192x192xf32>, vector<2x192xf32> -> vector<2x192xf32>
    %234 = arith.negf %233 : vector<2x192xf32>
    %235 = math.exp %234 : vector<2x192xf32>
    %cst_116 = arith.constant 1.000000e+00 : f32
    %236 = vector.broadcast %cst_116 : f32 to vector<2x192xf32>
    %237 = arith.addf %236, %235 : vector<2x192xf32>
    %238 = arith.divf %236, %237 : vector<2x192xf32>
    %239 = arith.mulf %221, %238 : vector<2x192xf32>
    %240 = arith.truncf %239 : vector<2x192xf32> to vector<2x192xbf16>
    %c4_117 = arith.constant 4 : index
    %c0_118 = arith.constant 0 : index
    %c0_119 = arith.constant 0 : index
    %241 = vector.load %arg2[%c4_117, %c0_118, %c0_119] : memref<5x192x256xbf16, #tpu.memory_space<vmem>>, vector<1x192x256xbf16>
    %242 = vector.shape_cast %241 : vector<1x192x256xbf16> to vector<192x256xbf16>
    %cst_120 = arith.constant dense<0.000000e+00> : vector<2x256xf32>
    %243 = tpu.matmul %240, %242, %cst_120 {dimension_numbers = #tpu.dot_dimension_numbers<[1], [0], [0], [1], [0, 0, 1, 1], [], []>} : vector<2x192xbf16>, vector<192x256xbf16>, vector<2x256xf32> -> vector<2x256xf32>
    %c4_121 = arith.constant 4 : index
    %c0_122 = arith.constant 0 : index
    %c0_123 = arith.constant 0 : index
    %244 = vector.load %arg3[%c4_121, %c0_122, %c0_123] : memref<5x1x256xf32, #tpu.memory_space<vmem>>, vector<1x1x256xf32>
    %245 = vector.shape_cast %244 : vector<1x1x256xf32> to vector<1x256xf32>
    %246 = vector.broadcast %245 : vector<1x256xf32> to vector<2x256xf32>
    %247 = arith.addf %243, %246 : vector<2x256xf32>
    %cst_124 = arith.constant 0.000000e+00 : f32
    %248 = vector.broadcast %cst_124 : f32 to vector<2x256xf32>
    %249 = arith.maximumf %247, %248 : vector<2x256xf32>
    %250 = arith.mulf %249, %249 : vector<2x256xf32>
    %cst_125 = arith.constant dense<0.000000e+00> : vector<2xf32>
    %251 = vector.multi_reduction <add>, %250, %cst_125 [1] : vector<2x256xf32> to vector<2xf32>
    %252 = vector.shape_cast %251 : vector<2xf32> to vector<2x1xf32>
    %cst_126 = arith.constant 1.000000e-24 : f32
    %253 = vector.broadcast %cst_126 : f32 to vector<2x1xf32>
    %254 = arith.maximumf %252, %253 : vector<2x1xf32>
    %255 = math.rsqrt %254 : vector<2x1xf32>
    %256 = vector.broadcast %255 : vector<2x1xf32> to vector<2x256xf32>
    %257 = arith.mulf %249, %256 : vector<2x256xf32>
    %c4_127 = arith.constant 4 : index
    %c0_128 = arith.constant 0 : index
    %c0_129 = arith.constant 0 : index
    %258 = vector.load %arg4[%c4_127, %c0_128, %c0_129] : memref<5x256x7xf32, #tpu.memory_space<vmem>>, vector<1x256x7xf32>
    %259 = vector.shape_cast %258 : vector<1x256x7xf32> to vector<256x7xf32>
    %cst_130 = arith.constant dense<0.000000e+00> : vector<2x7xf32>
    %260 = tpu.matmul %257, %259, %cst_130 {dimension_numbers = #tpu.dot_dimension_numbers<[1], [0], [0], [1], [0, 0, 1, 1], [], []>} : vector<2x256xf32>, vector<256x7xf32>, vector<2x7xf32> -> vector<2x7xf32>
    %cst_131 = arith.constant 1.000000e+00 : f32
    %261 = vector.broadcast %cst_131 : f32 to vector<2x7xf32>
    %262 = arith.mulf %261, %260 : vector<2x7xf32>
    %c4_132 = arith.constant 4 : index
    %c0_133 = arith.constant 0 : index
    %c0_134 = arith.constant 0 : index
    %263 = vector.load %arg5[%c4_132, %c0_133, %c0_134] : memref<5x2x7xf32, #tpu.memory_space<vmem>>, vector<1x2x7xf32>
    %264 = vector.shape_cast %263 : vector<1x2x7xf32> to vector<2x7xf32>
    %265 = vector.shape_cast %262 : vector<2x7xf32> to vector<1x2x7xf32>
    tpu.vector_store %arg5[%c4_132, %c0_133, %c0_134], %265 {strides = array<i32>} : memref<5x2x7xf32, #tpu.memory_space<vmem>>, vector<1x2x7xf32>,
    return
  }
}

</mosaic_0001>

<llo_original>
// kernel: fernet_heads.1
$region0: #{fernet_heads.1}
  #allocation0 [shape = 'u32[]', space=smem, size = 0x4, offset = 0x4, fixed_abs, tag = 'smem constant byte address 0x4 - core index']
  #allocation1 [shape = 'u32[144,128]{1,0:T(1,128)}', space=vmem, size = 0x12000, scoped, tag = 'internal scratch']
  %s0 = inlined_call_operand.vmem [shape: f32[5,3], index: 0, kind: input, shape index: {}]
  %s1 = inlined_call_operand.vmem [shape: f32[4,2,16,192], index: 1, kind: input, shape index: {}]
  %s2 = inlined_call_operand.vmem [shape: bf16[5,192,256], index: 2, kind: input, shape index: {}]
  %s3 = inlined_call_operand.vmem [shape: f32[5,1,256], index: 3, kind: input, shape index: {}]
  %s4 = inlined_call_operand.vmem [shape: f32[5,256,7], index: 4, kind: input, shape index: {}]
  %s5 = inlined_call_operand.hbm [shape: f32[5,2,7], index: 5, kind: output, shape index: {}]
  %s6 = sld [smem:[#allocation0]]
  $region34: #{fernet_heads.1} parent=0
    _
  %s8 = ssub.s32 1, %s6
  %s9 = scalar_select 0, %s8, %s6
  $region1: #{fernet_heads.1} parent=0
    #allocation2 [shape = 'u8[4096]{0}', space=smem, size = 0x1000, scoped, tag = 'input window, operand 0, single buffered']
    #allocation3 [shape = 's32[1]{0}', space=sflag, size = 0x4, scoped, tag = 'scoped memory for fernet_heads.1']
    #allocation4 [shape = 's32[1]{0}', space=sflag, size = 0x4, scoped, tag = 'scoped memory for fernet_heads.1']
    #allocation5 [shape = 'u8[5120]{0}', space=vmem, size = 0x1400, scoped, tag = 'output window, operand 0, single buffered']
    %10 = vsyncpa [#allocation4], 0
    %11 = vsyncpa [#allocation3], 0
    // Predicated region
    $region2: #{fernet_heads.1} parent=1 // pred_check
      _
    $region3: #{fernet_heads.1} parent=1 // pred_check_branch
      %13 = sbr.rel (0) target = $region5
    $region4: #{fernet_heads.1} parent=1 // pred_region
      %s15 = ssub.s32 128, 128
      %16 = vsyncadd [#allocation4], %s15
      %s18 = sshll.u32 %s0, 4
      %s19 = int_to_ptr.vmem [resolvable:$true] %s18
      %21 = dma.vmem_to_smem %s19, 128, [#allocation2], [#allocation4]
    $region5: #{fernet_heads.1} parent=1 // pred_fallthru
      _
    // Predicated region
    $region6: #{fernet_heads.1} parent=1 // pred_check
      _
    $region7: #{fernet_heads.1} parent=1 // pred_check_branch
      %23 = sbr.rel (0) target = $region9
    $region8: #{fernet_heads.1} parent=1 // pred_region
      _
    $region9: #{fernet_heads.1} parent=1 // pred_fallthru
      _
    // Predicated region
    $region10: #{fernet_heads.1} parent=1 // pred_check
      _
    $region11: #{fernet_heads.1} parent=1 // pred_check_branch
      %25 = sbr.rel (0) target = $region13
    $region12: #{fernet_heads.1} parent=1 // pred_region
      _
    $region13: #{fernet_heads.1} parent=1 // pred_fallthru
      _
    // Predicated region
    $region14: #{fernet_heads.1} parent=1 // pred_check
      _
    $region15: #{fernet_heads.1} parent=1 // pred_check_branch
      %27 = sbr.rel (0) target = $region17
    $region16: #{fernet_heads.1} parent=1 // pred_region
      _
    $region17: #{fernet_heads.1} parent=1 // pred_fallthru
      _
    // Predicated region
    $region18: #{fernet_heads.1} parent=1 // pred_check
      _
    $region19: #{fernet_heads.1} parent=1 // pred_check_branch
      %29 = sbr.rel (0) target = $region21
    $region20: #{fernet_heads.1} parent=1 // pred_region
      _
    $region21: #{fernet_heads.1} parent=1 // pred_fallthru
      _
    // Predicated region
    $region22: #{fernet_heads.1} parent=1 // pred_check
      _
    $region23: #{fernet_heads.1} parent=1 // pred_check_branch
      %31 = sbr.rel (0) target = $region25
    $region24: #{fernet_heads.1} parent=1 // pred_region
      %32 = dma.done [#allocation4], 128
    $region25: #{fernet_heads.1} parent=1 // pred_fallthru
      _
    %33 = sfence
    %v35 = vld [vmem:[%s1] sm:$0xff]
    %v36 = vld [vmem:[%s1 + $0x8] sm:$0xff]
    %v37 = vld [vmem:[%s1 + $0x10] sm:$0xff]
    %v38 = vld [vmem:[%s1 + $0x18] sm:$0xff]
    %v39 = vld [vmem:[%s1 + $0x20] sm:$0xff]
    %v40 = vld [vmem:[%s1 + $0x28] sm:$0xff]
    %v41 = vld [vmem:[%s1 + $0x30] sm:$0xff]
    %v42 = vld [vmem:[%s1 + $0x38] sm:$0xff]
    %v43 = vld [vmem:[%s1 + $0x40] sm:$0xff]
    %v44 = vld [vmem:[%s1 + $0x48] sm:$0xff]
    %v45 = vld [vmem:[%s1 + $0x50] sm:$0xff]
    %v46 = vld [vmem:[%s1 + $0x58] sm:$0xff]
    %v47 = vld [vmem:[%s1 + $0x60] sm:$0xff]
    %v48 = vld [vmem:[%s1 + $0x68] sm:$0xff]
    %v49 = vld [vmem:[%s1 + $0x70] sm:$0xff]
    %v50 = vld [vmem:[%s1 + $0x78] sm:$0xff]
    %v51 = vld [vmem:[%s1 + $0x80] sm:$0xff]
    %v52 = vld [vmem:[%s1 + $0x88] sm:$0xff]
    %v53 = vld [vmem:[%s1 + $0x90] sm:$0xff]
    %v54 = vld [vmem:[%s1 + $0x98] sm:$0xff]
    %v55 = vld [vmem:[%s1 + $0xa0] sm:$0xff]
    %v56 = vld [vmem:[%s1 + $0xa8] sm:$0xff]
    %v57 = vld [vmem:[%s1 + $0xb0] sm:$0xff]
    %v58 = vld [vmem:[%s1 + $0xb8] sm:$0xff]
    %v59 = vld [vmem:[%s1 + $0xc0] sm:$0xff]
    %v60 = vld [vmem:[%s1 + $0xc8] sm:$0xff]
    %v61 = vld [vmem:[%s1 + $0xd0] sm:$0xff]
    %v62 = vld [vmem:[%s1 + $0xd8] sm:$0xff]
    %v63 = vld [vmem:[%s1 + $0xe0] sm:$0xff]
    %v64 = vld [vmem:[%s1 + $0xe8] sm:$0xff]
    %v65 = vld [vmem:[%s1 + $0xf0] sm:$0xff]
    %v66 = vld [vmem:[%s1 + $0xf8] sm:$0xff]
    %v67 = vadd.f32 %v35, %v37
    %v68 = vrot.slane %v67, 4
    %v69 = vadd.f32 %v67, %v68
    %v70 = vrot.slane %v69, 2
    %v71 = vadd.f32 %v69, %v70
    %v72 = vrot.slane %v71, 1
    %v73 = vadd.f32 %v71, %v72
    %vm74 = vcmask 523264
    %v75 = vsel %vm74, %v36, 0.0
    %v76 = vsel %vm74, %v38, 0.0
    %v77 = vadd.f32 %v75, %v76
    %v78 = vrot.slane %v77, 4
    %v79 = vadd.f32 %v77, %v78
    %v80 = vrot.slane %v79, 2
    %v81 = vadd.f32 %v79, %v80
    %v82 = vrot.slane %v81, 1
    %v83 = vadd.f32 %v81, %v82
    %v84 = vadd.f32 %v39, %v41
    %v85 = vrot.slane %v84, 4
    %v86 = vadd.f32 %v84, %v85
    %v87 = vrot.slane %v86, 2
    %v88 = vadd.f32 %v86, %v87
    %v89 = vrot.slane %v88, 1
    %v90 = vadd.f32 %v88, %v89
    %v91 = vsel %vm74, %v40, 0.0
    %v92 = vsel %vm74, %v42, 0.0
    %v93 = vadd.f32 %v91, %v92
    %v94 = vrot.slane %v93, 4
    %v95 = vadd.f32 %v93, %v94
    %v96 = vrot.slane %v95, 2
    %v97 = vadd.f32 %v95, %v96
    %v98 = vrot.slane %v97, 1
    %v99 = vadd.f32 %v97, %v98
    %v100 = vadd.f32 %v43, %v45
    %v101 = vrot.slane %v100, 4
    %v102 = vadd.f32 %v100, %v101
    %v103 = vrot.slane %v102, 2
    %v104 = vadd.f32 %v102, %v103
    %v105 = vrot.slane %v104, 1
    %v106 = vadd.f32 %v104, %v105
    %v107 = vsel %vm74, %v44, 0.0
    %v108 = vsel %vm74, %v46, 0.0
    %v109 = vadd.f32 %v107, %v108
    %v110 = vrot.slane %v109, 4
    %v111 = vadd.f32 %v109, %v110
    %v112 = vrot.slane %v111, 2
    %v113 = vadd.f32 %v111, %v112
    %v114 = vrot.slane %v113, 1
    %v115 = vadd.f32 %v113, %v114
    %v116 = vadd.f32 %v47, %v49
    %v117 = vrot.slane %v116, 4
    %v118 = vadd.f32 %v116, %v117
    %v119 = vrot.slane %v118, 2
    %v120 = vadd.f32 %v118, %v119
    %v121 = vrot.slane %v120, 1
    %v122 = vadd.f32 %v120, %v121
    %v123 = vsel %vm74, %v48, 0.0
    %v124 = vsel %vm74, %v50, 0.0
    %v125 = vadd.f32 %v123, %v124
    %v126 = vrot.slane %v125, 4
    %v127 = vadd.f32 %v125, %v126
    %v128 = vrot.slane %v127, 2
    %v129 = vadd.f32 %v127, %v128
    %v130 = vrot.slane %v129, 1
    %v131 = vadd.f32 %v129, %v130
    %v132 = vadd.f32 %v51, %v53
    %v133 = vrot.slane %v132, 4
    %v134 = vadd.f32 %v132, %v133
    %v135 = vrot.slane %v134, 2
    %v136 = vadd.f32 %v134, %v135
    %v137 = vrot.slane %v136, 1
    %v138 = vadd.f32 %v136, %v137
    %v139 = vsel %vm74, %v52, 0.0
    %v140 = vsel %vm74, %v54, 0.0
    %v141 = vadd.f32 %v139, %v140
    %v142 = vrot.slane %v141, 4
    %v143 = vadd.f32 %v141, %v142
    %v144 = vrot.slane %v143, 2
    %v145 = vadd.f32 %v143, %v144
    %v146 = vrot.slane %v145, 1
    %v147 = vadd.f32 %v145, %v146
    %v148 = vadd.f32 %v55, %v57
    %v149 = vrot.slane %v148, 4
    %v150 = vadd.f32 %v148, %v149
    %v151 = vrot.slane %v150, 2
    %v152 = vadd.f32 %v150, %v151
    %v153 = vrot.slane %v152, 1
    %v154 = vadd.f32 %v152, %v153
    %v155 = vsel %vm74, %v56, 0.0
    %v156 = vsel %vm74, %v58, 0.0
    %v157 = vadd.f32 %v155, %v156
    %v158 = vrot.slane %v157, 4
    %v159 = vadd.f32 %v157, %v158
    %v160 = vrot.slane %v159, 2
    %v161 = vadd.f32 %v159, %v160
    %v162 = vrot.slane %v161, 1
    %v163 = vadd.f32 %v161, %v162
    %v164 = vadd.f32 %v59, %v61
    %v165 = vrot.slane %v164, 4
    %v166 = vadd.f32 %v164, %v165
    %v167 = vrot.slane %v166, 2
    %v168 = vadd.f32 %v166, %v167
    %v169 = vrot.slane %v168, 1
    %v170 = vadd.f32 %v168, %v169
    %v171 = vsel %vm74, %v60, 0.0
    %v172 = vsel %vm74, %v62, 0.0
    %v173 = vadd.f32 %v171, %v172
    %v174 = vrot.slane %v173, 4
    %v175 = vadd.f32 %v173, %v174
    %v176 = vrot.slane %v175, 2
    %v177 = vadd.f32 %v175, %v176
    %v178 = vrot.slane %v177, 1
    %v179 = vadd.f32 %v177, %v178
    %v180 = vadd.f32 %v63, %v65
    %v181 = vrot.slane %v180, 4
    %v182 = vadd.f32 %v180, %v181
    %v183 = vrot.slane %v182, 2
    %v184 = vadd.f32 %v182, %v183
    %v185 = vrot.slane %v184, 1
    %v186 = vadd.f32 %v184, %v185
    %v187 = vsel %vm74, %v64, 0.0
    %v188 = vsel %vm74, %v66, 0.0
    %v189 = vadd.f32 %v187, %v188
    %v190 = vrot.slane %v189, 4
    %v191 = vadd.f32 %v189, %v190
    %v192 = vrot.slane %v191, 2
    %v193 = vadd.f32 %v191, %v192
    %v194 = vrot.slane %v193, 1
    %v195 = vadd.f32 %v193, %v194
    %v196 = vadd.f32 %v73, %v106
    %v197 = vadd.f32 %v83, %v115
    %v198 = vadd.f32 %v90, %v122
    %v199 = vadd.f32 %v99, %v131
    %v200 = vadd.f32 %v196, %v138
    %v201 = vadd.f32 %v197, %v147
    %v202 = vadd.f32 %v198, %v154
    %v203 = vadd.f32 %v199, %v163
    %v204 = vadd.f32 %v200, %v170
    %v205 = vadd.f32 %v201, %v179
    %v206 = vadd.f32 %v202, %v186
    %v207 = vadd.f32 %v203, %v195
    %v208 = vlaneseq
    %v209 = vshrl.u32 %v208, 7
    %v210 = vadd.s32 %v209, 8
    %v211 = vadd.s32 %v209, 16
    %v212 = vadd.s32 %v209, 24
    %v213 = vadd.s32 %v209, 32
    %v214 = vadd.s32 %v209, 40
    %v215 = vadd.s32 %v209, 48
    %v216 = vadd.s32 %v209, 56
    %v217 = vadd.s32 %v209, 64
    %v218 = vadd.s32 %v209, 72
    %v219 = vadd.s32 %v209, 80
    %v220 = vadd.s32 %v209, 88
    %v221 = vadd.s32 %v209, 96
    %v222 = vadd.s32 %v209, 104
    %v223 = vadd.s32 %v209, 112
    %v224 = vadd.s32 %v209, 120
    %v225 = vadd.s32 %v209, 128
    %v226 = vadd.s32 %v209, 136
    %v227 = vadd.s32 %v209, 144
    %v228 = vadd.s32 %v209, 152
    %v229 = vadd.s32 %v209, 160
    %v230 = vadd.s32 %v209, 168
    %v231 = vadd.s32 %v209, 176
    %v232 = vadd.s32 %v209, 184
    %v233 = vlaneseq
    %v234 = vand.u32 %v233, 127
    %v235 = vadd.s32 %v234, 128
    %v236 = vadd.s32 %v209, 1
    %v237 = vadd.s32 %v210, 1
    %v238 = vadd.s32 %v211, 1
    %v239 = vadd.s32 %v212, 1
    %v240 = vadd.s32 %v213, 1
    %v241 = vadd.s32 %v214, 1
    %v242 = vadd.s32 %v215, 1
    %v243 = vadd.s32 %v216, 1
    %v244 = vadd.s32 %v217, 1
    %v245 = vadd.s32 %v218, 1
    %v246 = vadd.s32 %v219, 1
    %v247 = vadd.s32 %v220, 1
    %v248 = vadd.s32 %v221, 1
    %v249 = vadd.s32 %v222, 1
    %v250 = vadd.s32 %v223, 1
    %v251 = vadd.s32 %v224, 1
    %v252 = vadd.s32 %v225, 1
    %v253 = vadd.s32 %v226, 1
    %v254 = vadd.s32 %v227, 1
    %v255 = vadd.s32 %v228, 1
    %v256 = vadd.s32 %v229, 1
    %v257 = vadd.s32 %v230, 1
    %v258 = vadd.s32 %v231, 1
    %v259 = vadd.s32 %v232, 1
    %vm260 = vcmp.eq.s32.totalorder %v234, %v236
    %vm261 = vcmp.eq.s32.totalorder %v235, %v236
    %vm262 = vcmp.eq.s32.totalorder %v234, %v237
    %vm263 = vcmp.eq.s32.totalorder %v235, %v237
    %vm264 = vcmp.eq.s32.totalorder %v234, %v238
    %vm265 = vcmp.eq.s32.totalorder %v235, %v238
    %vm266 = vcmp.eq.s32.totalorder %v234, %v239
    %vm267 = vcmp.eq.s32.totalorder %v235, %v239
    %vm268 = vcmp.eq.s32.totalorder %v234, %v240
    %vm269 = vcmp.eq.s32.totalorder %v235, %v240
    %vm270 = vcmp.eq.s32.totalorder %v234, %v241
    %vm271 = vcmp.eq.s32.totalorder %v235, %v241
    %vm272 = vcmp.eq.s32.totalorder %v234, %v242
    %vm273 = vcmp.eq.s32.totalorder %v235, %v242
    %vm274 = vcmp.eq.s32.totalorder %v234, %v243
    %vm275 = vcmp.eq.s32.totalorder %v235, %v243
    %vm276 = vcmp.eq.s32.totalorder %v234, %v244
    %vm277 = vcmp.eq.s32.totalorder %v235, %v244
    %vm278 = vcmp.eq.s32.totalorder %v234, %v245
    %vm279 = vcmp.eq.s32.totalorder %v235, %v245
    %vm280 = vcmp.eq.s32.totalorder %v234, %v246
    %vm281 = vcmp.eq.s32.totalorder %v235, %v246
    %vm282 = vcmp.eq.s32.totalorder %v234, %v247
    %vm283 = vcmp.eq.s32.totalorder %v235, %v247
    %vm284 = vcmp.eq.s32.totalorder %v234, %v248
    %vm285 = vcmp.eq.s32.totalorder %v235, %v248
    %vm286 = vcmp.eq.s32.totalorder %v234, %v249
    %vm287 = vcmp.eq.s32.totalorder %v235, %v249
    %vm288 = vcmp.eq.s32.totalorder %v234, %v250
    %vm289 = vcmp.eq.s32.totalorder %v235, %v250
    %vm290 = vcmp.eq.s32.totalorder %v234, %v251
    %vm291 = vcmp.eq.s32.totalorder %v235, %v251
    %vm292 = vcmp.eq.s32.totalorder %v234, %v252
    %vm293 = vcmp.eq.s32.totalorder %v235, %v252
    %vm294 = vcmp.eq.s32.totalorder %v234, %v253
    %vm295 = vcmp.eq.s32.totalorder %v235, %v253
    %vm296 = vcmp.eq.s32.totalorder %v234, %v254
    %vm297 = vcmp.eq.s32.totalorder %v235, %v254
    %vm298 = vcmp.eq.s32.totalorder %v234, %v255
    %vm299 = vcmp.eq.s32.totalorder %v235, %v255
    %vm300 = vcmp.eq.s32.totalorder %v234, %v256
    %vm301 = vcmp.eq.s32.totalorder %v235, %v256
    %vm302 = vcmp.eq.s32.totalorder %v234, %v257
    %vm303 = vcmp.eq.s32.totalorder %v235, %v257
    %vm304 = vcmp.eq.s32.totalorder %v234, %v258
    %vm305 = vcmp.eq.s32.totalorder %v235, %v258
    %vm306 = vcmp.eq.s32.totalorder %v234, %v259
    %vm307 = vcmp.eq.s32.totalorder %v235, %v259
    %v308 = vsel %vm260, 1, 0
    %v309 = vsel %vm261, 1, 0
    %v310 = vsel %vm262, 1, 0
    %v311 = vsel %vm263, 1, 0
    %v312 = vsel %vm264, 1, 0
    %v313 = vsel %vm265, 1, 0
    %v314 = vsel %vm266, 1, 0
    %v315 = vsel %vm267, 1, 0
    %v316 = vsel %vm268, 1, 0
    %v317 = vsel %vm269, 1, 0
    %v318 = vsel %vm270, 1, 0
    %v319 = vsel %vm271, 1, 0
    %v320 = vsel %vm272, 1, 0
    %v321 = vsel %vm273, 1, 0
    %v322 = vsel %vm274, 1, 0
    %v323 = vsel %vm275, 1, 0
    %v324 = vsel %vm276, 1, 0
    %v325 = vsel %vm277, 1, 0
    %v326 = vsel %vm278, 1, 0
    %v327 = vsel %vm279, 1, 0
    %v328 = vsel %vm280, 1, 0
    %v329 = vsel %vm281, 1, 0
    %v330 = vsel %vm282, 1, 0
    %v331 = vsel %vm283, 1, 0
    %v332 = vsel %vm284, 1, 0
    %v333 = vsel %vm285, 1, 0
    %v334 = vsel %vm286, 1, 0
    %v335 = vsel %vm287, 1, 0
    %v336 = vsel %vm288, 1, 0
    %v337 = vsel %vm289, 1, 0
    %v338 = vsel %vm290, 1, 0
    %v339 = vsel %vm291, 1, 0
    %v340 = vsel %vm292, 1, 0
    %v341 = vsel %vm293, 1, 0
    %v342 = vsel %vm294, 1, 0
    %v343 = vsel %vm295, 1, 0
    %v344 = vsel %vm296, 1, 0
    %v345 = vsel %vm297, 1, 0
    %v346 = vsel %vm298, 1, 0
    %v347 = vsel %vm299, 1, 0
    %v348 = vsel %vm300, 1, 0
    %v349 = vsel %vm301, 1, 0
    %v350 = vsel %vm302, 1, 0
    %v351 = vsel %vm303, 1, 0
    %v352 = vsel %vm304, 1, 0
    %v353 = vsel %vm305, 1, 0
    %v354 = vsel %vm306, 1, 0
    %v355 = vsel %vm307, 1, 0
    %v356 = vcvt.s32.f32 %v308
    %v357 = vcvt.s32.f32 %v309
    %v358 = vcvt.s32.f32 %v310
    %v359 = vcvt.s32.f32 %v311
    %v360 = vcvt.s32.f32 %v312
    %v361 = vcvt.s32.f32 %v313
    %v362 = vcvt.s32.f32 %v314
    %v363 = vcvt.s32.f32 %v315
    %v364 = vcvt.s32.f32 %v316
    %v365 = vcvt.s32.f32 %v317
    %v366 = vcvt.s32.f32 %v318
    %v367 = vcvt.s32.f32 %v319
    %v368 = vcvt.s32.f32 %v320
    %v369 = vcvt.s32.f32 %v321
    %v370 = vcvt.s32.f32 %v322
    %v371 = vcvt.s32.f32 %v323
    %v372 = vcvt.s32.f32 %v324
    %v373 = vcvt.s32.f32 %v325
    %v374 = vcvt.s32.f32 %v326
    %v375 = vcvt.s32.f32 %v327
    %v376 = vcvt.s32.f32 %v328
    %v377 = vcvt.s32.f32 %v329
    %v378 = vcvt.s32.f32 %v330
    %v379 = vcvt.s32.f32 %v331
    %v380 = vcvt.s32.f32 %v332
    %v381 = vcvt.s32.f32 %v333
    %v382 = vcvt.s32.f32 %v334
    %v383 = vcvt.s32.f32 %v335
    %v384 = vcvt.s32.f32 %v336
    %v385 = vcvt.s32.f32 %v337
    %v386 = vcvt.s32.f32 %v338
    %v387 = vcvt.s32.f32 %v339
    %v388 = vcvt.s32.f32 %v340
    %v389 = vcvt.s32.f32 %v341
    %v390 = vcvt.s32.f32 %v342
    %v391 = vcvt.s32.f32 %v343
    %v392 = vcvt.s32.f32 %v344
    %v393 = vcvt.s32.f32 %v345
    %v394 = vcvt.s32.f32 %v346
    %v395 = vcvt.s32.f32 %v347
    %v396 = vcvt.s32.f32 %v348
    %v397 = vcvt.s32.f32 %v349
    %v398 = vcvt.s32.f32 %v350
    %v399 = vcvt.s32.f32 %v351
    %v400 = vcvt.s32.f32 %v352
    %v401 = vcvt.s32.f32 %v353
    %v402 = vcvt.s32.f32 %v354
    %v403 = vcvt.s32.f32 %v355
    %vm404 = vcmp.eq.s32.totalorder %v234, %v209
    %vm405 = vcmp.eq.s32.totalorder %v235, %v209
    %vm406 = vcmp.eq.s32.totalorder %v234, %v210
    %vm407 = vcmp.eq.s32.totalorder %v235, %v210
    %vm408 = vcmp.eq.s32.totalorder %v234, %v211
    %vm409 = vcmp.eq.s32.totalorder %v235, %v211
    %vm410 = vcmp.eq.s32.totalorder %v234, %v212
    %vm411 = vcmp.eq.s32.totalorder %v235, %v212
    %vm412 = vcmp.eq.s32.totalorder %v234, %v213
    %vm413 = vcmp.eq.s32.totalorder %v235, %v213
    %vm414 = vcmp.eq.s32.totalorder %v234, %v214
    %vm415 = vcmp.eq.s32.totalorder %v235, %v214
    %vm416 = vcmp.eq.s32.totalorder %v234, %v215
    %vm417 = vcmp.eq.s32.totalorder %v235, %v215
    %vm418 = vcmp.eq.s32.totalorder %v234, %v216
    %vm419 = vcmp.eq.s32.totalorder %v235, %v216
    %vm420 = vcmp.eq.s32.totalorder %v234, %v217
    %vm421 = vcmp.eq.s32.totalorder %v235, %v217
    %vm422 = vcmp.eq.s32.totalorder %v234, %v218
    %vm423 = vcmp.eq.s32.totalorder %v235, %v218
    %vm424 = vcmp.eq.s32.totalorder %v234, %v219
    %vm425 = vcmp.eq.s32.totalorder %v235, %v219
    %vm426 = vcmp.eq.s32.totalorder %v234, %v220
    %vm427 = vcmp.eq.s32.totalorder %v235, %v220
    %vm428 = vcmp.eq.s32.totalorder %v234, %v221
    %vm429 = vcmp.eq.s32.totalorder %v235, %v221
    %vm430 = vcmp.eq.s32.totalorder %v234, %v222
    %vm431 = vcmp.eq.s32.totalorder %v235, %v222
    %vm432 = vcmp.eq.s32.totalorder %v234, %v223
    %vm433 = vcmp.eq.s32.totalorder %v235, %v223
    %vm434 = vcmp.eq.s32.totalorder %v234, %v224
    %vm435 = vcmp.eq.s32.totalorder %v235, %v224
    %vm436 = vcmp.eq.s32.totalorder %v234, %v225
    %vm437 = vcmp.eq.s32.totalorder %v235, %v225
    %vm438 = vcmp.eq.s32.totalorder %v234, %v226
    %vm439 = vcmp.eq.s32.totalorder %v235, %v226
    %vm440 = vcmp.eq.s32.totalorder %v234, %v227
    %vm441 = vcmp.eq.s32.totalorder %v235, %v227
    %vm442 = vcmp.eq.s32.totalorder %v234, %v228
    %vm443 = vcmp.eq.s32.totalorder %v235, %v228
    %vm444 = vcmp.eq.s32.totalorder %v234, %v229
    %vm445 = vcmp.eq.s32.totalorder %v235, %v229
    %vm446 = vcmp.eq.s32.totalorder %v234, %v230
    %vm447 = vcmp.eq.s32.totalorder %v235, %v230
    %vm448 = vcmp.eq.s32.totalorder %v234, %v231
    %vm449 = vcmp.eq.s32.totalorder %v235, %v231
    %vm450 = vcmp.eq.s32.totalorder %v234, %v232
    %vm451 = vcmp.eq.s32.totalorder %v235, %v232
    %v452 = vsel %vm404, 1, 0
    %v453 = vsel %vm405, 1, 0
    %v454 = vsel %vm406, 1, 0
    %v455 = vsel %vm407, 1, 0
    %v456 = vsel %vm408, 1, 0
    %v457 = vsel %vm409, 1, 0
    %v458 = vsel %vm410, 1, 0
    %v459 = vsel %vm411, 1, 0
    %v460 = vsel %vm412, 1, 0
    %v461 = vsel %vm413, 1, 0
    %v462 = vsel %vm414, 1, 0
    %v463 = vsel %vm415, 1, 0
    %v464 = vsel %vm416, 1, 0
    %v465 = vsel %vm417, 1, 0
    %v466 = vsel %vm418, 1, 0
    %v467 = vsel %vm419, 1, 0
    %v468 = vsel %vm420, 1, 0
    %v469 = vsel %vm421, 1, 0
    %v470 = vsel %vm422, 1, 0
    %v471 = vsel %vm423, 1, 0
    %v472 = vsel %vm424, 1, 0
    %v473 = vsel %vm425, 1, 0
    %v474 = vsel %vm426, 1, 0
    %v475 = vsel %vm427, 1, 0
    %v476 = vsel %vm428, 1, 0
    %v477 = vsel %vm429, 1, 0
    %v478 = vsel %vm430, 1, 0
    %v479 = vsel %vm431, 1, 0
    %v480 = vsel %vm432, 1, 0
    %v481 = vsel %vm433, 1, 0
    %v482 = vsel %vm434, 1, 0
    %v483 = vsel %vm435, 1, 0
    %v484 = vsel %vm436, 1, 0
    %v485 = vsel %vm437, 1, 0
    %v486 = vsel %vm438, 1, 0
    %v487 = vsel %vm439, 1, 0
    %v488 = vsel %vm440, 1, 0
    %v489 = vsel %vm441, 1, 0
    %v490 = vsel %vm442, 1, 0
    %v491 = vsel %vm443, 1, 0
    %v492 = vsel %vm444, 1, 0
    %v493 = vsel %vm445, 1, 0
    %v494 = vsel %vm446, 1, 0
    %v495 = vsel %vm447, 1, 0
    %v496 = vsel %vm448, 1, 0
    %v497 = vsel %vm449, 1, 0
    %v498 = vsel %vm450, 1, 0
    %v499 = vsel %vm451, 1, 0
    %v500 = vcvt.s32.f32 %v452
    %v501 = vcvt.s32.f32 %v453
    %v502 = vcvt.s32.f32 %v454
    %v503 = vcvt.s32.f32 %v455
    %v504 = vcvt.s32.f32 %v456
    %v505 = vcvt.s32.f32 %v457
    %v506 = vcvt.s32.f32 %v458
    %v507 = vcvt.s32.f32 %v459
    %v508 = vcvt.s32.f32 %v460
    %v509 = vcvt.s32.f32 %v461
    %v510 = vcvt.s32.f32 %v462
    %v511 = vcvt.s32.f32 %v463
    %v512 = vcvt.s32.f32 %v464
    %v513 = vcvt.s32.f32 %v465
    %v514 = vcvt.s32.f32 %v466
    %v515 = vcvt.s32.f32 %v467
    %v516 = vcvt.s32.f32 %v468
    %v517 = vcvt.s32.f32 %v469
    %v518 = vcvt.s32.f32 %v470
    %v519 = vcvt.s32.f32 %v471
    %v520 = vcvt.s32.f32 %v472
    %v521 = vcvt.s32.f32 %v473
    %v522 = vcvt.s32.f32 %v474
    %v523 = vcvt.s32.f32 %v475
    %v524 = vcvt.s32.f32 %v476
    %v525 = vcvt.s32.f32 %v477
    %v526 = vcvt.s32.f32 %v478
    %v527 = vcvt.s32.f32 %v479
    %v528 = vcvt.s32.f32 %v480
    %v529 = vcvt.s32.f32 %v481
    %v530 = vcvt.s32.f32 %v482
    %v531 = vcvt.s32.f32 %v483
    %v532 = vcvt.s32.f32 %v484
    %v533 = vcvt.s32.f32 %v485
    %v534 = vcvt.s32.f32 %v486
    %v535 = vcvt.s32.f32 %v487
    %v536 = vcvt.s32.f32 %v488
    %v537 = vcvt.s32.f32 %v489
    %v538 = vcvt.s32.f32 %v490
    %v539 = vcvt.s32.f32 %v491
    %v540 = vcvt.s32.f32 %v492
    %v541 = vcvt.s32.f32 %v493
    %v542 = vcvt.s32.f32 %v494
    %v543 = vcvt.s32.f32 %v495
    %v544 = vcvt.s32.f32 %v496
    %v545 = vcvt.s32.f32 %v497
    %v546 = vcvt.s32.f32 %v498
    %v547 = vcvt.s32.f32 %v499
    %v548 = vsub.s32 %v209, 1
    %v549 = vsub.s32 %v210, 1
    %v550 = vsub.s32 %v211, 1
    %v551 = vsub.s32 %v212, 1
    %v552 = vsub.s32 %v213, 1
    %v553 = vsub.s32 %v214, 1
    %v554 = vsub.s32 %v215, 1
    %v555 = vsub.s32 %v216, 1
    %v556 = vsub.s32 %v217, 1
    %v557 = vsub.s32 %v218, 1
    %v558 = vsub.s32 %v219, 1
    %v559 = vsub.s32 %v220, 1
    %v560 = vsub.s32 %v221, 1
    %v561 = vsub.s32 %v222, 1
    %v562 = vsub.s32 %v223, 1
    %v563 = vsub.s32 %v224, 1
    %v564 = vsub.s32 %v225, 1
    %v565 = vsub.s32 %v226, 1
    %v566 = vsub.s32 %v227, 1
    %v567 = vsub.s32 %v228, 1
    %v568 = vsub.s32 %v229, 1
    %v569 = vsub.s32 %v230, 1
    %v570 = vsub.s32 %v231, 1
    %v571 = vsub.s32 %v232, 1
    %vm572 = vcmp.eq.s32.totalorder %v234, %v548
    %vm573 = vcmp.eq.s32.totalorder %v235, %v548
    %vm574 = vcmp.eq.s32.totalorder %v234, %v549
    %vm575 = vcmp.eq.s32.totalorder %v235, %v549
    %vm576 = vcmp.eq.s32.totalorder %v234, %v550
    %vm577 = vcmp.eq.s32.totalorder %v235, %v550
    %vm578 = vcmp.eq.s32.totalorder %v234, %v551
    %vm579 = vcmp.eq.s32.totalorder %v235, %v551
    %vm580 = vcmp.eq.s32.totalorder %v234, %v552
    %vm581 = vcmp.eq.s32.totalorder %v235, %v552
    %vm582 = vcmp.eq.s32.totalorder %v234, %v553
    %vm583 = vcmp.eq.s32.totalorder %v235, %v553
    %vm584 = vcmp.eq.s32.totalorder %v234, %v554
    %vm585 = vcmp.eq.s32.totalorder %v235, %v554
    %vm586 = vcmp.eq.s32.totalorder %v234, %v555
    %vm587 = vcmp.eq.s32.totalorder %v235, %v555
    %vm588 = vcmp.eq.s32.totalorder %v234, %v556
    %vm589 = vcmp.eq.s32.totalorder %v235, %v556
    %vm590 = vcmp.eq.s32.totalorder %v234, %v557
    %vm591 = vcmp.eq.s32.totalorder %v235, %v557
    %vm592 = vcmp.eq.s32.totalorder %v234, %v558
    %vm593 = vcmp.eq.s32.totalorder %v235, %v558
    %vm594 = vcmp.eq.s32.totalorder %v234, %v559
    %vm595 = vcmp.eq.s32.totalorder %v235, %v559
    %vm596 = vcmp.eq.s32.totalorder %v234, %v560
    %vm597 = vcmp.eq.s32.totalorder %v235, %v560
    %vm598 = vcmp.eq.s32.totalorder %v234, %v561
    %vm599 = vcmp.eq.s32.totalorder %v235, %v561
    %vm600 = vcmp.eq.s32.totalorder %v234, %v562
    %vm601 = vcmp.eq.s32.totalorder %v235, %v562
    %vm602 = vcmp.eq.s32.totalorder %v234, %v563
    %vm603 = vcmp.eq.s32.totalorder %v235, %v563
    %vm604 = vcmp.eq.s32.totalorder %v234, %v564
    %vm605 = vcmp.eq.s32.totalorder %v235, %v564
    %vm606 = vcmp.eq.s32.totalorder %v234, %v565
    %vm607 = vcmp.eq.s32.totalorder %v235, %v565
    %vm608 = vcmp.eq.s32.totalorder %v234, %v566
    %vm609 = vcmp.eq.s32.totalorder %v235, %v566
    %vm610 = vcmp.eq.s32.totalorder %v234, %v567
    %vm611 = vcmp.eq.s32.totalorder %v235, %v567
    %vm612 = vcmp.eq.s32.totalorder %v234, %v568
    %vm613 = vcmp.eq.s32.totalorder %v235, %v568
    %vm614 = vcmp.eq.s32.totalorder %v234, %v569
    %vm615 = vcmp.eq.s32.totalorder %v235, %v569
    %vm616 = vcmp.eq.s32.totalorder %v234, %v570
    %vm617 = vcmp.eq.s32.totalorder %v235, %v570
    %vm618 = vcmp.eq.s32.totalorder %v234, %v571
    %vm619 = vcmp.eq.s32.totalorder %v235, %v571
    %v620 = vsel %vm572, 1, 0
    %v621 = vsel %vm573, 1, 0
    %v622 = vsel %vm574, 1, 0
    %v623 = vsel %vm575, 1, 0
    %v624 = vsel %vm576, 1, 0
    %v625 = vsel %vm577, 1, 0
    %v626 = vsel %vm578, 1, 0
    %v627 = vsel %vm579, 1, 0
    %v628 = vsel %vm580, 1, 0
    %v629 = vsel %vm581, 1, 0
    %v630 = vsel %vm582, 1, 0
    %v631 = vsel %vm583, 1, 0
    %v632 = vsel %vm584, 1, 0
    %v633 = vsel %vm585, 1, 0
    %v634 = vsel %vm586, 1, 0
    %v635 = vsel %vm587, 1, 0
    %v636 = vsel %vm588, 1, 0
    %v637 = vsel %vm589, 1, 0
    %v638 = vsel %vm590, 1, 0
    %v639 = vsel %vm591, 1, 0
    %v640 = vsel %vm592, 1, 0
    %v641 = vsel %vm593, 1, 0
    %v642 = vsel %vm594, 1, 0
    %v643 = vsel %vm595, 1, 0
    %v644 = vsel %vm596, 1, 0
    %v645 = vsel %vm597, 1, 0
    %v646 = vsel %vm598, 1, 0
    %v647 = vsel %vm599, 1, 0
    %v648 = vsel %vm600, 1, 0
    %v649 = vsel %vm601, 1, 0
    %v650 = vsel %vm602, 1, 0
    %v651 = vsel %vm603, 1, 0
    %v652 = vsel %vm604, 1, 0
    %v653 = vsel %vm605, 1, 0
    %v654 = vsel %vm606, 1, 0
    %v655 = vsel %vm607, 1, 0
    %v656 = vsel %vm608, 1, 0
    %v657 = vsel %vm609, 1, 0
    %v658 = vsel %vm610, 1, 0
    %v659 = vsel %vm611, 1, 0
    %v660 = vsel %vm612, 1, 0
    %v661 = vsel %vm613, 1, 0
    %v662 = vsel %vm614, 1, 0
    %v663 = vsel %vm615, 1, 0
    %v664 = vsel %vm616, 1, 0
    %v665 = vsel %vm617, 1, 0
    %v666 = vsel %vm618, 1, 0
    %v667 = vsel %vm619, 1, 0
    %v668 = vcvt.s32.f32 %v620
    %v669 = vcvt.s32.f32 %v621
    %v670 = vcvt.s32.f32 %v622
    %v671 = vcvt.s32.f32 %v623
    %v672 = vcvt.s32.f32 %v624
    %v673 = vcvt.s32.f32 %v625
    %v674 = vcvt.s32.f32 %v626
    %v675 = vcvt.s32.f32 %v627
    %v676 = vcvt.s32.f32 %v628
    %v677 = vcvt.s32.f32 %v629
    %v678 = vcvt.s32.f32 %v630
    %v679 = vcvt.s32.f32 %v631
    %v680 = vcvt.s32.f32 %v632
    %v681 = vcvt.s32.f32 %v633
    %v682 = vcvt.s32.f32 %v634
    %v683 = vcvt.s32.f32 %v635
    %v684 = vcvt.s32.f32 %v636
    %v685 = vcvt.s32.f32 %v637
    %v686 = vcvt.s32.f32 %v638
    %v687 = vcvt.s32.f32 %v639
    %v688 = vcvt.s32.f32 %v640
    %v689 = vcvt.s32.f32 %v641
    %v690 = vcvt.s32.f32 %v642
    %v691 = vcvt.s32.f32 %v643
    %v692 = vcvt.s32.f32 %v644
    %v693 = vcvt.s32.f32 %v645
    %v694 = vcvt.s32.f32 %v646
    %v695 = vcvt.s32.f32 %v647
    %v696 = vcvt.s32.f32 %v648
    %v697 = vcvt.s32.f32 %v649
    %v698 = vcvt.s32.f32 %v650
    %v699 = vcvt.s32.f32 %v651
    %v700 = vcvt.s32.f32 %v652
    %v701 = vcvt.s32.f32 %v653
    %v702 = vcvt.s32.f32 %v654
    %v703 = vcvt.s32.f32 %v655
    %v704 = vcvt.s32.f32 %v656
    %v705 = vcvt.s32.f32 %v657
    %v706 = vcvt.s32.f32 %v658
    %v707 = vcvt.s32.f32 %v659
    %v708 = vcvt.s32.f32 %v660
    %v709 = vcvt.s32.f32 %v661
    %v710 = vcvt.s32.f32 %v662
    %v711 = vcvt.s32.f32 %v663
    %v712 = vcvt.s32.f32 %v664
    %v713 = vcvt.s32.f32 %v665
    %v714 = vcvt.s32.f32 %v666
    %v715 = vcvt.s32.f32 %v667
    %v716 = vmul.f32 %v73, 0.0625
    %v717 = vmul.f32 %v83, 0.0625
    %v718 = vmul.f32 %v90, 0.0625
    %v719 = vmul.f32 %v99, 0.0625
    %s720 = sld [smem:[#allocation2]]
    %v721 = vstv %s720
    %v722 = vmul.f32 %v721, %v356
    %v723 = vmul.f32 %v721, %v357
    %v724 = vmul.f32 %v721, %v358
    %v725 = vmul.f32 %v721, %v359
    %v726 = vmul.f32 %v721, %v360
    %v727 = vmul.f32 %v721, %v361
    %v728 = vmul.f32 %v721, %v362
    %v729 = vmul.f32 %v721, %v363
    %v730 = vmul.f32 %v721, %v364
    %v731 = vmul.f32 %v721, %v365
    %v732 = vmul.f32 %v721, %v366
    %v733 = vmul.f32 %v721, %v367
    %v734 = vmul.f32 %v721, %v368
    %v735 = vmul.f32 %v721, %v369
    %v736 = vmul.f32 %v721, %v370
    %v737 = vmul.f32 %v721, %v371
    %v738 = vmul.f32 %v721, %v372
    %v739 = vmul.f32 %v721, %v373
    %v740 = vmul.f32 %v721, %v374
    %v741 = vmul.f32 %v721, %v375
    %v742 = vmul.f32 %v721, %v376
    %v743 = vmul.f32 %v721, %v377
    %v744 = vmul.f32 %v721, %v378
    %v745 = vmul.f32 %v721, %v379
    %v746 = vmul.f32 %v721, %v380
    %v747 = vmul.f32 %v721, %v381
    %v748 = vmul.f32 %v721, %v382
    %v749 = vmul.f32 %v721, %v383
    %v750 = vmul.f32 %v721, %v384
    %v751 = vmul.f32 %v721, %v385
    %v752 = vmul.f32 %v721, %v386
    %v753 = vmul.f32 %v721, %v387
    %v754 = vmul.f32 %v721, %v388
    %v755 = vmul.f32 %v721, %v389
    %v756 = vmul.f32 %v721, %v390
    %v757 = vmul.f32 %v721, %v391
    %v758 = vmul.f32 %v721, %v392
    %v759 = vmul.f32 %v721, %v393
    %v760 = vmul.f32 %v721, %v394
    %v761 = vmul.f32 %v721, %v395
    %v762 = vmul.f32 %v721, %v396
    %v763 = vmul.f32 %v721, %v397
    %v764 = vmul.f32 %v721, %v398
    %v765 = vmul.f32 %v721, %v399
    %v766 = vmul.f32 %v721, %v400
    %v767 = vmul.f32 %v721, %v401
    %v768 = vmul.f32 %v721, %v402
    %v769 = vmul.f32 %v721, %v403
    %s770 = sld [smem:[#allocation2 + $0x1]]
    %v771 = vstv %s770
    %v772 = vmul.f32 %v771, %v500
    %v773 = vmul.f32 %v771, %v501
    %v774 = vmul.f32 %v771, %v502
    %v775 = vmul.f32 %v771, %v503
    %v776 = vmul.f32 %v771, %v504
    %v777 = vmul.f32 %v771, %v505
    %v778 = vmul.f32 %v771, %v506
    %v779 = vmul.f32 %v771, %v507
    %v780 = vmul.f32 %v771, %v508
    %v781 = vmul.f32 %v771, %v509
    %v782 = vmul.f32 %v771, %v510
    %v783 = vmul.f32 %v771, %v511
    %v784 = vmul.f32 %v771, %v512
    %v785 = vmul.f32 %v771, %v513
    %v786 = vmul.f32 %v771, %v514
    %v787 = vmul.f32 %v771, %v515
    %v788 = vmul.f32 %v771, %v516
    %v789 = vmul.f32 %v771, %v517
    %v790 = vmul.f32 %v771, %v518
    %v791 = vmul.f32 %v771, %v519
    %v792 = vmul.f32 %v771, %v520
    %v793 = vmul.f32 %v771, %v521
    %v794 = vmul.f32 %v771, %v522
    %v795 = vmul.f32 %v771, %v523
    %v796 = vmul.f32 %v771, %v524
    %v797 = vmul.f32 %v771, %v525
    %v798 = vmul.f32 %v771, %v526
    %v799 = vmul.f32 %v771, %v527
    %v800 = vmul.f32 %v771, %v528
    %v801 = vmul.f32 %v771, %v529
    %v802 = vmul.f32 %v771, %v530
    %v803 = vmul.f32 %v771, %v531
    %v804 = vmul.f32 %v771, %v532
    %v805 = vmul.f32 %v771, %v533
    %v806 = vmul.f32 %v771, %v534
    %v807 = vmul.f32 %v771, %v535
    %v808 = vmul.f32 %v771, %v536
    %v809 = vmul.f32 %v771, %v537
    %v810 = vmul.f32 %v771, %v538
    %v811 = vmul.f32 %v771, %v539
    %v812 = vmul.f32 %v771, %v540
    %v813 = vmul.f32 %v771, %v541
    %v814 = vmul.f32 %v771, %v542
    %v815 = vmul.f32 %v771, %v543
    %v816 = vmul.f32 %v771, %v544
    %v817 = vmul.f32 %v771, %v545
    %v818 = vmul.f32 %v771, %v546
    %v819 = vmul.f32 %v771, %v547
    %v820 = vadd.f32 %v722, %v772
    %v821 = vadd.f32 %v723, %v773
    %v822 = vadd.f32 %v724, %v774
    %v823 = vadd.f32 %v725, %v775
    %v824 = vadd.f32 %v726, %v776
    %v825 = vadd.f32 %v727, %v777
    %v826 = vadd.f32 %v728, %v778
    %v827 = vadd.f32 %v729, %v779
    %v828 = vadd.f32 %v730, %v780
    %v829 = vadd.f32 %v731, %v781
    %v830 = vadd.f32 %v732, %v782
    %v831 = vadd.f32 %v733, %v783
    %v832 = vadd.f32 %v734, %v784
    %v833 = vadd.f32 %v735, %v785
    %v834 = vadd.f32 %v736, %v786
    %v835 = vadd.f32 %v737, %v787
    %v836 = vadd.f32 %v738, %v788
    %v837 = vadd.f32 %v739, %v789
    %v838 = vadd.f32 %v740, %v790
    %v839 = vadd.f32 %v741, %v791
    %v840 = vadd.f32 %v742, %v792
    %v841 = vadd.f32 %v743, %v793
    %v842 = vadd.f32 %v744, %v794
    %v843 = vadd.f32 %v745, %v795
    %v844 = vadd.f32 %v746, %v796
    %v845 = vadd.f32 %v747, %v797
    %v846 = vadd.f32 %v748, %v798
    %v847 = vadd.f32 %v749, %v799
    %v848 = vadd.f32 %v750, %v800
    %v849 = vadd.f32 %v751, %v801
    %v850 = vadd.f32 %v752, %v802
    %v851 = vadd.f32 %v753, %v803
    %v852 = vadd.f32 %v754, %v804
    %v853 = vadd.f32 %v755, %v805
    %v854 = vadd.f32 %v756, %v806
    %v855 = vadd.f32 %v757, %v807
    %v856 = vadd.f32 %v758, %v808
    %v857 = vadd.f32 %v759, %v809
    %v858 = vadd.f32 %v760, %v810
    %v859 = vadd.f32 %v761, %v811
    %v860 = vadd.f32 %v762, %v812
    %v861 = vadd.f32 %v763, %v813
    %v862 = vadd.f32 %v764, %v814
    %v863 = vadd.f32 %v765, %v815
    %v864 = vadd.f32 %v766, %v816
    %v865 = vadd.f32 %v767, %v817
    %v866 = vadd.f32 %v768, %v818
    %v867 = vadd.f32 %v769, %v819
    %s868 = sld [smem:[#allocation2 + $0x2]]
    %v869 = vstv %s868
    %v870 = vmul.f32 %v869, %v668
    %v871 = vmul.f32 %v869, %v669
    %v872 = vmul.f32 %v869, %v670
    %v873 = vmul.f32 %v869, %v671
    %v874 = vmul.f32 %v869, %v672
    %v875 = vmul.f32 %v869, %v673
    %v876 = vmul.f32 %v869, %v674
    %v877 = vmul.f32 %v869, %v675
    %v878 = vmul.f32 %v869, %v676
    %v879 = vmul.f32 %v869, %v677
    %v880 = vmul.f32 %v869, %v678
    %v881 = vmul.f32 %v869, %v679
    %v882 = vmul.f32 %v869, %v680
    %v883 = vmul.f32 %v869, %v681
    %v884 = vmul.f32 %v869, %v682
    %v885 = vmul.f32 %v869, %v683
    %v886 = vmul.f32 %v869, %v684
    %v887 = vmul.f32 %v869, %v685
    %v888 = vmul.f32 %v869, %v686
    %v889 = vmul.f32 %v869, %v687
    %v890 = vmul.f32 %v869, %v688
    %v891 = vmul.f32 %v869, %v689
    %v892 = vmul.f32 %v869, %v690
    %v893 = vmul.f32 %v869, %v691
    %v894 = vmul.f32 %v869, %v692
    %v895 = vmul.f32 %v869, %v693
    %v896 = vmul.f32 %v869, %v694
    %v897 = vmul.f32 %v869, %v695
    %v898 = vmul.f32 %v869, %v696
    %v899 = vmul.f32 %v869, %v697
    %v900 = vmul.f32 %v869, %v698
    %v901 = vmul.f32 %v869, %v699
    %v902 = vmul.f32 %v869, %v700
    %v903 = vmul.f32 %v869, %v701
    %v904 = vmul.f32 %v869, %v702
    %v905 = vmul.f32 %v869, %v703
    %v906 = vmul.f32 %v869, %v704
    %v907 = vmul.f32 %v869, %v705
    %v908 = vmul.f32 %v869, %v706
    %v909 = vmul.f32 %v869, %v707
    %v910 = vmul.f32 %v869, %v708
    %v911 = vmul.f32 %v869, %v709
    %v912 = vmul.f32 %v869, %v710
    %v913 = vmul.f32 %v869, %v711
    %v914 = vmul.f32 %v869, %v712
    %v915 = vmul.f32 %v869, %v713
    %v916 = vmul.f32 %v869, %v714
    %v917 = vmul.f32 %v869, %v715
    %v918 = vadd.f32 %v820, %v870
    %v919 = vadd.f32 %v821, %v871
    %v920 = vadd.f32 %v822, %v872
    %v921 = vadd.f32 %v823, %v873
    %v922 = vadd.f32 %v824, %v874
    %v923 = vadd.f32 %v825, %v875
    %v924 = vadd.f32 %v826, %v876
    %v925 = vadd.f32 %v827, %v877
    %v926 = vadd.f32 %v828, %v878
    %v927 = vadd.f32 %v829, %v879
    %v928 = vadd.f32 %v830, %v880
    %v929 = vadd.f32 %v831, %v881
    %v930 = vadd.f32 %v832, %v882
    %v931 = vadd.f32 %v833, %v883
    %v932 = vadd.f32 %v834, %v884
    %v933 = vadd.f32 %v835, %v885
    %v934 = vadd.f32 %v836, %v886
    %v935 = vadd.f32 %v837, %v887
    %v936 = vadd.f32 %v838, %v888
    %v937 = vadd.f32 %v839, %v889
    %v938 = vadd.f32 %v840, %v890
    %v939 = vadd.f32 %v841, %v891
    %v940 = vadd.f32 %v842, %v892
    %v941 = vadd.f32 %v843, %v893
    %v942 = vadd.f32 %v844, %v894
    %v943 = vadd.f32 %v845, %v895
    %v944 = vadd.f32 %v846, %v896
    %v945 = vadd.f32 %v847, %v897
    %v946 = vadd.f32 %v848, %v898
    %v947 = vadd.f32 %v849, %v899
    %v948 = vadd.f32 %v850, %v900
    %v949 = vadd.f32 %v851, %v901
    %v950 = vadd.f32 %v852, %v902
    %v951 = vadd.f32 %v853, %v903
    %v952 = vadd.f32 %v854, %v904
    %v953 = vadd.f32 %v855, %v905
    %v954 = vadd.f32 %v856, %v906
    %v955 = vadd.f32 %v857, %v907
    %v956 = vadd.f32 %v858, %v908
    %v957 = vadd.f32 %v859, %v909
    %v958 = vadd.f32 %v860, %v910
    %v959 = vadd.f32 %v861, %v911
    %v960 = vadd.f32 %v862, %v912
    %v961 = vadd.f32 %v863, %v913
    %v962 = vadd.f32 %v864, %v914
    %v963 = vadd.f32 %v865, %v915
    %v964 = vadd.f32 %v866, %v916
    %v965 = vadd.f32 %v867, %v917
    %vm970 = vcmask 1041409
    %v971 = vsel %vm970, %v718, %v716
    %v972 = vsel %vm970, %v719, %v717
    %v974 = vsel %vm74, %v972, 0
    %976 = vmatprep.subr.mxu0 %v949
    %977 = vmatpush1.msra.mxu0 %v948
    %978 = vmatprep.subr.mxu0 %v947
    %979 = vmatpush1.msra.mxu0 %v946
    %980 = vmatprep.subr.mxu0 %v945
    %981 = vmatpush1.msra.mxu0 %v944
    %982 = vmatprep.subr.mxu0 %v943
    %983 = vmatpush1.msra.mxu0 %v942
    %984 = vmatprep.subr.mxu0 %v941
    %985 = vmatpush1.msra.mxu0 %v940
    %986 = vmatprep.subr.mxu0 %v939
    %987 = vmatpush1.msra.mxu0 %v938
    %988 = vmatprep.subr.mxu0 %v937
    %989 = vmatpush1.msra.mxu0 %v936
    %990 = vmatprep.subr.mxu0 %v935
    %991 = vmatpush1.msra.mxu0 %v934
    %992 = vmatprep.subr.mxu0 %v933
    %993 = vmatpush1.msra.mxu0 %v932
    %994 = vmatprep.subr.mxu0 %v931
    %995 = vmatpush1.msra.mxu0 %v930
    %996 = vmatprep.subr.mxu0 %v929
    %997 = vmatpush1.msra.mxu0 %v928
    %998 = vmatprep.subr.mxu0 %v927
    %999 = vmatpush1.msra.mxu0 %v926
    %1000 = vmatprep.subr.mxu0 %v925
    %1001 = vmatpush1.msra.mxu0 %v924
    %1002 = vmatprep.subr.mxu0 %v923
    %1003 = vmatpush1.msra.mxu0 %v922
    %1004 = vmatprep.subr.mxu0 %v921
    %1005 = vmatpush1.msra.mxu0 %v920
    %1006 = vmatprep.subr.mxu0 %v919
    %1007 = vmatpush1.msra.mxu0 %v918
    %1008 = vmatprep.subr.mxu0 0.0
    %1009 = vmatpush2.msra.mxu0 0.0
    %1010 = vmatprep.subr.mxu0 0.0
    %1011 = vmatpush2.msra.mxu0 0.0
    %1012 = vmatprep.subr.mxu0 0.0
    %1013 = vmatpush2.msra.mxu0 0.0
    %1014 = vmatprep.subr.mxu0 0.0
    %1015 = vmatpush2.msra.mxu0 0.0
    %1016 = vmatprep.subr.mxu0 0.0
    %1017 = vmatpush2.msra.mxu0 0.0
    %1018 = vmatprep.subr.mxu0 0.0
    %1019 = vmatpush2.msra.mxu0 0.0
    %1020 = vmatprep.subr.mxu0 0.0
    %1021 = vmatpush2.msra.mxu0 0.0
    %1022 = vmatprep.subr.mxu0 0.0
    %1023 = vmatpush2.msra.mxu0 0.0
    %1024 = vmatprep.subr.mxu0 %v965
    %1025 = vmatpush2.msra.mxu0 %v964
    %1026 = vmatprep.subr.mxu0 %v963
    %1027 = vmatpush2.msra.mxu0 %v962
    %1028 = vmatprep.subr.mxu0 %v961
    %1029 = vmatpush2.msra.mxu0 %v960
    %1030 = vmatprep.subr.mxu0 %v959
    %1031 = vmatpush2.msra.mxu0 %v958
    %1032 = vmatprep.subr.mxu0 %v957
    %1033 = vmatpush2.msra.mxu0 %v956
    %1034 = vmatprep.subr.mxu0 %v955
    %1035 = vmatpush2.msra.mxu0 %v954
    %1036 = vmatprep.subr.mxu0 %v953
    %1037 = vmatpush2.msra.mxu0 %v952
    %1038 = vmatprep.subr.mxu0 %v951
    %1039 = vmatpush2.msra.mxu0 %v950
    %1040 = vmatprep.mubr.f32.mxu0 %v974
    %1041 = vmatmul.mubr.f32.gmra.mxu0 %v971
    %v1042 = vpop.f32.mrf.mxu0
    %v1043 = vadd.f32 0.0, %v1042
    %v1044 = vpop.f32.mrf.mxu0
    %v1045 = vadd.f32 0.0, %v1044
    %1046 = vdwg.mxu0
    %v1047 = vxor.u32 %v1043, 2147483648
    %v1048 = vxor.u32 %v1045, 2147483648
    %v1049 = vmul.f32 %v1047, 1.442695
    %v1050 = vpow.pop %v1049
    %v1051 = vmul.f32 %v1048, 1.442695
    %v1052 = vpow.pop %v1051
    %v1053 = vadd.f32 %v1050, 1.0
    %v1054 = vadd.f32 %v1052, 1.0
    %v1055 = vrcp.pop %v1053
    %v1056 = vmul.f32 1.0, %v1055
    %v1057 = vrcp.pop %v1054
    %v1058 = vmul.f32 1.0, %v1057
    %v1061 = vrot.slane %v1056, 1
    %v1062 = vrot.slane %v1058, 1
    %v1067 = vmul.f32 %v716, %v1056
    %v1068 = vmul.f32 %v717, %v1058
    %v1069 = vmul.f32 %v718, %v1061
    %v1070 = vmul.f32 %v719, %v1062
    %v1071 = vpack.c.bf16 %v1067, %v1067
    %v1072 = vpack.c.bf16 %v1068, %v1068
    %v1073 = vpack.c.bf16 %v1069, %v1069
    %v1074 = vpack.c.bf16 %v1070, %v1070
    %v1075 = vld [vmem:[%s2] sm:$0xff]
    %v1076 = vld [vmem:[%s2 + $0x8] sm:$0xff]
    %v1077 = vld [vmem:[%s2 + $0x10] sm:$0xff]
    %v1078 = vld [vmem:[%s2 + $0x18] sm:$0xff]
    %v1079 = vld [vmem:[%s2 + $0x20] sm:$0xff]
    %v1080 = vld [vmem:[%s2 + $0x28] sm:$0xff]
    %v1081 = vld [vmem:[%s2 + $0x30] sm:$0xff]
    %v1082 = vld [vmem:[%s2 + $0x38] sm:$0xff]
    %v1083 = vld [vmem:[%s2 + $0x40] sm:$0xff]
    %v1084 = vld [vmem:[%s2 + $0x48] sm:$0xff]
    %v1085 = vld [vmem:[%s2 + $0x50] sm:$0xff]
    %v1086 = vld [vmem:[%s2 + $0x58] sm:$0xff]
    %v1087 = vld [vmem:[%s2 + $0x60] sm:$0xff]
    %v1088 = vld [vmem:[%s2 + $0x68] sm:$0xff]
    %v1089 = vld [vmem:[%s2 + $0x70] sm:$0xff]
    %v1090 = vld [vmem:[%s2 + $0x78] sm:$0xff]
    %v1091 = vld [vmem:[%s2 + $0x80] sm:$0xff]
    %v1092 = vld [vmem:[%s2 + $0x88] sm:$0xff]
    %v1093 = vld [vmem:[%s2 + $0x90] sm:$0xff]
    %v1094 = vld [vmem:[%s2 + $0x98] sm:$0xff]
    %v1095 = vld [vmem:[%s2 + $0xa0] sm:$0xff]
    %v1096 = vld [vmem:[%s2 + $0xa8] sm:$0xff]
    %v1097 = vld [vmem:[%s2 + $0xb0] sm:$0xff]
    %v1098 = vld [vmem:[%s2 + $0xb8] sm:$0xff]
    %v1099 = vld [vmem:[%s3] sm:$0x3]
    %v1101 = vlaneseq
    %v1102 = vshrl.u32 %v1101, 7
    %v1103 = vsub.s32 0, %v1102
    %v1104 = vrot.slane %v1099, %v1103
    %v1105 = vlaneseq
    %v1106 = vshrl.u32 %v1105, 7
    %v1107 = vsub.s32 1, %v1106
    %v1108 = vrot.slane %v1099, %v1107
    %v1115 = vunpack.c.l.b16 %v1071
    %v1116 = vunpack.c.l.b16 %v1072
    %v1117 = vunpack.c.l.b16 %v1073
    %v1118 = vunpack.c.l.b16 %v1074
    %v1119 = vrot.slane %v1117, 7
    %v1120 = vsel %vm970, %v1119, %v1115
    %v1121 = vrot.slane %v1118, 7
    %v1122 = vsel %vm970, %v1121, %v1116
    %v1123 = vpack.c.b16 %v1120, %v1120
    %v1124 = vpack.c.b16 %v1122, %v1122
    %v1150 = vunpack.c.l.b16 %v1075
    %v1151 = vunpack.c.h.b16 %v1075
    %v1152 = vunpack.c.l.b16 %v1076
    %v1153 = vunpack.c.h.b16 %v1076
    %v1154 = vunpack.c.l.b16 %v1077
    %v1155 = vunpack.c.h.b16 %v1077
    %v1156 = vunpack.c.l.b16 %v1078
    %v1157 = vunpack.c.h.b16 %v1078
    %v1158 = vunpack.c.l.b16 %v1079
    %v1159 = vunpack.c.h.b16 %v1079
    %v1160 = vunpack.c.l.b16 %v1080
    %v1161 = vunpack.c.h.b16 %v1080
    %v1162 = vunpack.c.l.b16 %v1081
    %v1163 = vunpack.c.h.b16 %v1081
    %v1164 = vunpack.c.l.b16 %v1082
    %v1165 = vunpack.c.h.b16 %v1082
    %v1166 = vunpack.c.l.b16 %v1083
    %v1167 = vunpack.c.h.b16 %v1083
    %v1168 = vunpack.c.l.b16 %v1084
    %v1169 = vunpack.c.h.b16 %v1084
    %v1170 = vunpack.c.l.b16 %v1085
    %v1171 = vunpack.c.h.b16 %v1085
    %v1172 = vunpack.c.l.b16 %v1086
    %v1173 = vunpack.c.h.b16 %v1086
    %v1174 = vunpack.c.l.b16 %v1087
    %v1175 = vunpack.c.h.b16 %v1087
    %v1176 = vunpack.c.l.b16 %v1088
    %v1177 = vunpack.c.h.b16 %v1088
    %v1178 = vunpack.c.l.b16 %v1089
    %v1179 = vunpack.c.h.b16 %v1089
    %v1180 = vunpack.c.l.b16 %v1090
    %v1181 = vunpack.c.h.b16 %v1090
    %v1182 = vunpack.c.l.b16 %v1091
    %v1183 = vunpack.c.h.b16 %v1091
    %v1184 = vunpack.c.l.b16 %v1092
    %v1185 = vunpack.c.h.b16 %v1092
    %v1186 = vunpack.c.l.b16 %v1093
    %v1187 = vunpack.c.h.b16 %v1093
    %v1188 = vunpack.c.l.b16 %v1094
    %v1189 = vunpack.c.h.b16 %v1094
    %v1190 = vunpack.c.l.b16 %v1095
    %v1191 = vunpack.c.h.b16 %v1095
    %v1192 = vunpack.c.l.b16 %v1096
    %v1193 = vunpack.c.h.b16 %v1096
    %v1194 = vunpack.c.l.b16 %v1097
    %v1195 = vunpack.c.h.b16 %v1097
    %v1196 = vunpack.c.l.b16 %v1098
    %v1197 = vunpack.c.h.b16 %v1098
    %v1198 = vpack.c.b16 %v1152, %v1150
    %v1199 = vpack.c.b16 %v1153, %v1151
    %v1200 = vpack.c.b16 %v1156, %v1154
    %v1201 = vpack.c.b16 %v1157, %v1155
    %v1202 = vpack.c.b16 %v1160, %v1158
    %v1203 = vpack.c.b16 %v1161, %v1159
    %v1204 = vpack.c.b16 %v1164, %v1162
    %v1205 = vpack.c.b16 %v1165, %v1163
    %v1206 = vpack.c.b16 %v1168, %v1166
    %v1207 = vpack.c.b16 %v1169, %v1167
    %v1208 = vpack.c.b16 %v1172, %v1170
    %v1209 = vpack.c.b16 %v1173, %v1171
    %v1210 = vpack.c.b16 %v1176, %v1174
    %v1211 = vpack.c.b16 %v1177, %v1175
    %v1212 = vpack.c.b16 %v1180, %v1178
    %v1213 = vpack.c.b16 %v1181, %v1179
    %v1214 = vpack.c.b16 %v1184, %v1182
    %v1215 = vpack.c.b16 %v1185, %v1183
    %v1216 = vpack.c.b16 %v1188, %v1186
    %v1217 = vpack.c.b16 %v1189, %v1187
    %v1218 = vpack.c.b16 %v1192, %v1190
    %v1219 = vpack.c.b16 %v1193, %v1191
    %v1220 = vpack.c.b16 %v1196, %v1194
    %v1221 = vpack.c.b16 %v1197, %v1195
    %v1247 = vsel %vm74, %v1124, 0
    %1249 = vmatprep.subr.bf16.mxu0 %v1213
    %1250 = vmatpush1.bf16.msra.mxu0 %v1212
    %1251 = vmatprep.subr.bf16.mxu0 %v1211
    %1252 = vmatpush1.bf16.msra.mxu0 %v1210
    %1253 = vmatprep.subr.bf16.mxu0 %v1209
    %1254 = vmatpush1.bf16.msra.mxu0 %v1208
    %1255 = vmatprep.subr.bf16.mxu0 %v1207
    %1256 = vmatpush1.bf16.msra.mxu0 %v1206
    %1257 = vmatprep.subr.bf16.mxu0 %v1205
    %1258 = vmatpush1.bf16.msra.mxu0 %v1204
    %1259 = vmatprep.subr.bf16.mxu0 %v1203
    %1260 = vmatpush1.bf16.msra.mxu0 %v1202
    %1261 = vmatprep.subr.bf16.mxu0 %v1201
    %1262 = vmatpush1.bf16.msra.mxu0 %v1200
    %1263 = vmatprep.subr.bf16.mxu0 %v1199
    %1264 = vmatpush1.bf16.msra.mxu0 %v1198
    %1265 = vmatprep.subr.bf16.mxu0 0
    %1266 = vmatpush2.bf16.msra.mxu0 0
    %1267 = vmatprep.subr.bf16.mxu0 0
    %1268 = vmatpush2.bf16.msra.mxu0 0
    %1269 = vmatprep.subr.bf16.mxu0 0
    %1270 = vmatpush2.bf16.msra.mxu0 0
    %1271 = vmatprep.subr.bf16.mxu0 0
    %1272 = vmatpush2.bf16.msra.mxu0 0
    %1273 = vmatprep.subr.bf16.mxu0 %v1221
    %1274 = vmatpush2.bf16.msra.mxu0 %v1220
    %1275 = vmatprep.subr.bf16.mxu0 %v1219
    %1276 = vmatpush2.bf16.msra.mxu0 %v1218
    %1277 = vmatprep.subr.bf16.mxu0 %v1217
    %1278 = vmatpush2.bf16.msra.mxu0 %v1216
    %1279 = vmatprep.subr.bf16.mxu0 %v1215
    %1280 = vmatpush2.bf16.msra.mxu0 %v1214
    %1281 = vmatprep.mubr.bf16.mxu0 %v1247
    %1282 = vmatmul.mubr.bf16.gmra.mxu0 %v1123
    %v1283 = vpop.f32.mrf.mxu0
    %v1284 = vadd.f32 %v1104, %v1283
    %v1285 = vpop.f32.mrf.mxu0
    %v1286 = vadd.f32 %v1108, %v1285
    %v1287 = vpop.f32.mrf.mxu0
    %v1288 = vpop.f32.mrf.mxu0
    %1289 = vdwg.mxu0
    %v1290 = vmax.f32 %v1284, 0.0
    %v1291 = vmax.f32 %v1286, 0.0
    %v1292 = vmul.f32 %v1290, %v1290
    %v1293 = vmul.f32 %v1291, %v1291
    %vm1294 = vcmask 1041408
    %v1295 = vsel %vm1294, %v1292, 0.0
    %v1296 = vsel %vm1294, %v1293, 0.0
    %v1297 = vadd.f32 %v1295, %v1296
    %1298 = vadd.xlane.f32.xlu0 %v1297
    %v1299 = vpop.xlane.xlu0 %1298
    %v1300 = vmax.f32 %v1299, 1e-24
    %v1301 = vrsqrt.pop %v1300
    %v1302 = vmul.f32 %v1290, %v1301
    %v1303 = vmul.f32 %v1291, %v1301
    %v1304 = vld [vmem:[%s4] sm:$0xff]
    %v1305 = vld [vmem:[%s4 + $0x8] sm:$0xff]
    %v1306 = vld [vmem:[%s4 + $0x10] sm:$0xff]
    %v1307 = vld [vmem:[%s4 + $0x18] sm:$0xff]
    %v1308 = vld [vmem:[%s4 + $0x20] sm:$0xff]
    %v1309 = vld [vmem:[%s4 + $0x28] sm:$0xff]
    %v1310 = vld [vmem:[%s4 + $0x30] sm:$0xff]
    %v1311 = vld [vmem:[%s4 + $0x38] sm:$0xff]
    %v1312 = vld [vmem:[%s4 + $0x40] sm:$0xff]
    %v1313 = vld [vmem:[%s4 + $0x48] sm:$0xff]
    %v1314 = vld [vmem:[%s4 + $0x50] sm:$0xff]
    %v1315 = vld [vmem:[%s4 + $0x58] sm:$0xff]
    %v1316 = vld [vmem:[%s4 + $0x60] sm:$0xff]
    %v1317 = vld [vmem:[%s4 + $0x68] sm:$0xff]
    %v1318 = vld [vmem:[%s4 + $0x70] sm:$0xff]
    %v1319 = vld [vmem:[%s4 + $0x78] sm:$0xff]
    %v1320 = vld [vmem:[%s4 + $0x80] sm:$0xff]
    %v1321 = vld [vmem:[%s4 + $0x88] sm:$0xff]
    %v1322 = vld [vmem:[%s4 + $0x90] sm:$0xff]
    %v1323 = vld [vmem:[%s4 + $0x98] sm:$0xff]
    %v1324 = vld [vmem:[%s4 + $0xa0] sm:$0xff]
    %v1325 = vld [vmem:[%s4 + $0xa8] sm:$0xff]
    %v1326 = vld [vmem:[%s4 + $0xb0] sm:$0xff]
    %v1327 = vld [vmem:[%s4 + $0xb8] sm:$0xff]
    %v1328 = vld [vmem:[%s4 + $0xc0] sm:$0xff]
    %v1329 = vld [vmem:[%s4 + $0xc8] sm:$0xff]
    %v1330 = vld [vmem:[%s4 + $0xd0] sm:$0xff]
    %v1331 = vld [vmem:[%s4 + $0xd8] sm:$0xff]
    %v1332 = vld [vmem:[%s4 + $0xe0] sm:$0xff]
    %v1333 = vld [vmem:[%s4 + $0xe8] sm:$0xff]
    %v1334 = vld [vmem:[%s4 + $0xf0] sm:$0xff]
    %v1335 = vld [vmem:[%s4 + $0xf8] sm:$0xff]
    %1336 = vmatprep.subr.mxu0 0.0
    %1337 = vmatpush1.msra.mxu0 %v1319
    %1338 = vmatprep.subr.mxu0 0.0
    %1339 = vmatpush1.msra.mxu0 %v1318
    %1340 = vmatprep.subr.mxu0 0.0
    %1341 = vmatpush1.msra.mxu0 %v1317
    %1342 = vmatprep.subr.mxu0 0.0
    %1343 = vmatpush1.msra.mxu0 %v1316
    %1344 = vmatprep.subr.mxu0 0.0
    %1345 = vmatpush1.msra.mxu0 %v1315
    %1346 = vmatprep.subr.mxu0 0.0
    %1347 = vmatpush1.msra.mxu0 %v1314
    %1348 = vmatprep.subr.mxu0 0.0
    %1349 = vmatpush1.msra.mxu0 %v1313
    %1350 = vmatprep.subr.mxu0 0.0
    %1351 = vmatpush1.msra.mxu0 %v1312
    %1352 = vmatprep.subr.mxu0 0.0
    %1353 = vmatpush1.msra.mxu0 %v1311
    %1354 = vmatprep.subr.mxu0 0.0
    %1355 = vmatpush1.msra.mxu0 %v1310
    %1356 = vmatprep.subr.mxu0 0.0
    %1357 = vmatpush1.msra.mxu0 %v1309
    %1358 = vmatprep.subr.mxu0 0.0
    %1359 = vmatpush1.msra.mxu0 %v1308
    %1360 = vmatprep.subr.mxu0 0.0
    %1361 = vmatpush1.msra.mxu0 %v1307
    %1362 = vmatprep.subr.mxu0 0.0
    %1363 = vmatpush1.msra.mxu0 %v1306
    %1364 = vmatprep.subr.mxu0 0.0
    %1365 = vmatpush1.msra.mxu0 %v1305
    %1366 = vmatprep.subr.mxu0 0.0
    %1367 = vmatpush1.msra.mxu0 %v1304
    %1368 = vmatprep.subr.mxu0 0.0
    %1369 = vmatpush2.msra.mxu0 %v1335
    %1370 = vmatprep.subr.mxu0 0.0
    %1371 = vmatpush2.msra.mxu0 %v1334
    %1372 = vmatprep.subr.mxu0 0.0
    %1373 = vmatpush2.msra.mxu0 %v1333
    %1374 = vmatprep.subr.mxu0 0.0
    %1375 = vmatpush2.msra.mxu0 %v1332
    %1376 = vmatprep.subr.mxu0 0.0
    %1377 = vmatpush2.msra.mxu0 %v1331
    %1378 = vmatprep.subr.mxu0 0.0
    %1379 = vmatpush2.msra.mxu0 %v1330
    %1380 = vmatprep.subr.mxu0 0.0
    %1381 = vmatpush2.msra.mxu0 %v1329
    %1382 = vmatprep.subr.mxu0 0.0
    %1383 = vmatpush2.msra.mxu0 %v1328
    %1384 = vmatprep.subr.mxu0 0.0
    %1385 = vmatpush2.msra.mxu0 %v1327
    %1386 = vmatprep.subr.mxu0 0.0
    %1387 = vmatpush2.msra.mxu0 %v1326
    %1388 = vmatprep.subr.mxu0 0.0
    %1389 = vmatpush2.msra.mxu0 %v1325
    %1390 = vmatprep.subr.mxu0 0.0
    %1391 = vmatpush2.msra.mxu0 %v1324
    %1392 = vmatprep.subr.mxu0 0.0
    %1393 = vmatpush2.msra.mxu0 %v1323
    %1394 = vmatprep.subr.mxu0 0.0
    %1395 = vmatpush2.msra.mxu0 %v1322
    %1396 = vmatprep.subr.mxu0 0.0
    %1397 = vmatpush2.msra.mxu0 %v1321
    %1398 = vmatprep.subr.mxu0 0.0
    %1399 = vmatpush2.msra.mxu0 %v1320
    %1400 = vmatprep.mubr.f32.mxu0 %v1303
    %1401 = vmatmul.mubr.f32.gmra.mxu0 %v1302
    %v1402 = vpop.f32.mrf.mxu0
    %v1403 = vadd.f32 0.0, %v1402
    %v1404 = vpop.f32.mrf.mxu0
    %1405 = vdwg.mxu0
    %v1406 = vmul.f32 %v1403, 30.0
    %vm1407 = vcmask 50176
    %1408 = vst.msk [vmem:[#allocation5] sm:$0x3] %vm1407, %v1406
    %v1409 = vmul.f32 %v106, 0.0625
    %v1410 = vmul.f32 %v115, 0.0625
    %v1411 = vmul.f32 %v122, 0.0625
    %v1412 = vmul.f32 %v131, 0.0625
    %s1413 = sld [smem:[#allocation2 + $0x80]]
    %v1414 = vstv %s1413
    %v1415 = vmul.f32 %v1414, %v356
    %v1416 = vmul.f32 %v1414, %v357
    %v1417 = vmul.f32 %v1414, %v358
    %v1418 = vmul.f32 %v1414, %v359
    %v1419 = vmul.f32 %v1414, %v360
    %v1420 = vmul.f32 %v1414, %v361
    %v1421 = vmul.f32 %v1414, %v362
    %v1422 = vmul.f32 %v1414, %v363
    %v1423 = vmul.f32 %v1414, %v364
    %v1424 = vmul.f32 %v1414, %v365
    %v1425 = vmul.f32 %v1414, %v366
    %v1426 = vmul.f32 %v1414, %v367
    %v1427 = vmul.f32 %v1414, %v368
    %v1428 = vmul.f32 %v1414, %v369
    %v1429 = vmul.f32 %v1414, %v370
    %v1430 = vmul.f32 %v1414, %v371
    %v1431 = vmul.f32 %v1414, %v372
    %v1432 = vmul.f32 %v1414, %v373
    %v1433 = vmul.f32 %v1414, %v374
    %v1434 = vmul.f32 %v1414, %v375
    %v1435 = vmul.f32 %v1414, %v376
    %v1436 = vmul.f32 %v1414, %v377
    %v1437 = vmul.f32 %v1414, %v378
    %v1438 = vmul.f32 %v1414, %v379
    %v1439 = vmul.f32 %v1414, %v380
    %v1440 = vmul.f32 %v1414, %v381
    %v1441 = vmul.f32 %v1414, %v382
    %v1442 = vmul.f32 %v1414, %v383
    %v1443 = vmul.f32 %v1414, %v384
    %v1444 = vmul.f32 %v1414, %v385
    %v1445 = vmul.f32 %v1414, %v386
    %v1446 = vmul.f32 %v1414, %v387
    %v1447 = vmul.f32 %v1414, %v388
    %v1448 = vmul.f32 %v1414, %v389
    %v1449 = vmul.f32 %v1414, %v390
    %v1450 = vmul.f32 %v1414, %v391
    %v1451 = vmul.f32 %v1414, %v392
    %v1452 = vmul.f32 %v1414, %v393
    %v1453 = vmul.f32 %v1414, %v394
    %v1454 = vmul.f32 %v1414, %v395
    %v1455 = vmul.f32 %v1414, %v396
    %v1456 = vmul.f32 %v1414, %v397
    %v1457 = vmul.f32 %v1414, %v398
    %v1458 = vmul.f32 %v1414, %v399
    %v1459 = vmul.f32 %v1414, %v400
    %v1460 = vmul.f32 %v1414, %v401
    %v1461 = vmul.f32 %v1414, %v402
    %v1462 = vmul.f32 %v1414, %v403
    %s1463 = sld [smem:[#allocation2 + $0x81]]
    %v1464 = vstv %s1463
    %v1465 = vmul.f32 %v1464, %v500
    %v1466 = vmul.f32 %v1464, %v501
    %v1467 = vmul.f32 %v1464, %v502
    %v1468 = vmul.f32 %v1464, %v503
    %v1469 = vmul.f32 %v1464, %v504
    %v1470 = vmul.f32 %v1464, %v505
    %v1471 = vmul.f32 %v1464, %v506
    %v1472 = vmul.f32 %v1464, %v507
    %v1473 = vmul.f32 %v1464, %v508
    %v1474 = vmul.f32 %v1464, %v509
    %v1475 = vmul.f32 %v1464, %v510
    %v1476 = vmul.f32 %v1464, %v511
    %v1477 = vmul.f32 %v1464, %v512
    %v1478 = vmul.f32 %v1464, %v513
    %v1479 = vmul.f32 %v1464, %v514
    %v1480 = vmul.f32 %v1464, %v515
    %v1481 = vmul.f32 %v1464, %v516
    %v1482 = vmul.f32 %v1464, %v517
    %v1483 = vmul.f32 %v1464, %v518
    %v1484 = vmul.f32 %v1464, %v519
    %v1485 = vmul.f32 %v1464, %v520
    %v1486 = vmul.f32 %v1464, %v521
    %v1487 = vmul.f32 %v1464, %v522
    %v1488 = vmul.f32 %v1464, %v523
    %v1489 = vmul.f32 %v1464, %v524
    %v1490 = vmul.f32 %v1464, %v525
    %v1491 = vmul.f32 %v1464, %v526
    %v1492 = vmul.f32 %v1464, %v527
    %v1493 = vmul.f32 %v1464, %v528
    %v1494 = vmul.f32 %v1464, %v529
    %v1495 = vmul.f32 %v1464, %v530
    %v1496 = vmul.f32 %v1464, %v531
    %v1497 = vmul.f32 %v1464, %v532
    %v1498 = vmul.f32 %v1464, %v533
    %v1499 = vmul.f32 %v1464, %v534
    %v1500 = vmul.f32 %v1464, %v535
    %v1501 = vmul.f32 %v1464, %v536
    %v1502 = vmul.f32 %v1464, %v537
    %v1503 = vmul.f32 %v1464, %v538
    %v1504 = vmul.f32 %v1464, %v539
    %v1505 = vmul.f32 %v1464, %v540
    %v1506 = vmul.f32 %v1464, %v541
    %v1507 = vmul.f32 %v1464, %v542
    %v1508 = vmul.f32 %v1464, %v543
    %v1509 = vmul.f32 %v1464, %v544
    %v1510 = vmul.f32 %v1464, %v545
    %v1511 = vmul.f32 %v1464, %v546
    %v1512 = vmul.f32 %v1464, %v547
    %v1513 = vadd.f32 %v1415, %v1465
    %v1514 = vadd.f32 %v1416, %v1466
    %v1515 = vadd.f32 %v1417, %v1467
    %v1516 = vadd.f32 %v1418, %v1468
    %v1517 = vadd.f32 %v1419, %v1469
    %v1518 = vadd.f32 %v1420, %v1470
    %v1519 = vadd.f32 %v1421, %v1471
    %v1520 = vadd.f32 %v1422, %v1472
    %v1521 = vadd.f32 %v1423, %v1473
    %v1522 = vadd.f32 %v1424, %v1474
    %v1523 = vadd.f32 %v1425, %v1475
    %v1524 = vadd.f32 %v1426, %v1476
    %v1525 = vadd.f32 %v1427, %v1477
    %v1526 = vadd.f32 %v1428, %v1478
    %v1527 = vadd.f32 %v1429, %v1479
    %v1528 = vadd.f32 %v1430, %v1480
    %v1529 = vadd.f32 %v1431, %v1481
    %v1530 = vadd.f32 %v1432, %v1482
    %v1531 = vadd.f32 %v1433, %v1483
    %v1532 = vadd.f32 %v1434, %v1484
    %v1533 = vadd.f32 %v1435, %v1485
    %v1534 = vadd.f32 %v1436, %v1486
    %v1535 = vadd.f32 %v1437, %v1487
    %v1536 = vadd.f32 %v1438, %v1488
    %v1537 = vadd.f32 %v1439, %v1489
    %v1538 = vadd.f32 %v1440, %v1490
    %v1539 = vadd.f32 %v1441, %v1491
    %v1540 = vadd.f32 %v1442, %v1492
    %v1541 = vadd.f32 %v1443, %v1493
    %v1542 = vadd.f32 %v1444, %v1494
    %v1543 = vadd.f32 %v1445, %v1495
    %v1544 = vadd.f32 %v1446, %v1496
    %v1545 = vadd.f32 %v1447, %v1497
    %v1546 = vadd.f32 %v1448, %v1498
    %v1547 = vadd.f32 %v1449, %v1499
    %v1548 = vadd.f32 %v1450, %v1500
    %v1549 = vadd.f32 %v1451, %v1501
    %v1550 = vadd.f32 %v1452, %v1502
    %v1551 = vadd.f32 %v1453, %v1503
    %v1552 = vadd.f32 %v1454, %v1504
    %v1553 = vadd.f32 %v1455, %v1505
    %v1554 = vadd.f32 %v1456, %v1506
    %v1555 = vadd.f32 %v1457, %v1507
    %v1556 = vadd.f32 %v1458, %v1508
    %v1557 = vadd.f32 %v1459, %v1509
    %v1558 = vadd.f32 %v1460, %v1510
    %v1559 = vadd.f32 %v1461, %v1511
    %v1560 = vadd.f32 %v1462, %v1512
    %s1561 = sld [smem:[#allocation2 + $0x82]]
    %v1562 = vstv %s1561
    %v1563 = vmul.f32 %v1562, %v668
    %v1564 = vmul.f32 %v1562, %v669
    %v1565 = vmul.f32 %v1562, %v670
    %v1566 = vmul.f32 %v1562, %v671
    %v1567 = vmul.f32 %v1562, %v672
    %v1568 = vmul.f32 %v1562, %v673
    %v1569 = vmul.f32 %v1562, %v674
    %v1570 = vmul.f32 %v1562, %v675
    %v1571 = vmul.f32 %v1562, %v676
    %v1572 = vmul.f32 %v1562, %v677
    %v1573 = vmul.f32 %v1562, %v678
    %v1574 = vmul.f32 %v1562, %v679
    %v1575 = vmul.f32 %v1562, %v680
    %v1576 = vmul.f32 %v1562, %v681
    %v1577 = vmul.f32 %v1562, %v682
    %v1578 = vmul.f32 %v1562, %v683
    %v1579 = vmul.f32 %v1562, %v684
    %v1580 = vmul.f32 %v1562, %v685
    %v1581 = vmul.f32 %v1562, %v686
    %v1582 = vmul.f32 %v1562, %v687
    %v1583 = vmul.f32 %v1562, %v688
    %v1584 = vmul.f32 %v1562, %v689
    %v1585 = vmul.f32 %v1562, %v690
    %v1586 = vmul.f32 %v1562, %v691
    %v1587 = vmul.f32 %v1562, %v692
    %v1588 = vmul.f32 %v1562, %v693
    %v1589 = vmul.f32 %v1562, %v694
    %v1590 = vmul.f32 %v1562, %v695
    %v1591 = vmul.f32 %v1562, %v696
    %v1592 = vmul.f32 %v1562, %v697
    %v1593 = vmul.f32 %v1562, %v698
    %v1594 = vmul.f32 %v1562, %v699
    %v1595 = vmul.f32 %v1562, %v700
    %v1596 = vmul.f32 %v1562, %v701
    %v1597 = vmul.f32 %v1562, %v702
    %v1598 = vmul.f32 %v1562, %v703
    %v1599 = vmul.f32 %v1562, %v704
    %v1600 = vmul.f32 %v1562, %v705
    %v1601 = vmul.f32 %v1562, %v706
    %v1602 = vmul.f32 %v1562, %v707
    %v1603 = vmul.f32 %v1562, %v708
    %v1604 = vmul.f32 %v1562, %v709
    %v1605 = vmul.f32 %v1562, %v710
    %v1606 = vmul.f32 %v1562, %v711
    %v1607 = vmul.f32 %v1562, %v712
    %v1608 = vmul.f32 %v1562, %v713
    %v1609 = vmul.f32 %v1562, %v714
    %v1610 = vmul.f32 %v1562, %v715
    %v1611 = vadd.f32 %v1513, %v1563
    %v1612 = vadd.f32 %v1514, %v1564
    %v1613 = vadd.f32 %v1515, %v1565
    %v1614 = vadd.f32 %v1516, %v1566
    %v1615 = vadd.f32 %v1517, %v1567
    %v1616 = vadd.f32 %v1518, %v1568
    %v1617 = vadd.f32 %v1519, %v1569
    %v1618 = vadd.f32 %v1520, %v1570
    %v1619 = vadd.f32 %v1521, %v1571
    %v1620 = vadd.f32 %v1522, %v1572
    %v1621 = vadd.f32 %v1523, %v1573
    %v1622 = vadd.f32 %v1524, %v1574
    %v1623 = vadd.f32 %v1525, %v1575
    %v1624 = vadd.f32 %v1526, %v1576
    %v1625 = vadd.f32 %v1527, %v1577
    %v1626 = vadd.f32 %v1528, %v1578
    %v1627 = vadd.f32 %v1529, %v1579
    %v1628 = vadd.f32 %v1530, %v1580
    %v1629 = vadd.f32 %v1531, %v1581
    %v1630 = vadd.f32 %v1532, %v1582
    %v1631 = vadd.f32 %v1533, %v1583
    %v1632 = vadd.f32 %v1534, %v1584
    %v1633 = vadd.f32 %v1535, %v1585
    %v1634 = vadd.f32 %v1536, %v1586
    %v1635 = vadd.f32 %v1537, %v1587
    %v1636 = vadd.f32 %v1538, %v1588
    %v1637 = vadd.f32 %v1539, %v1589
    %v1638 = vadd.f32 %v1540, %v1590
    %v1639 = vadd.f32 %v1541, %v1591
    %v1640 = vadd.f32 %v1542, %v1592
    %v1641 = vadd.f32 %v1543, %v1593
    %v1642 = vadd.f32 %v1544, %v1594
    %v1643 = vadd.f32 %v1545, %v1595
    %v1644 = vadd.f32 %v1546, %v1596
    %v1645 = vadd.f32 %v1547, %v1597
    %v1646 = vadd.f32 %v1548, %v1598
    %v1647 = vadd.f32 %v1549, %v1599
    %v1648 = vadd.f32 %v1550, %v1600
    %v1649 = vadd.f32 %v1551, %v1601
    %v1650 = vadd.f32 %v1552, %v1602
    %v1651 = vadd.f32 %v1553, %v1603
    %v1652 = vadd.f32 %v1554, %v1604
    %v1653 = vadd.f32 %v1555, %v1605
    %v1654 = vadd.f32 %v1556, %v1606
    %v1655 = vadd.f32 %v1557, %v1607
    %v1656 = vadd.f32 %v1558, %v1608
    %v1657 = vadd.f32 %v1559, %v1609
    %v1658 = vadd.f32 %v1560, %v1610
    %v1663 = vsel %vm970, %v1411, %v1409
    %v1664 = vsel %vm970, %v1412, %v1410
    %v1666 = vsel %vm74, %v1664, 0
    %1668 = vmatprep.subr.mxu0 %v1642
    %1669 = vmatpush1.msra.mxu0 %v1641
    %1670 = vmatprep.subr.mxu0 %v1640
    %1671 = vmatpush1.msra.mxu0 %v1639
    %1672 = vmatprep.subr.mxu0 %v1638
    %1673 = vmatpush1.msra.mxu0 %v1637
    %1674 = vmatprep.subr.mxu0 %v1636
    %1675 = vmatpush1.msra.mxu0 %v1635
    %1676 = vmatprep.subr.mxu0 %v1634
    %1677 = vmatpush1.msra.mxu0 %v1633
    %1678 = vmatprep.subr.mxu0 %v1632
    %1679 = vmatpush1.msra.mxu0 %v1631
    %1680 = vmatprep.subr.mxu0 %v1630
    %1681 = vmatpush1.msra.mxu0 %v1629
    %1682 = vmatprep.subr.mxu0 %v1628
    %1683 = vmatpush1.msra.mxu0 %v1627
    %1684 = vmatprep.subr.mxu0 %v1626
    %1685 = vmatpush1.msra.mxu0 %v1625
    %1686 = vmatprep.subr.mxu0 %v1624
    %1687 = vmatpush1.msra.mxu0 %v1623
    %1688 = vmatprep.subr.mxu0 %v1622
    %1689 = vmatpush1.msra.mxu0 %v1621
    %1690 = vmatprep.subr.mxu0 %v1620
    %1691 = vmatpush1.msra.mxu0 %v1619
    %1692 = vmatprep.subr.mxu0 %v1618
    %1693 = vmatpush1.msra.mxu0 %v1617
    %1694 = vmatprep.subr.mxu0 %v1616
    %1695 = vmatpush1.msra.mxu0 %v1615
    %1696 = vmatprep.subr.mxu0 %v1614
    %1697 = vmatpush1.msra.mxu0 %v1613
    %1698 = vmatprep.subr.mxu0 %v1612
    %1699 = vmatpush1.msra.mxu0 %v1611
    %1700 = vmatprep.subr.mxu0 0.0
    %1701 = vmatpush2.msra.mxu0 0.0
    %1702 = vmatprep.subr.mxu0 0.0
    %1703 = vmatpush2.msra.mxu0 0.0
    %1704 = vmatprep.subr.mxu0 0.0
    %1705 = vmatpush2.msra.mxu0 0.0
    %1706 = vmatprep.subr.mxu0 0.0
    %1707 = vmatpush2.msra.mxu0 0.0
    %1708 = vmatprep.subr.mxu0 0.0
    %1709 = vmatpush2.msra.mxu0 0.0
    %1710 = vmatprep.subr.mxu0 0.0
    %1711 = vmatpush2.msra.mxu0 0.0
    %1712 = vmatprep.subr.mxu0 0.0
    %1713 = vmatpush2.msra.mxu0 0.0
    %1714 = vmatprep.subr.mxu0 0.0
    %1715 = vmatpush2.msra.mxu0 0.0
    %1716 = vmatprep.subr.mxu0 %v1658
    %1717 = vmatpush2.msra.mxu0 %v1657
    %1718 = vmatprep.subr.mxu0 %v1656
    %1719 = vmatpush2.msra.mxu0 %v1655
    %1720 = vmatprep.subr.mxu0 %v1654
    %1721 = vmatpush2.msra.mxu0 %v1653
    %1722 = vmatprep.subr.mxu0 %v1652
    %1723 = vmatpush2.msra.mxu0 %v1651
    %1724 = vmatprep.subr.mxu0 %v1650
    %1725 = vmatpush2.msra.mxu0 %v1649
    %1726 = vmatprep.subr.mxu0 %v1648
    %1727 = vmatpush2.msra.mxu0 %v1647
    %1728 = vmatprep.subr.mxu0 %v1646
    %1729 = vmatpush2.msra.mxu0 %v1645
    %1730 = vmatprep.subr.mxu0 %v1644
    %1731 = vmatpush2.msra.mxu0 %v1643
    %1732 = vmatprep.mubr.f32.mxu0 %v1666
    %1733 = vmatmul.mubr.f32.gmra.mxu0 %v1663
    %v1734 = vpop.f32.mrf.mxu0
    %v1735 = vadd.f32 0.0, %v1734
    %v1736 = vpop.f32.mrf.mxu0
    %v1737 = vadd.f32 0.0, %v1736
    %1738 = vdwg.mxu0
    %v1739 = vxor.u32 %v1735, 2147483648
    %v1740 = vxor.u32 %v1737, 2147483648
    %v1741 = vmul.f32 %v1739, 1.442695
    %v1742 = vpow.pop %v1741
    %v1743 = vmul.f32 %v1740, 1.442695
    %v1744 = vpow.pop %v1743
    %v1745 = vadd.f32 %v1742, 1.0
    %v1746 = vadd.f32 %v1744, 1.0
    %v1747 = vrcp.pop %v1745
    %v1748 = vmul.f32 1.0, %v1747
    %v1749 = vrcp.pop %v1746
    %v1750 = vmul.f32 1.0, %v1749
    %v1753 = vrot.slane %v1748, 1
    %v1754 = vrot.slane %v1750, 1
    %v1759 = vmul.f32 %v1409, %v1748
    %v1760 = vmul.f32 %v1410, %v1750
    %v1761 = vmul.f32 %v1411, %v1753
    %v1762 = vmul.f32 %v1412, %v1754
    %v1763 = vpack.c.bf16 %v1759, %v1759
    %v1764 = vpack.c.bf16 %v1760, %v1760
    %v1765 = vpack.c.bf16 %v1761, %v1761
    %v1766 = vpack.c.bf16 %v1762, %v1762
    %s1767 = scalar_lea.vmem %s2, 192
    %v1768 = vld [vmem:[%s1767] sm:$0xff]
    %v1769 = vld [vmem:[%s1767 + $0x8] sm:$0xff]
    %v1770 = vld [vmem:[%s1767 + $0x10] sm:$0xff]
    %v1771 = vld [vmem:[%s1767 + $0x18] sm:$0xff]
    %v1772 = vld [vmem:[%s1767 + $0x20] sm:$0xff]
    %v1773 = vld [vmem:[%s1767 + $0x28] sm:$0xff]
    %v1774 = vld [vmem:[%s1767 + $0x30] sm:$0xff]
    %v1775 = vld [vmem:[%s1767 + $0x38] sm:$0xff]
    %v1776 = vld [vmem:[%s1767 + $0x40] sm:$0xff]
    %v1777 = vld [vmem:[%s1767 + $0x48] sm:$0xff]
    %v1778 = vld [vmem:[%s1767 + $0x50] sm:$0xff]
    %v1779 = vld [vmem:[%s1767 + $0x58] sm:$0xff]
    %v1780 = vld [vmem:[%s1767 + $0x60] sm:$0xff]
    %v1781 = vld [vmem:[%s1767 + $0x68] sm:$0xff]
    %v1782 = vld [vmem:[%s1767 + $0x70] sm:$0xff]
    %v1783 = vld [vmem:[%s1767 + $0x78] sm:$0xff]
    %v1784 = vld [vmem:[%s1767 + $0x80] sm:$0xff]
    %v1785 = vld [vmem:[%s1767 + $0x88] sm:$0xff]
    %v1786 = vld [vmem:[%s1767 + $0x90] sm:$0xff]
    %v1787 = vld [vmem:[%s1767 + $0x98] sm:$0xff]
    %v1788 = vld [vmem:[%s1767 + $0xa0] sm:$0xff]
    %v1789 = vld [vmem:[%s1767 + $0xa8] sm:$0xff]
    %v1790 = vld [vmem:[%s1767 + $0xb0] sm:$0xff]
    %v1791 = vld [vmem:[%s1767 + $0xb8] sm:$0xff]
    %s1792 = scalar_lea.vmem %s3, 2
    %v1793 = vld [vmem:[%s1792] sm:$0x3]
    %v1795 = vlaneseq
    %v1796 = vshrl.u32 %v1795, 7
    %v1797 = vsub.s32 0, %v1796
    %v1798 = vrot.slane %v1793, %v1797
    %v1799 = vlaneseq
    %v1800 = vshrl.u32 %v1799, 7
    %v1801 = vsub.s32 1, %v1800
    %v1802 = vrot.slane %v1793, %v1801
    %v1809 = vunpack.c.l.b16 %v1763
    %v1810 = vunpack.c.l.b16 %v1764
    %v1811 = vunpack.c.l.b16 %v1765
    %v1812 = vunpack.c.l.b16 %v1766
    %v1813 = vrot.slane %v1811, 7
    %v1814 = vsel %vm970, %v1813, %v1809
    %v1815 = vrot.slane %v1812, 7
    %v1816 = vsel %vm970, %v1815, %v1810
    %v1817 = vpack.c.b16 %v1814, %v1814
    %v1818 = vpack.c.b16 %v1816, %v1816
    %v1844 = vunpack.c.l.b16 %v1768
    %v1845 = vunpack.c.h.b16 %v1768
    %v1846 = vunpack.c.l.b16 %v1769
    %v1847 = vunpack.c.h.b16 %v1769
    %v1848 = vunpack.c.l.b16 %v1770
    %v1849 = vunpack.c.h.b16 %v1770
    %v1850 = vunpack.c.l.b16 %v1771
    %v1851 = vunpack.c.h.b16 %v1771
    %v1852 = vunpack.c.l.b16 %v1772
    %v1853 = vunpack.c.h.b16 %v1772
    %v1854 = vunpack.c.l.b16 %v1773
    %v1855 = vunpack.c.h.b16 %v1773
    %v1856 = vunpack.c.l.b16 %v1774
    %v1857 = vunpack.c.h.b16 %v1774
    %v1858 = vunpack.c.l.b16 %v1775
    %v1859 = vunpack.c.h.b16 %v1775
    %v1860 = vunpack.c.l.b16 %v1776
    %v1861 = vunpack.c.h.b16 %v1776
    %v1862 = vunpack.c.l.b16 %v1777
    %v1863 = vunpack.c.h.b16 %v1777
    %v1864 = vunpack.c.l.b16 %v1778
    %v1865 = vunpack.c.h.b16 %v1778
    %v1866 = vunpack.c.l.b16 %v1779
    %v1867 = vunpack.c.h.b16 %v1779
    %v1868 = vunpack.c.l.b16 %v1780
    %v1869 = vunpack.c.h.b16 %v1780
    %v1870 = vunpack.c.l.b16 %v1781
    %v1871 = vunpack.c.h.b16 %v1781
    %v1872 = vunpack.c.l.b16 %v1782
    %v1873 = vunpack.c.h.b16 %v1782
    %v1874 = vunpack.c.l.b16 %v1783
    %v1875 = vunpack.c.h.b16 %v1783
    %v1876 = vunpack.c.l.b16 %v1784
    %v1877 = vunpack.c.h.b16 %v1784
    %v1878 = vunpack.c.l.b16 %v1785
    %v1879 = vunpack.c.h.b16 %v1785
    %v1880 = vunpack.c.l.b16 %v1786
    %v1881 = vunpack.c.h.b16 %v1786
    %v1882 = vunpack.c.l.b16 %v1787
    %v1883 = vunpack.c.h.b16 %v1787
    %v1884 = vunpack.c.l.b16 %v1788
    %v1885 = vunpack.c.h.b16 %v1788
    %v1886 = vunpack.c.l.b16 %v1789
    %v1887 = vunpack.c.h.b16 %v1789
    %v1888 = vunpack.c.l.b16 %v1790
    %v1889 = vunpack.c.h.b16 %v1790
    %v1890 = vunpack.c.l.b16 %v1791
    %v1891 = vunpack.c.h.b16 %v1791
    %v1892 = vpack.c.b16 %v1846, %v1844
    %v1893 = vpack.c.b16 %v1847, %v1845
    %v1894 = vpack.c.b16 %v1850, %v1848
    %v1895 = vpack.c.b16 %v1851, %v1849
    %v1896 = vpack.c.b16 %v1854, %v1852
    %v1897 = vpack.c.b16 %v1855, %v1853
    %v1898 = vpack.c.b16 %v1858, %v1856
    %v1899 = vpack.c.b16 %v1859, %v1857
    %v1900 = vpack.c.b16 %v1862, %v1860
    %v1901 = vpack.c.b16 %v1863, %v1861
    %v1902 = vpack.c.b16 %v1866, %v1864
    %v1903 = vpack.c.b16 %v1867, %v1865
    %v1904 = vpack.c.b16 %v1870, %v1868
    %v1905 = vpack.c.b16 %v1871, %v1869
    %v1906 = vpack.c.b16 %v1874, %v1872
    %v1907 = vpack.c.b16 %v1875, %v1873
    %v1908 = vpack.c.b16 %v1878, %v1876
    %v1909 = vpack.c.b16 %v1879, %v1877
    %v1910 = vpack.c.b16 %v1882, %v1880
    %v1911 = vpack.c.b16 %v1883, %v1881
    %v1912 = vpack.c.b16 %v1886, %v1884
    %v1913 = vpack.c.b16 %v1887, %v1885
    %v1914 = vpack.c.b16 %v1890, %v1888
    %v1915 = vpack.c.b16 %v1891, %v1889
    %v1941 = vsel %vm74, %v1818, 0
    %1943 = vmatprep.subr.bf16.mxu0 %v1907
    %1944 = vmatpush1.bf16.msra.mxu0 %v1906
    %1945 = vmatprep.subr.bf16.mxu0 %v1905
    %1946 = vmatpush1.bf16.msra.mxu0 %v1904
    %1947 = vmatprep.subr.bf16.mxu0 %v1903
    %1948 = vmatpush1.bf16.msra.mxu0 %v1902
    %1949 = vmatprep.subr.bf16.mxu0 %v1901
    %1950 = vmatpush1.bf16.msra.mxu0 %v1900
    %1951 = vmatprep.subr.bf16.mxu0 %v1899
    %1952 = vmatpush1.bf16.msra.mxu0 %v1898
    %1953 = vmatprep.subr.bf16.mxu0 %v1897
    %1954 = vmatpush1.bf16.msra.mxu0 %v1896
    %1955 = vmatprep.subr.bf16.mxu0 %v1895
    %1956 = vmatpush1.bf16.msra.mxu0 %v1894
    %1957 = vmatprep.subr.bf16.mxu0 %v1893
    %1958 = vmatpush1.bf16.msra.mxu0 %v1892
    %1959 = vmatprep.subr.bf16.mxu0 0
    %1960 = vmatpush2.bf16.msra.mxu0 0
    %1961 = vmatprep.subr.bf16.mxu0 0
    %1962 = vmatpush2.bf16.msra.mxu0 0
    %1963 = vmatprep.subr.bf16.mxu0 0
    %1964 = vmatpush2.bf16.msra.mxu0 0
    %1965 = vmatprep.subr.bf16.mxu0 0
    %1966 = vmatpush2.bf16.msra.mxu0 0
    %1967 = vmatprep.subr.bf16.mxu0 %v1915
    %1968 = vmatpush2.bf16.msra.mxu0 %v1914
    %1969 = vmatprep.subr.bf16.mxu0 %v1913
    %1970 = vmatpush2.bf16.msra.mxu0 %v1912
    %1971 = vmatprep.subr.bf16.mxu0 %v1911
    %1972 = vmatpush2.bf16.msra.mxu0 %v1910
    %1973 = vmatprep.subr.bf16.mxu0 %v1909
    %1974 = vmatpush2.bf16.msra.mxu0 %v1908
    %1975 = vmatprep.mubr.bf16.mxu0 %v1941
    %1976 = vmatmul.mubr.bf16.gmra.mxu0 %v1817
    %v1977 = vpop.f32.mrf.mxu0
    %v1978 = vadd.f32 %v1798, %v1977
    %v1979 = vpop.f32.mrf.mxu0
    %v1980 = vadd.f32 %v1802, %v1979
    %v1981 = vpop.f32.mrf.mxu0
    %v1982 = vpop.f32.mrf.mxu0
    %1983 = vdwg.mxu0
    %v1984 = vmax.f32 %v1978, 0.0
    %v1985 = vmax.f32 %v1980, 0.0
    %v1986 = vmul.f32 %v1984, %v1984
    %v1987 = vmul.f32 %v1985, %v1985
    %v1988 = vsel %vm1294, %v1986, 0.0
    %v1989 = vsel %vm1294, %v1987, 0.0
    %v1990 = vadd.f32 %v1988, %v1989
    %1991 = vadd.xlane.f32.xlu0 %v1990
    %v1992 = vpop.xlane.xlu0 %1991
    %v1993 = vmax.f32 %v1992, 1e-24
    %v1994 = vrsqrt.pop %v1993
    %v1995 = vmul.f32 %v1984, %v1994
    %v1996 = vmul.f32 %v1985, %v1994
    %s1997 = scalar_lea.vmem %s4, 256
    %v1998 = vld [vmem:[%s1997] sm:$0xff]
    %v1999 = vld [vmem:[%s1997 + $0x8] sm:$0xff]
    %v2000 = vld [vmem:[%s1997 + $0x10] sm:$0xff]
    %v2001 = vld [vmem:[%s1997 + $0x18] sm:$0xff]
    %v2002 = vld [vmem:[%s1997 + $0x20] sm:$0xff]
    %v2003 = vld [vmem:[%s1997 + $0x28] sm:$0xff]
    %v2004 = vld [vmem:[%s1997 + $0x30] sm:$0xff]
    %v2005 = vld [vmem:[%s1997 + $0x38] sm:$0xff]
    %v2006 = vld [vmem:[%s1997 + $0x40] sm:$0xff]
    %v2007 = vld [vmem:[%s1997 + $0x48] sm:$0xff]
    %v2008 = vld [vmem:[%s1997 + $0x50] sm:$0xff]
    %v2009 = vld [vmem:[%s1997 + $0x58] sm:$0xff]
    %v2010 = vld [vmem:[%s1997 + $0x60] sm:$0xff]
    %v2011 = vld [vmem:[%s1997 + $0x68] sm:$0xff]
    %v2012 = vld [vmem:[%s1997 + $0x70] sm:$0xff]
    %v2013 = vld [vmem:[%s1997 + $0x78] sm:$0xff]
    %v2014 = vld [vmem:[%s1997 + $0x80] sm:$0xff]
    %v2015 = vld [vmem:[%s1997 + $0x88] sm:$0xff]
    %v2016 = vld [vmem:[%s1997 + $0x90] sm:$0xff]
    %v2017 = vld [vmem:[%s1997 + $0x98] sm:$0xff]
    %v2018 = vld [vmem:[%s1997 + $0xa0] sm:$0xff]
    %v2019 = vld [vmem:[%s1997 + $0xa8] sm:$0xff]
    %v2020 = vld [vmem:[%s1997 + $0xb0] sm:$0xff]
    %v2021 = vld [vmem:[%s1997 + $0xb8] sm:$0xff]
    %v2022 = vld [vmem:[%s1997 + $0xc0] sm:$0xff]
    %v2023 = vld [vmem:[%s1997 + $0xc8] sm:$0xff]
    %v2024 = vld [vmem:[%s1997 + $0xd0] sm:$0xff]
    %v2025 = vld [vmem:[%s1997 + $0xd8] sm:$0xff]
    %v2026 = vld [vmem:[%s1997 + $0xe0] sm:$0xff]
    %v2027 = vld [vmem:[%s1997 + $0xe8] sm:$0xff]
    %v2028 = vld [vmem:[%s1997 + $0xf0] sm:$0xff]
    %v2029 = vld [vmem:[%s1997 + $0xf8] sm:$0xff]
    %2030 = vmatprep.subr.mxu0 0.0
    %2031 = vmatpush1.msra.mxu0 %v2013
    %2032 = vmatprep.subr.mxu0 0.0
    %2033 = vmatpush1.msra.mxu0 %v2012
    %2034 = vmatprep.subr.mxu0 0.0
    %2035 = vmatpush1.msra.mxu0 %v2011
    %2036 = vmatprep.subr.mxu0 0.0
    %2037 = vmatpush1.msra.mxu0 %v2010
    %2038 = vmatprep.subr.mxu0 0.0
    %2039 = vmatpush1.msra.mxu0 %v2009
    %2040 = vmatprep.subr.mxu0 0.0
    %2041 = vmatpush1.msra.mxu0 %v2008
    %2042 = vmatprep.subr.mxu0 0.0
    %2043 = vmatpush1.msra.mxu0 %v2007
    %2044 = vmatprep.subr.mxu0 0.0
    %2045 = vmatpush1.msra.mxu0 %v2006
    %2046 = vmatprep.subr.mxu0 0.0
    %2047 = vmatpush1.msra.mxu0 %v2005
    %2048 = vmatprep.subr.mxu0 0.0
    %2049 = vmatpush1.msra.mxu0 %v2004
    %2050 = vmatprep.subr.mxu0 0.0
    %2051 = vmatpush1.msra.mxu0 %v2003
    %2052 = vmatprep.subr.mxu0 0.0
    %2053 = vmatpush1.msra.mxu0 %v2002
    %2054 = vmatprep.subr.mxu0 0.0
    %2055 = vmatpush1.msra.mxu0 %v2001
    %2056 = vmatprep.subr.mxu0 0.0
    %2057 = vmatpush1.msra.mxu0 %v2000
    %2058 = vmatprep.subr.mxu0 0.0
    %2059 = vmatpush1.msra.mxu0 %v1999
    %2060 = vmatprep.subr.mxu0 0.0
    %2061 = vmatpush1.msra.mxu0 %v1998
    %2062 = vmatprep.subr.mxu0 0.0
    %2063 = vmatpush2.msra.mxu0 %v2029
    %2064 = vmatprep.subr.mxu0 0.0
    %2065 = vmatpush2.msra.mxu0 %v2028
    %2066 = vmatprep.subr.mxu0 0.0
    %2067 = vmatpush2.msra.mxu0 %v2027
    %2068 = vmatprep.subr.mxu0 0.0
    %2069 = vmatpush2.msra.mxu0 %v2026
    %2070 = vmatprep.subr.mxu0 0.0
    %2071 = vmatpush2.msra.mxu0 %v2025
    %2072 = vmatprep.subr.mxu0 0.0
    %2073 = vmatpush2.msra.mxu0 %v2024
    %2074 = vmatprep.subr.mxu0 0.0
    %2075 = vmatpush2.msra.mxu0 %v2023
    %2076 = vmatprep.subr.mxu0 0.0
    %2077 = vmatpush2.msra.mxu0 %v2022
    %2078 = vmatprep.subr.mxu0 0.0
    %2079 = vmatpush2.msra.mxu0 %v2021
    %2080 = vmatprep.subr.mxu0 0.0
    %2081 = vmatpush2.msra.mxu0 %v2020
    %2082 = vmatprep.subr.mxu0 0.0
    %2083 = vmatpush2.msra.mxu0 %v2019
    %2084 = vmatprep.subr.mxu0 0.0
    %2085 = vmatpush2.msra.mxu0 %v2018
    %2086 = vmatprep.subr.mxu0 0.0
    %2087 = vmatpush2.msra.mxu0 %v2017
    %2088 = vmatprep.subr.mxu0 0.0
    %2089 = vmatpush2.msra.mxu0 %v2016
    %2090 = vmatprep.subr.mxu0 0.0
    %2091 = vmatpush2.msra.mxu0 %v2015
    %2092 = vmatprep.subr.mxu0 0.0
    %2093 = vmatpush2.msra.mxu0 %v2014
    %2094 = vmatprep.mubr.f32.mxu0 %v1996
    %2095 = vmatmul.mubr.f32.gmra.mxu0 %v1995
    %v2096 = vpop.f32.mrf.mxu0
    %v2097 = vadd.f32 0.0, %v2096
    %v2098 = vpop.f32.mrf.mxu0
    %2099 = vdwg.mxu0
    %v2100 = vmul.f32 %v2097, 30.0
    %s2101 = scalar_lea.vmem [#allocation5], 2
    %2102 = vst.msk [vmem:[%s2101] sm:$0x3] %vm1407, %v2100
    %v2103 = vmul.f32 %v138, 0.0625
    %v2104 = vmul.f32 %v147, 0.0625
    %v2105 = vmul.f32 %v154, 0.0625
    %v2106 = vmul.f32 %v163, 0.0625
    %s2107 = sld [smem:[#allocation2 + $0x100]]
    %v2108 = vstv %s2107
    %v2109 = vmul.f32 %v2108, %v356
    %v2110 = vmul.f32 %v2108, %v357
    %v2111 = vmul.f32 %v2108, %v358
    %v2112 = vmul.f32 %v2108, %v359
    %v2113 = vmul.f32 %v2108, %v360
    %v2114 = vmul.f32 %v2108, %v361
    %v2115 = vmul.f32 %v2108, %v362
    %v2116 = vmul.f32 %v2108, %v363
    %v2117 = vmul.f32 %v2108, %v364
    %v2118 = vmul.f32 %v2108, %v365
    %v2119 = vmul.f32 %v2108, %v366
    %v2120 = vmul.f32 %v2108, %v367
    %v2121 = vmul.f32 %v2108, %v368
    %v2122 = vmul.f32 %v2108, %v369
    %v2123 = vmul.f32 %v2108, %v370
    %v2124 = vmul.f32 %v2108, %v371
    %v2125 = vmul.f32 %v2108, %v372
    %v2126 = vmul.f32 %v2108, %v373
    %v2127 = vmul.f32 %v2108, %v374
    %v2128 = vmul.f32 %v2108, %v375
    %v2129 = vmul.f32 %v2108, %v376
    %v2130 = vmul.f32 %v2108, %v377
    %v2131 = vmul.f32 %v2108, %v378
    %v2132 = vmul.f32 %v2108, %v379
    %v2133 = vmul.f32 %v2108, %v380
    %v2134 = vmul.f32 %v2108, %v381
    %v2135 = vmul.f32 %v2108, %v382
    %v2136 = vmul.f32 %v2108, %v383
    %v2137 = vmul.f32 %v2108, %v384
    %v2138 = vmul.f32 %v2108, %v385
    %v2139 = vmul.f32 %v2108, %v386
    %v2140 = vmul.f32 %v2108, %v387
    %v2141 = vmul.f32 %v2108, %v388
    %v2142 = vmul.f32 %v2108, %v389
    %v2143 = vmul.f32 %v2108, %v390
    %v2144 = vmul.f32 %v2108, %v391
    %v2145 = vmul.f32 %v2108, %v392
    %v2146 = vmul.f32 %v2108, %v393
    %v2147 = vmul.f32 %v2108, %v394
    %v2148 = vmul.f32 %v2108, %v395
    %v2149 = vmul.f32 %v2108, %v396
    %v2150 = vmul.f32 %v2108, %v397
    %v2151 = vmul.f32 %v2108, %v398
    %v2152 = vmul.f32 %v2108, %v399
    %v2153 = vmul.f32 %v2108, %v400
    %v2154 = vmul.f32 %v2108, %v401
    %v2155 = vmul.f32 %v2108, %v402
    %v2156 = vmul.f32 %v2108, %v403
    %s2157 = sld [smem:[#allocation2 + $0x101]]
    %v2158 = vstv %s2157
    %v2159 = vmul.f32 %v2158, %v500
    %v2160 = vmul.f32 %v2158, %v501
    %v2161 = vmul.f32 %v2158, %v502
    %v2162 = vmul.f32 %v2158, %v503
    %v2163 = vmul.f32 %v2158, %v504
    %v2164 = vmul.f32 %v2158, %v505
    %v2165 = vmul.f32 %v2158, %v506
    %v2166 = vmul.f32 %v2158, %v507
    %v2167 = vmul.f32 %v2158, %v508
    %v2168 = vmul.f32 %v2158, %v509
    %v2169 = vmul.f32 %v2158, %v510
    %v2170 = vmul.f32 %v2158, %v511
    %v2171 = vmul.f32 %v2158, %v512
    %v2172 = vmul.f32 %v2158, %v513
    %v2173 = vmul.f32 %v2158, %v514
    %v2174 = vmul.f32 %v2158, %v515
    %v2175 = vmul.f32 %v2158, %v516
    %v2176 = vmul.f32 %v2158, %v517
    %v2177 = vmul.f32 %v2158, %v518
    %v2178 = vmul.f32 %v2158, %v519
    %v2179 = vmul.f32 %v2158, %v520
    %v2180 = vmul.f32 %v2158, %v521
    %v2181 = vmul.f32 %v2158, %v522
    %v2182 = vmul.f32 %v2158, %v523
    %v2183 = vmul.f32 %v2158, %v524
    %v2184 = vmul.f32 %v2158, %v525
    %v2185 = vmul.f32 %v2158, %v526
    %v2186 = vmul.f32 %v2158, %v527
    %v2187 = vmul.f32 %v2158, %v528
    %v2188 = vmul.f32 %v2158, %v529
    %v2189 = vmul.f32 %v2158, %v530
    %v2190 = vmul.f32 %v2158, %v531
    %v2191 = vmul.f32 %v2158, %v532
    %v2192 = vmul.f32 %v2158, %v533
    %v2193 = vmul.f32 %v2158, %v534
    %v2194 = vmul.f32 %v2158, %v535
    %v2195 = vmul.f32 %v2158, %v536
    %v2196 = vmul.f32 %v2158, %v537
    %v2197 = vmul.f32 %v2158, %v538
    %v2198 = vmul.f32 %v2158, %v539
    %v2199 = vmul.f32 %v2158, %v540
    %v2200 = vmul.f32 %v2158, %v541
    %v2201 = vmul.f32 %v2158, %v542
    %v2202 = vmul.f32 %v2158, %v543
    %v2203 = vmul.f32 %v2158, %v544
    %v2204 = vmul.f32 %v2158, %v545
    %v2205 = vmul.f32 %v2158, %v546
    %v2206 = vmul.f32 %v2158, %v547
    %v2207 = vadd.f32 %v2109, %v2159
    %v2208 = vadd.f32 %v2110, %v2160
    %v2209 = vadd.f32 %v2111, %v2161
    %v2210 = vadd.f32 %v2112, %v2162
    %v2211 = vadd.f32 %v2113, %v2163
    %v2212 = vadd.f32 %v2114, %v2164
    %v2213 = vadd.f32 %v2115, %v2165
    %v2214 = vadd.f32 %v2116, %v2166
    %v2215 = vadd.f32 %v2117, %v2167
    %v2216 = vadd.f32 %v2118, %v2168
    %v2217 = vadd.f32 %v2119, %v2169
    %v2218 = vadd.f32 %v2120, %v2170
    %v2219 = vadd.f32 %v2121, %v2171
    %v2220 = vadd.f32 %v2122, %v2172
    %v2221 = vadd.f32 %v2123, %v2173
    %v2222 = vadd.f32 %v2124, %v2174
    %v2223 = vadd.f32 %v2125, %v2175
    %v2224 = vadd.f32 %v2126, %v2176
    %v2225 = vadd.f32 %v2127, %v2177
    %v2226 = vadd.f32 %v2128, %v2178
    %v2227 = vadd.f32 %v2129, %v2179
    %v2228 = vadd.f32 %v2130, %v2180
    %v2229 = vadd.f32 %v2131, %v2181
    %v2230 = vadd.f32 %v2132, %v2182
    %v2231 = vadd.f32 %v2133, %v2183
    %v2232 = vadd.f32 %v2134, %v2184
    %v2233 = vadd.f32 %v2135, %v2185
    %v2234 = vadd.f32 %v2136, %v2186
    %v2235 = vadd.f32 %v2137, %v2187
    %v2236 = vadd.f32 %v2138, %v2188
    %v2237 = vadd.f32 %v2139, %v2189
    %v2238 = vadd.f32 %v2140, %v2190
    %v2239 = vadd.f32 %v2141, %v2191
    %v2240 = vadd.f32 %v2142, %v2192
    %v2241 = vadd.f32 %v2143, %v2193
    %v2242 = vadd.f32 %v2144, %v2194
    %v2243 = vadd.f32 %v2145, %v2195
    %v2244 = vadd.f32 %v2146, %v2196
    %v2245 = vadd.f32 %v2147, %v2197
    %v2246 = vadd.f32 %v2148, %v2198
    %v2247 = vadd.f32 %v2149, %v2199
    %v2248 = vadd.f32 %v2150, %v2200
    %v2249 = vadd.f32 %v2151, %v2201
    %v2250 = vadd.f32 %v2152, %v2202
    %v2251 = vadd.f32 %v2153, %v2203
    %v2252 = vadd.f32 %v2154, %v2204
    %v2253 = vadd.f32 %v2155, %v2205
    %v2254 = vadd.f32 %v2156, %v2206
    %s2255 = sld [smem:[#allocation2 + $0x102]]
    %v2256 = vstv %s2255
    %v2257 = vmul.f32 %v2256, %v668
    %v2258 = vmul.f32 %v2256, %v669
    %v2259 = vmul.f32 %v2256, %v670
    %v2260 = vmul.f32 %v2256, %v671
    %v2261 = vmul.f32 %v2256, %v672
    %v2262 = vmul.f32 %v2256, %v673
    %v2263 = vmul.f32 %v2256, %v674
    %v2264 = vmul.f32 %v2256, %v675
    %v2265 = vmul.f32 %v2256, %v676
    %v2266 = vmul.f32 %v2256, %v677
    %v2267 = vmul.f32 %v2256, %v678
    %v2268 = vmul.f32 %v2256, %v679
    %v2269 = vmul.f32 %v2256, %v680
    %v2270 = vmul.f32 %v2256, %v681
    %v2271 = vmul.f32 %v2256, %v682
    %v2272 = vmul.f32 %v2256, %v683
    %v2273 = vmul.f32 %v2256, %v684
    %v2274 = vmul.f32 %v2256, %v685
    %v2275 = vmul.f32 %v2256, %v686
    %v2276 = vmul.f32 %v2256, %v687
    %v2277 = vmul.f32 %v2256, %v688
    %v2278 = vmul.f32 %v2256, %v689
    %v2279 = vmul.f32 %v2256, %v690
    %v2280 = vmul.f32 %v2256, %v691
    %v2281 = vmul.f32 %v2256, %v692
    %v2282 = vmul.f32 %v2256, %v693
    %v2283 = vmul.f32 %v2256, %v694
    %v2284 = vmul.f32 %v2256, %v695
    %v2285 = vmul.f32 %v2256, %v696
    %v2286 = vmul.f32 %v2256, %v697
    %v2287 = vmul.f32 %v2256, %v698
    %v2288 = vmul.f32 %v2256, %v699
    %v2289 = vmul.f32 %v2256, %v700
    %v2290 = vmul.f32 %v2256, %v701
    %v2291 = vmul.f32 %v2256, %v702
    %v2292 = vmul.f32 %v2256, %v703
    %v2293 = vmul.f32 %v2256, %v704
    %v2294 = vmul.f32 %v2256, %v705
    %v2295 = vmul.f32 %v2256, %v706
    %v2296 = vmul.f32 %v2256, %v707
    %v2297 = vmul.f32 %v2256, %v708
    %v2298 = vmul.f32 %v2256, %v709
    %v2299 = vmul.f32 %v2256, %v710
    %v2300 = vmul.f32 %v2256, %v711
    %v2301 = vmul.f32 %v2256, %v712
    %v2302 = vmul.f32 %v2256, %v713
    %v2303 = vmul.f32 %v2256, %v714
    %v2304 = vmul.f32 %v2256, %v715
    %v2305 = vadd.f32 %v2207, %v2257
    %v2306 = vadd.f32 %v2208, %v2258
    %v2307 = vadd.f32 %v2209, %v2259
    %v2308 = vadd.f32 %v2210, %v2260
    %v2309 = vadd.f32 %v2211, %v2261
    %v2310 = vadd.f32 %v2212, %v2262
    %v2311 = vadd.f32 %v2213, %v2263
    %v2312 = vadd.f32 %v2214, %v2264
    %v2313 = vadd.f32 %v2215, %v2265
    %v2314 = vadd.f32 %v2216, %v2266
    %v2315 = vadd.f32 %v2217, %v2267
    %v2316 = vadd.f32 %v2218, %v2268
    %v2317 = vadd.f32 %v2219, %v2269
    %v2318 = vadd.f32 %v2220, %v2270
    %v2319 = vadd.f32 %v2221, %v2271
    %v2320 = vadd.f32 %v2222, %v2272
    %v2321 = vadd.f32 %v2223, %v2273
    %v2322 = vadd.f32 %v2224, %v2274
    %v2323 = vadd.f32 %v2225, %v2275
    %v2324 = vadd.f32 %v2226, %v2276
    %v2325 = vadd.f32 %v2227, %v2277
    %v2326 = vadd.f32 %v2228, %v2278
    %v2327 = vadd.f32 %v2229, %v2279
    %v2328 = vadd.f32 %v2230, %v2280
    %v2329 = vadd.f32 %v2231, %v2281
    %v2330 = vadd.f32 %v2232, %v2282
    %v2331 = vadd.f32 %v2233, %v2283
    %v2332 = vadd.f32 %v2234, %v2284
    %v2333 = vadd.f32 %v2235, %v2285
    %v2334 = vadd.f32 %v2236, %v2286
    %v2335 = vadd.f32 %v2237, %v2287
    %v2336 = vadd.f32 %v2238, %v2288
    %v2337 = vadd.f32 %v2239, %v2289
    %v2338 = vadd.f32 %v2240, %v2290
    %v2339 = vadd.f32 %v2241, %v2291
    %v2340 = vadd.f32 %v2242, %v2292
    %v2341 = vadd.f32 %v2243, %v2293
    %v2342 = vadd.f32 %v2244, %v2294
    %v2343 = vadd.f32 %v2245, %v2295
    %v2344 = vadd.f32 %v2246, %v2296
    %v2345 = vadd.f32 %v2247, %v2297
    %v2346 = vadd.f32 %v2248, %v2298
    %v2347 = vadd.f32 %v2249, %v2299
    %v2348 = vadd.f32 %v2250, %v2300
    %v2349 = vadd.f32 %v2251, %v2301
    %v2350 = vadd.f32 %v2252, %v2302
    %v2351 = vadd.f32 %v2253, %v2303
    %v2352 = vadd.f32 %v2254, %v2304
    %v2357 = vsel %vm970, %v2105, %v2103
    %v2358 = vsel %vm970, %v2106, %v2104
    %v2360 = vsel %vm74, %v2358, 0
    %2362 = vmatprep.subr.mxu0 %v2336
    %2363 = vmatpush1.msra.mxu0 %v2335
    %2364 = vmatprep.subr.mxu0 %v2334
    %2365 = vmatpush1.msra.mxu0 %v2333
    %2366 = vmatprep.subr.mxu0 %v2332
    %2367 = vmatpush1.msra.mxu0 %v2331
    %2368 = vmatprep.subr.mxu0 %v2330
    %2369 = vmatpush1.msra.mxu0 %v2329
    %2370 = vmatprep.subr.mxu0 %v2328
    %2371 = vmatpush1.msra.mxu0 %v2327
    %2372 = vmatprep.subr.mxu0 %v2326
    %2373 = vmatpush1.msra.mxu0 %v2325
    %2374 = vmatprep.subr.mxu0 %v2324
    %2375 = vmatpush1.msra.mxu0 %v2323
    %2376 = vmatprep.subr.mxu0 %v2322
    %2377 = vmatpush1.msra.mxu0 %v2321
    %2378 = vmatprep.subr.mxu0 %v2320
    %2379 = vmatpush1.msra.mxu0 %v2319
    %2380 = vmatprep.subr.mxu0 %v2318
    %2381 = vmatpush1.msra.mxu0 %v2317
    %2382 = vmatprep.subr.mxu0 %v2316
    %2383 = vmatpush1.msra.mxu0 %v2315
    %2384 = vmatprep.subr.mxu0 %v2314
    %2385 = vmatpush1.msra.mxu0 %v2313
    %2386 = vmatprep.subr.mxu0 %v2312
    %2387 = vmatpush1.msra.mxu0 %v2311
    %2388 = vmatprep.subr.mxu0 %v2310
    %2389 = vmatpush1.msra.mxu0 %v2309
    %2390 = vmatprep.subr.mxu0 %v2308
    %2391 = vmatpush1.msra.mxu0 %v2307
    %2392 = vmatprep.subr.mxu0 %v2306
    %2393 = vmatpush1.msra.mxu0 %v2305
    %2394 = vmatprep.subr.mxu0 0.0
    %2395 = vmatpush2.msra.mxu0 0.0
    %2396 = vmatprep.subr.mxu0 0.0
    %2397 = vmatpush2.msra.mxu0 0.0
    %2398 = vmatprep.subr.mxu0 0.0
    %2399 = vmatpush2.msra.mxu0 0.0
    %2400 = vmatprep.subr.mxu0 0.0
    %2401 = vmatpush2.msra.mxu0 0.0
    %2402 = vmatprep.subr.mxu0 0.0
    %2403 = vmatpush2.msra.mxu0 0.0
    %2404 = vmatprep.subr.mxu0 0.0
    %2405 = vmatpush2.msra.mxu0 0.0
    %2406 = vmatprep.subr.mxu0 0.0
    %2407 = vmatpush2.msra.mxu0 0.0
    %2408 = vmatprep.subr.mxu0 0.0
    %2409 = vmatpush2.msra.mxu0 0.0
    %2410 = vmatprep.subr.mxu0 %v2352
    %2411 = vmatpush2.msra.mxu0 %v2351
    %2412 = vmatprep.subr.mxu0 %v2350
    %2413 = vmatpush2.msra.mxu0 %v2349
    %2414 = vmatprep.subr.mxu0 %v2348
    %2415 = vmatpush2.msra.mxu0 %v2347
    %2416 = vmatprep.subr.mxu0 %v2346
    %2417 = vmatpush2.msra.mxu0 %v2345
    %2418 = vmatprep.subr.mxu0 %v2344
    %2419 = vmatpush2.msra.mxu0 %v2343
    %2420 = vmatprep.subr.mxu0 %v2342
    %2421 = vmatpush2.msra.mxu0 %v2341
    %2422 = vmatprep.subr.mxu0 %v2340
    %2423 = vmatpush2.msra.mxu0 %v2339
    %2424 = vmatprep.subr.mxu0 %v2338
    %2425 = vmatpush2.msra.mxu0 %v2337
    %2426 = vmatprep.mubr.f32.mxu0 %v2360
    %2427 = vmatmul.mubr.f32.gmra.mxu0 %v2357
    %v2428 = vpop.f32.mrf.mxu0
    %v2429 = vadd.f32 0.0, %v2428
    %v2430 = vpop.f32.mrf.mxu0
    %v2431 = vadd.f32 0.0, %v2430
    %2432 = vdwg.mxu0
    %v2433 = vxor.u32 %v2429, 2147483648
    %v2434 = vxor.u32 %v2431, 2147483648
    %v2435 = vmul.f32 %v2433, 1.442695
    %v2436 = vpow.pop %v2435
    %v2437 = vmul.f32 %v2434, 1.442695
    %v2438 = vpow.pop %v2437
    %v2439 = vadd.f32 %v2436, 1.0
    %v2440 = vadd.f32 %v2438, 1.0
    %v2441 = vrcp.pop %v2439
    %v2442 = vmul.f32 1.0, %v2441
    %v2443 = vrcp.pop %v2440
    %v2444 = vmul.f32 1.0, %v2443
    %v2447 = vrot.slane %v2442, 1
    %v2448 = vrot.slane %v2444, 1
    %v2453 = vmul.f32 %v2103, %v2442
    %v2454 = vmul.f32 %v2104, %v2444
    %v2455 = vmul.f32 %v2105, %v2447
    %v2456 = vmul.f32 %v2106, %v2448
    %v2457 = vpack.c.bf16 %v2453, %v2453
    %v2458 = vpack.c.bf16 %v2454, %v2454
    %v2459 = vpack.c.bf16 %v2455, %v2455
    %v2460 = vpack.c.bf16 %v2456, %v2456
    %s2461 = scalar_lea.vmem %s2, 384
    %v2462 = vld [vmem:[%s2461] sm:$0xff]
    %v2463 = vld [vmem:[%s2461 + $0x8] sm:$0xff]
    %v2464 = vld [vmem:[%s2461 + $0x10] sm:$0xff]
    %v2465 = vld [vmem:[%s2461 + $0x18] sm:$0xff]
    %v2466 = vld [vmem:[%s2461 + $0x20] sm:$0xff]
    %v2467 = vld [vmem:[%s2461 + $0x28] sm:$0xff]
    %v2468 = vld [vmem:[%s2461 + $0x30] sm:$0xff]
    %v2469 = vld [vmem:[%s2461 + $0x38] sm:$0xff]
    %v2470 = vld [vmem:[%s2461 + $0x40] sm:$0xff]
    %v2471 = vld [vmem:[%s2461 + $0x48] sm:$0xff]
    %v2472 = vld [vmem:[%s2461 + $0x50] sm:$0xff]
    %v2473 = vld [vmem:[%s2461 + $0x58] sm:$0xff]
    %v2474 = vld [vmem:[%s2461 + $0x60] sm:$0xff]
    %v2475 = vld [vmem:[%s2461 + $0x68] sm:$0xff]
    %v2476 = vld [vmem:[%s2461 + $0x70] sm:$0xff]
    %v2477 = vld [vmem:[%s2461 + $0x78] sm:$0xff]
    %v2478 = vld [vmem:[%s2461 + $0x80] sm:$0xff]
    %v2479 = vld [vmem:[%s2461 + $0x88] sm:$0xff]
    %v2480 = vld [vmem:[%s2461 + $0x90] sm:$0xff]
    %v2481 = vld [vmem:[%s2461 + $0x98] sm:$0xff]
    %v2482 = vld [vmem:[%s2461 + $0xa0] sm:$0xff]
    %v2483 = vld [vmem:[%s2461 + $0xa8] sm:$0xff]
    %v2484 = vld [vmem:[%s2461 + $0xb0] sm:$0xff]
    %v2485 = vld [vmem:[%s2461 + $0xb8] sm:$0xff]
    %s2486 = scalar_lea.vmem %s3, 4
    %v2487 = vld [vmem:[%s2486] sm:$0x3]
    %v2489 = vlaneseq
    %v2490 = vshrl.u32 %v2489, 7
    %v2491 = vsub.s32 0, %v2490
    %v2492 = vrot.slane %v2487, %v2491
    %v2493 = vlaneseq
    %v2494 = vshrl.u32 %v2493, 7
    %v2495 = vsub.s32 1, %v2494
    %v2496 = vrot.slane %v2487, %v2495
    %v2503 = vunpack.c.l.b16 %v2457
    %v2504 = vunpack.c.l.b16 %v2458
    %v2505 = vunpack.c.l.b16 %v2459
    %v2506 = vunpack.c.l.b16 %v2460
    %v2507 = vrot.slane %v2505, 7
    %v2508 = vsel %vm970, %v2507, %v2503
    %v2509 = vrot.slane %v2506, 7
    %v2510 = vsel %vm970, %v2509, %v2504
    %v2511 = vpack.c.b16 %v2508, %v2508
    %v2512 = vpack.c.b16 %v2510, %v2510
    %v2538 = vunpack.c.l.b16 %v2462
    %v2539 = vunpack.c.h.b16 %v2462
    %v2540 = vunpack.c.l.b16 %v2463
    %v2541 = vunpack.c.h.b16 %v2463
    %v2542 = vunpack.c.l.b16 %v2464
    %v2543 = vunpack.c.h.b16 %v2464
    %v2544 = vunpack.c.l.b16 %v2465
    %v2545 = vunpack.c.h.b16 %v2465
    %v2546 = vunpack.c.l.b16 %v2466
    %v2547 = vunpack.c.h.b16 %v2466
    %v2548 = vunpack.c.l.b16 %v2467
    %v2549 = vunpack.c.h.b16 %v2467
    %v2550 = vunpack.c.l.b16 %v2468
    %v2551 = vunpack.c.h.b16 %v2468
    %v2552 = vunpack.c.l.b16 %v2469
    %v2553 = vunpack.c.h.b16 %v2469
    %v2554 = vunpack.c.l.b16 %v2470
    %v2555 = vunpack.c.h.b16 %v2470
    %v2556 = vunpack.c.l.b16 %v2471
    %v2557 = vunpack.c.h.b16 %v2471
    %v2558 = vunpack.c.l.b16 %v2472
    %v2559 = vunpack.c.h.b16 %v2472
    %v2560 = vunpack.c.l.b16 %v2473
    %v2561 = vunpack.c.h.b16 %v2473
    %v2562 = vunpack.c.l.b16 %v2474
    %v2563 = vunpack.c.h.b16 %v2474
    %v2564 = vunpack.c.l.b16 %v2475
    %v2565 = vunpack.c.h.b16 %v2475
    %v2566 = vunpack.c.l.b16 %v2476
    %v2567 = vunpack.c.h.b16 %v2476
    %v2568 = vunpack.c.l.b16 %v2477
    %v2569 = vunpack.c.h.b16 %v2477
    %v2570 = vunpack.c.l.b16 %v2478
    %v2571 = vunpack.c.h.b16 %v2478
    %v2572 = vunpack.c.l.b16 %v2479
    %v2573 = vunpack.c.h.b16 %v2479
    %v2574 = vunpack.c.l.b16 %v2480
    %v2575 = vunpack.c.h.b16 %v2480
    %v2576 = vunpack.c.l.b16 %v2481
    %v2577 = vunpack.c.h.b16 %v2481
    %v2578 = vunpack.c.l.b16 %v2482
    %v2579 = vunpack.c.h.b16 %v2482
    %v2580 = vunpack.c.l.b16 %v2483
    %v2581 = vunpack.c.h.b16 %v2483
    %v2582 = vunpack.c.l.b16 %v2484
    %v2583 = vunpack.c.h.b16 %v2484
    %v2584 = vunpack.c.l.b16 %v2485
    %v2585 = vunpack.c.h.b16 %v2485
    %v2586 = vpack.c.b16 %v2540, %v2538
    %v2587 = vpack.c.b16 %v2541, %v2539
    %v2588 = vpack.c.b16 %v2544, %v2542
    %v2589 = vpack.c.b16 %v2545, %v2543
    %v2590 = vpack.c.b16 %v2548, %v2546
    %v2591 = vpack.c.b16 %v2549, %v2547
    %v2592 = vpack.c.b16 %v2552, %v2550
    %v2593 = vpack.c.b16 %v2553, %v2551
    %v2594 = vpack.c.b16 %v2556, %v2554
    %v2595 = vpack.c.b16 %v2557, %v2555
    %v2596 = vpack.c.b16 %v2560, %v2558
    %v2597 = vpack.c.b16 %v2561, %v2559
    %v2598 = vpack.c.b16 %v2564, %v2562
    %v2599 = vpack.c.b16 %v2565, %v2563
    %v2600 = vpack.c.b16 %v2568, %v2566
    %v2601 = vpack.c.b16 %v2569, %v2567
    %v2602 = vpack.c.b16 %v2572, %v2570
    %v2603 = vpack.c.b16 %v2573, %v2571
    %v2604 = vpack.c.b16 %v2576, %v2574
    %v2605 = vpack.c.b16 %v2577, %v2575
    %v2606 = vpack.c.b16 %v2580, %v2578
    %v2607 = vpack.c.b16 %v2581, %v2579
    %v2608 = vpack.c.b16 %v2584, %v2582
    %v2609 = vpack.c.b16 %v2585, %v2583
    %v2635 = vsel %vm74, %v2512, 0
    %2637 = vmatprep.subr.bf16.mxu0 %v2601
    %2638 = vmatpush1.bf16.msra.mxu0 %v2600
    %2639 = vmatprep.subr.bf16.mxu0 %v2599
    %2640 = vmatpush1.bf16.msra.mxu0 %v2598
    %2641 = vmatprep.subr.bf16.mxu0 %v2597
    %2642 = vmatpush1.bf16.msra.mxu0 %v2596
    %2643 = vmatprep.subr.bf16.mxu0 %v2595
    %2644 = vmatpush1.bf16.msra.mxu0 %v2594
    %2645 = vmatprep.subr.bf16.mxu0 %v2593
    %2646 = vmatpush1.bf16.msra.mxu0 %v2592
    %2647 = vmatprep.subr.bf16.mxu0 %v2591
    %2648 = vmatpush1.bf16.msra.mxu0 %v2590
    %2649 = vmatprep.subr.bf16.mxu0 %v2589
    %2650 = vmatpush1.bf16.msra.mxu0 %v2588
    %2651 = vmatprep.subr.bf16.mxu0 %v2587
    %2652 = vmatpush1.bf16.msra.mxu0 %v2586
    %2653 = vmatprep.subr.bf16.mxu0 0
    %2654 = vmatpush2.bf16.msra.mxu0 0
    %2655 = vmatprep.subr.bf16.mxu0 0
    %2656 = vmatpush2.bf16.msra.mxu0 0
    %2657 = vmatprep.subr.bf16.mxu0 0
    %2658 = vmatpush2.bf16.msra.mxu0 0
    %2659 = vmatprep.subr.bf16.mxu0 0
    %2660 = vmatpush2.bf16.msra.mxu0 0
    %2661 = vmatprep.subr.bf16.mxu0 %v2609
    %2662 = vmatpush2.bf16.msra.mxu0 %v2608
    %2663 = vmatprep.subr.bf16.mxu0 %v2607
    %2664 = vmatpush2.bf16.msra.mxu0 %v2606
    %2665 = vmatprep.subr.bf16.mxu0 %v2605
    %2666 = vmatpush2.bf16.msra.mxu0 %v2604
    %2667 = vmatprep.subr.bf16.mxu0 %v2603
    %2668 = vmatpush2.bf16.msra.mxu0 %v2602
    %2669 = vmatprep.mubr.bf16.mxu0 %v2635
    %2670 = vmatmul.mubr.bf16.gmra.mxu0 %v2511
    %v2671 = vpop.f32.mrf.mxu0
    %v2672 = vadd.f32 %v2492, %v2671
    %v2673 = vpop.f32.mrf.mxu0
    %v2674 = vadd.f32 %v2496, %v2673
    %v2675 = vpop.f32.mrf.mxu0
    %v2676 = vpop.f32.mrf.mxu0
    %2677 = vdwg.mxu0
    %v2678 = vmax.f32 %v2672, 0.0
    %v2679 = vmax.f32 %v2674, 0.0
    %v2680 = vmul.f32 %v2678, %v2678
    %v2681 = vmul.f32 %v2679, %v2679
    %v2682 = vsel %vm1294, %v2680, 0.0
    %v2683 = vsel %vm1294, %v2681, 0.0
    %v2684 = vadd.f32 %v2682, %v2683
    %2685 = vadd.xlane.f32.xlu0 %v2684
    %v2686 = vpop.xlane.xlu0 %2685
    %v2687 = vmax.f32 %v2686, 1e-24
    %v2688 = vrsqrt.pop %v2687
    %v2689 = vmul.f32 %v2678, %v2688
    %v2690 = vmul.f32 %v2679, %v2688
    %s2691 = scalar_lea.vmem %s4, 512
    %v2692 = vld [vmem:[%s2691] sm:$0xff]
    %v2693 = vld [vmem:[%s2691 + $0x8] sm:$0xff]
    %v2694 = vld [vmem:[%s2691 + $0x10] sm:$0xff]
    %v2695 = vld [vmem:[%s2691 + $0x18] sm:$0xff]
    %v2696 = vld [vmem:[%s2691 + $0x20] sm:$0xff]
    %v2697 = vld [vmem:[%s2691 + $0x28] sm:$0xff]
    %v2698 = vld [vmem:[%s2691 + $0x30] sm:$0xff]
    %v2699 = vld [vmem:[%s2691 + $0x38] sm:$0xff]
    %v2700 = vld [vmem:[%s2691 + $0x40] sm:$0xff]
    %v2701 = vld [vmem:[%s2691 + $0x48] sm:$0xff]
    %v2702 = vld [vmem:[%s2691 + $0x50] sm:$0xff]
    %v2703 = vld [vmem:[%s2691 + $0x58] sm:$0xff]
    %v2704 = vld [vmem:[%s2691 + $0x60] sm:$0xff]
    %v2705 = vld [vmem:[%s2691 + $0x68] sm:$0xff]
    %v2706 = vld [vmem:[%s2691 + $0x70] sm:$0xff]
    %v2707 = vld [vmem:[%s2691 + $0x78] sm:$0xff]
    %v2708 = vld [vmem:[%s2691 + $0x80] sm:$0xff]
    %v2709 = vld [vmem:[%s2691 + $0x88] sm:$0xff]
    %v2710 = vld [vmem:[%s2691 + $0x90] sm:$0xff]
    %v2711 = vld [vmem:[%s2691 + $0x98] sm:$0xff]
    %v2712 = vld [vmem:[%s2691 + $0xa0] sm:$0xff]
    %v2713 = vld [vmem:[%s2691 + $0xa8] sm:$0xff]
    %v2714 = vld [vmem:[%s2691 + $0xb0] sm:$0xff]
    %v2715 = vld [vmem:[%s2691 + $0xb8] sm:$0xff]
    %v2716 = vld [vmem:[%s2691 + $0xc0] sm:$0xff]
    %v2717 = vld [vmem:[%s2691 + $0xc8] sm:$0xff]
    %v2718 = vld [vmem:[%s2691 + $0xd0] sm:$0xff]
    %v2719 = vld [vmem:[%s2691 + $0xd8] sm:$0xff]
    %v2720 = vld [vmem:[%s2691 + $0xe0] sm:$0xff]
    %v2721 = vld [vmem:[%s2691 + $0xe8] sm:$0xff]
    %v2722 = vld [vmem:[%s2691 + $0xf0] sm:$0xff]
    %v2723 = vld [vmem:[%s2691 + $0xf8] sm:$0xff]
    %2724 = vmatprep.subr.mxu0 0.0
    %2725 = vmatpush1.msra.mxu0 %v2707
    %2726 = vmatprep.subr.mxu0 0.0
    %2727 = vmatpush1.msra.mxu0 %v2706
    %2728 = vmatprep.subr.mxu0 0.0
    %2729 = vmatpush1.msra.mxu0 %v2705
    %2730 = vmatprep.subr.mxu0 0.0
    %2731 = vmatpush1.msra.mxu0 %v2704
    %2732 = vmatprep.subr.mxu0 0.0
    %2733 = vmatpush1.msra.mxu0 %v2703
    %2734 = vmatprep.subr.mxu0 0.0
    %2735 = vmatpush1.msra.mxu0 %v2702
    %2736 = vmatprep.subr.mxu0 0.0
    %2737 = vmatpush1.msra.mxu0 %v2701
    %2738 = vmatprep.subr.mxu0 0.0
    %2739 = vmatpush1.msra.mxu0 %v2700
    %2740 = vmatprep.subr.mxu0 0.0
    %2741 = vmatpush1.msra.mxu0 %v2699
    %2742 = vmatprep.subr.mxu0 0.0
    %2743 = vmatpush1.msra.mxu0 %v2698
    %2744 = vmatprep.subr.mxu0 0.0
    %2745 = vmatpush1.msra.mxu0 %v2697
    %2746 = vmatprep.subr.mxu0 0.0
    %2747 = vmatpush1.msra.mxu0 %v2696
    %2748 = vmatprep.subr.mxu0 0.0
    %2749 = vmatpush1.msra.mxu0 %v2695
    %2750 = vmatprep.subr.mxu0 0.0
    %2751 = vmatpush1.msra.mxu0 %v2694
    %2752 = vmatprep.subr.mxu0 0.0
    %2753 = vmatpush1.msra.mxu0 %v2693
    %2754 = vmatprep.subr.mxu0 0.0
    %2755 = vmatpush1.msra.mxu0 %v2692
    %2756 = vmatprep.subr.mxu0 0.0
    %2757 = vmatpush2.msra.mxu0 %v2723
    %2758 = vmatprep.subr.mxu0 0.0
    %2759 = vmatpush2.msra.mxu0 %v2722
    %2760 = vmatprep.subr.mxu0 0.0
    %2761 = vmatpush2.msra.mxu0 %v2721
    %2762 = vmatprep.subr.mxu0 0.0
    %2763 = vmatpush2.msra.mxu0 %v2720
    %2764 = vmatprep.subr.mxu0 0.0
    %2765 = vmatpush2.msra.mxu0 %v2719
    %2766 = vmatprep.subr.mxu0 0.0
    %2767 = vmatpush2.msra.mxu0 %v2718
    %2768 = vmatprep.subr.mxu0 0.0
    %2769 = vmatpush2.msra.mxu0 %v2717
    %2770 = vmatprep.subr.mxu0 0.0
    %2771 = vmatpush2.msra.mxu0 %v2716
    %2772 = vmatprep.subr.mxu0 0.0
    %2773 = vmatpush2.msra.mxu0 %v2715
    %2774 = vmatprep.subr.mxu0 0.0
    %2775 = vmatpush2.msra.mxu0 %v2714
    %2776 = vmatprep.subr.mxu0 0.0
    %2777 = vmatpush2.msra.mxu0 %v2713
    %2778 = vmatprep.subr.mxu0 0.0
    %2779 = vmatpush2.msra.mxu0 %v2712
    %2780 = vmatprep.subr.mxu0 0.0
    %2781 = vmatpush2.msra.mxu0 %v2711
    %2782 = vmatprep.subr.mxu0 0.0
    %2783 = vmatpush2.msra.mxu0 %v2710
    %2784 = vmatprep.subr.mxu0 0.0
    %2785 = vmatpush2.msra.mxu0 %v2709
    %2786 = vmatprep.subr.mxu0 0.0
    %2787 = vmatpush2.msra.mxu0 %v2708
    %2788 = vmatprep.mubr.f32.mxu0 %v2690
    %2789 = vmatmul.mubr.f32.gmra.mxu0 %v2689
    %v2790 = vpop.f32.mrf.mxu0
    %v2791 = vadd.f32 0.0, %v2790
    %v2792 = vpop.f32.mrf.mxu0
    %2793 = vdwg.mxu0
    %v2794 = vmul.f32 %v2791, 30.0
    %s2795 = scalar_lea.vmem [#allocation5], 4
    %2796 = vst.msk [vmem:[%s2795] sm:$0x3] %vm1407, %v2794
    %v2797 = vmul.f32 %v170, 0.0625
    %v2798 = vmul.f32 %v179, 0.0625
    %v2799 = vmul.f32 %v186, 0.0625
    %v2800 = vmul.f32 %v195, 0.0625
    %s2801 = sld [smem:[#allocation2 + $0x180]]
    %v2802 = vstv %s2801
    %v2803 = vmul.f32 %v2802, %v356
    %v2804 = vmul.f32 %v2802, %v357
    %v2805 = vmul.f32 %v2802, %v358
    %v2806 = vmul.f32 %v2802, %v359
    %v2807 = vmul.f32 %v2802, %v360
    %v2808 = vmul.f32 %v2802, %v361
    %v2809 = vmul.f32 %v2802, %v362
    %v2810 = vmul.f32 %v2802, %v363
    %v2811 = vmul.f32 %v2802, %v364
    %v2812 = vmul.f32 %v2802, %v365
    %v2813 = vmul.f32 %v2802, %v366
    %v2814 = vmul.f32 %v2802, %v367
    %v2815 = vmul.f32 %v2802, %v368
    %v2816 = vmul.f32 %v2802, %v369
    %v2817 = vmul.f32 %v2802, %v370
    %v2818 = vmul.f32 %v2802, %v371
    %v2819 = vmul.f32 %v2802, %v372
    %v2820 = vmul.f32 %v2802, %v373
    %v2821 = vmul.f32 %v2802, %v374
    %v2822 = vmul.f32 %v2802, %v375
    %v2823 = vmul.f32 %v2802, %v376
    %v2824 = vmul.f32 %v2802, %v377
    %v2825 = vmul.f32 %v2802, %v378
    %v2826 = vmul.f32 %v2802, %v379
    %v2827 = vmul.f32 %v2802, %v380
    %v2828 = vmul.f32 %v2802, %v381
    %v2829 = vmul.f32 %v2802, %v382
    %v2830 = vmul.f32 %v2802, %v383
    %v2831 = vmul.f32 %v2802, %v384
    %v2832 = vmul.f32 %v2802, %v385
    %v2833 = vmul.f32 %v2802, %v386
    %v2834 = vmul.f32 %v2802, %v387
    %v2835 = vmul.f32 %v2802, %v388
    %v2836 = vmul.f32 %v2802, %v389
    %v2837 = vmul.f32 %v2802, %v390
    %v2838 = vmul.f32 %v2802, %v391
    %v2839 = vmul.f32 %v2802, %v392
    %v2840 = vmul.f32 %v2802, %v393
    %v2841 = vmul.f32 %v2802, %v394
    %v2842 = vmul.f32 %v2802, %v395
    %v2843 = vmul.f32 %v2802, %v396
    %v2844 = vmul.f32 %v2802, %v397
    %v2845 = vmul.f32 %v2802, %v398
    %v2846 = vmul.f32 %v2802, %v399
    %v2847 = vmul.f32 %v2802, %v400
    %v2848 = vmul.f32 %v2802, %v401
    %v2849 = vmul.f32 %v2802, %v402
    %v2850 = vmul.f32 %v2802, %v403
    %s2851 = sld [smem:[#allocation2 + $0x181]]
    %v2852 = vstv %s2851
    %v2853 = vmul.f32 %v2852, %v500
    %v2854 = vmul.f32 %v2852, %v501
    %v2855 = vmul.f32 %v2852, %v502
    %v2856 = vmul.f32 %v2852, %v503
    %v2857 = vmul.f32 %v2852, %v504
    %v2858 = vmul.f32 %v2852, %v505
    %v2859 = vmul.f32 %v2852, %v506
    %v2860 = vmul.f32 %v2852, %v507
    %v2861 = vmul.f32 %v2852, %v508
    %v2862 = vmul.f32 %v2852, %v509
    %v2863 = vmul.f32 %v2852, %v510
    %v2864 = vmul.f32 %v2852, %v511
    %v2865 = vmul.f32 %v2852, %v512
    %v2866 = vmul.f32 %v2852, %v513
    %v2867 = vmul.f32 %v2852, %v514
    %v2868 = vmul.f32 %v2852, %v515
    %v2869 = vmul.f32 %v2852, %v516
    %v2870 = vmul.f32 %v2852, %v517
    %v2871 = vmul.f32 %v2852, %v518
    %v2872 = vmul.f32 %v2852, %v519
    %v2873 = vmul.f32 %v2852, %v520
    %v2874 = vmul.f32 %v2852, %v521
    %v2875 = vmul.f32 %v2852, %v522
    %v2876 = vmul.f32 %v2852, %v523
    %v2877 = vmul.f32 %v2852, %v524
    %v2878 = vmul.f32 %v2852, %v525
    %v2879 = vmul.f32 %v2852, %v526
    %v2880 = vmul.f32 %v2852, %v527
    %v2881 = vmul.f32 %v2852, %v528
    %v2882 = vmul.f32 %v2852, %v529
    %v2883 = vmul.f32 %v2852, %v530
    %v2884 = vmul.f32 %v2852, %v531
    %v2885 = vmul.f32 %v2852, %v532
    %v2886 = vmul.f32 %v2852, %v533
    %v2887 = vmul.f32 %v2852, %v534
    %v2888 = vmul.f32 %v2852, %v535
    %v2889 = vmul.f32 %v2852, %v536
    %v2890 = vmul.f32 %v2852, %v537
    %v2891 = vmul.f32 %v2852, %v538
    %v2892 = vmul.f32 %v2852, %v539
    %v2893 = vmul.f32 %v2852, %v540
    %v2894 = vmul.f32 %v2852, %v541
    %v2895 = vmul.f32 %v2852, %v542
    %v2896 = vmul.f32 %v2852, %v543
    %v2897 = vmul.f32 %v2852, %v544
    %v2898 = vmul.f32 %v2852, %v545
    %v2899 = vmul.f32 %v2852, %v546
    %v2900 = vmul.f32 %v2852, %v547
    %v2901 = vadd.f32 %v2803, %v2853
    %v2902 = vadd.f32 %v2804, %v2854
    %v2903 = vadd.f32 %v2805, %v2855
    %v2904 = vadd.f32 %v2806, %v2856
    %v2905 = vadd.f32 %v2807, %v2857
    %v2906 = vadd.f32 %v2808, %v2858
    %v2907 = vadd.f32 %v2809, %v2859
    %v2908 = vadd.f32 %v2810, %v2860
    %v2909 = vadd.f32 %v2811, %v2861
    %v2910 = vadd.f32 %v2812, %v2862
    %v2911 = vadd.f32 %v2813, %v2863
    %v2912 = vadd.f32 %v2814, %v2864
    %v2913 = vadd.f32 %v2815, %v2865
    %v2914 = vadd.f32 %v2816, %v2866
    %v2915 = vadd.f32 %v2817, %v2867
    %v2916 = vadd.f32 %v2818, %v2868
    %v2917 = vadd.f32 %v2819, %v2869
    %v2918 = vadd.f32 %v2820, %v2870
    %v2919 = vadd.f32 %v2821, %v2871
    %v2920 = vadd.f32 %v2822, %v2872
    %v2921 = vadd.f32 %v2823, %v2873
    %v2922 = vadd.f32 %v2824, %v2874
    %v2923 = vadd.f32 %v2825, %v2875
    %v2924 = vadd.f32 %v2826, %v2876
    %v2925 = vadd.f32 %v2827, %v2877
    %v2926 = vadd.f32 %v2828, %v2878
    %v2927 = vadd.f32 %v2829, %v2879
    %v2928 = vadd.f32 %v2830, %v2880
    %v2929 = vadd.f32 %v2831, %v2881
    %v2930 = vadd.f32 %v2832, %v2882
    %v2931 = vadd.f32 %v2833, %v2883
    %v2932 = vadd.f32 %v2834, %v2884
    %v2933 = vadd.f32 %v2835, %v2885
    %v2934 = vadd.f32 %v2836, %v2886
    %v2935 = vadd.f32 %v2837, %v2887
    %v2936 = vadd.f32 %v2838, %v2888
    %v2937 = vadd.f32 %v2839, %v2889
    %v2938 = vadd.f32 %v2840, %v2890
    %v2939 = vadd.f32 %v2841, %v2891
    %v2940 = vadd.f32 %v2842, %v2892
    %v2941 = vadd.f32 %v2843, %v2893
    %v2942 = vadd.f32 %v2844, %v2894
    %v2943 = vadd.f32 %v2845, %v2895
    %v2944 = vadd.f32 %v2846, %v2896
    %v2945 = vadd.f32 %v2847, %v2897
    %v2946 = vadd.f32 %v2848, %v2898
    %v2947 = vadd.f32 %v2849, %v2899
    %v2948 = vadd.f32 %v2850, %v2900
    %s2949 = sld [smem:[#allocation2 + $0x182]]
    %v2950 = vstv %s2949
    %v2951 = vmul.f32 %v2950, %v668
    %v2952 = vmul.f32 %v2950, %v669
    %v2953 = vmul.f32 %v2950, %v670
    %v2954 = vmul.f32 %v2950, %v671
    %v2955 = vmul.f32 %v2950, %v672
    %v2956 = vmul.f32 %v2950, %v673
    %v2957 = vmul.f32 %v2950, %v674
    %v2958 = vmul.f32 %v2950, %v675
    %v2959 = vmul.f32 %v2950, %v676
    %v2960 = vmul.f32 %v2950, %v677
    %v2961 = vmul.f32 %v2950, %v678
    %v2962 = vmul.f32 %v2950, %v679
    %v2963 = vmul.f32 %v2950, %v680
    %v2964 = vmul.f32 %v2950, %v681
    %v2965 = vmul.f32 %v2950, %v682
    %v2966 = vmul.f32 %v2950, %v683
    %v2967 = vmul.f32 %v2950, %v684
    %v2968 = vmul.f32 %v2950, %v685
    %v2969 = vmul.f32 %v2950, %v686
    %v2970 = vmul.f32 %v2950, %v687
    %v2971 = vmul.f32 %v2950, %v688
    %v2972 = vmul.f32 %v2950, %v689
    %v2973 = vmul.f32 %v2950, %v690
    %v2974 = vmul.f32 %v2950, %v691
    %v2975 = vmul.f32 %v2950, %v692
    %v2976 = vmul.f32 %v2950, %v693
    %v2977 = vmul.f32 %v2950, %v694
    %v2978 = vmul.f32 %v2950, %v695
    %v2979 = vmul.f32 %v2950, %v696
    %v2980 = vmul.f32 %v2950, %v697
    %v2981 = vmul.f32 %v2950, %v698
    %v2982 = vmul.f32 %v2950, %v699
    %v2983 = vmul.f32 %v2950, %v700
    %v2984 = vmul.f32 %v2950, %v701
    %v2985 = vmul.f32 %v2950, %v702
    %v2986 = vmul.f32 %v2950, %v703
    %v2987 = vmul.f32 %v2950, %v704
    %v2988 = vmul.f32 %v2950, %v705
    %v2989 = vmul.f32 %v2950, %v706
    %v2990 = vmul.f32 %v2950, %v707
    %v2991 = vmul.f32 %v2950, %v708
    %v2992 = vmul.f32 %v2950, %v709
    %v2993 = vmul.f32 %v2950, %v710
    %v2994 = vmul.f32 %v2950, %v711
    %v2995 = vmul.f32 %v2950, %v712
    %v2996 = vmul.f32 %v2950, %v713
    %v2997 = vmul.f32 %v2950, %v714
    %v2998 = vmul.f32 %v2950, %v715
    %v2999 = vadd.f32 %v2901, %v2951
    %v3000 = vadd.f32 %v2902, %v2952
    %v3001 = vadd.f32 %v2903, %v2953
    %v3002 = vadd.f32 %v2904, %v2954
    %v3003 = vadd.f32 %v2905, %v2955
    %v3004 = vadd.f32 %v2906, %v2956
    %v3005 = vadd.f32 %v2907, %v2957
    %v3006 = vadd.f32 %v2908, %v2958
    %v3007 = vadd.f32 %v2909, %v2959
    %v3008 = vadd.f32 %v2910, %v2960
    %v3009 = vadd.f32 %v2911, %v2961
    %v3010 = vadd.f32 %v2912, %v2962
    %v3011 = vadd.f32 %v2913, %v2963
    %v3012 = vadd.f32 %v2914, %v2964
    %v3013 = vadd.f32 %v2915, %v2965
    %v3014 = vadd.f32 %v2916, %v2966
    %v3015 = vadd.f32 %v2917, %v2967
    %v3016 = vadd.f32 %v2918, %v2968
    %v3017 = vadd.f32 %v2919, %v2969
    %v3018 = vadd.f32 %v2920, %v2970
    %v3019 = vadd.f32 %v2921, %v2971
    %v3020 = vadd.f32 %v2922, %v2972
    %v3021 = vadd.f32 %v2923, %v2973
    %v3022 = vadd.f32 %v2924, %v2974
    %v3023 = vadd.f32 %v2925, %v2975
    %v3024 = vadd.f32 %v2926, %v2976
    %v3025 = vadd.f32 %v2927, %v2977
    %v3026 = vadd.f32 %v2928, %v2978
    %v3027 = vadd.f32 %v2929, %v2979
    %v3028 = vadd.f32 %v2930, %v2980
    %v3029 = vadd.f32 %v2931, %v2981
    %v3030 = vadd.f32 %v2932, %v2982
    %v3031 = vadd.f32 %v2933, %v2983
    %v3032 = vadd.f32 %v2934, %v2984
    %v3033 = vadd.f32 %v2935, %v2985
    %v3034 = vadd.f32 %v2936, %v2986
    %v3035 = vadd.f32 %v2937, %v2987
    %v3036 = vadd.f32 %v2938, %v2988
    %v3037 = vadd.f32 %v2939, %v2989
    %v3038 = vadd.f32 %v2940, %v2990
    %v3039 = vadd.f32 %v2941, %v2991
    %v3040 = vadd.f32 %v2942, %v2992
    %v3041 = vadd.f32 %v2943, %v2993
    %v3042 = vadd.f32 %v2944, %v2994
    %v3043 = vadd.f32 %v2945, %v2995
    %v3044 = vadd.f32 %v2946, %v2996
    %v3045 = vadd.f32 %v2947, %v2997
    %v3046 = vadd.f32 %v2948, %v2998
    %v3051 = vsel %vm970, %v2799, %v2797
    %v3052 = vsel %vm970, %v2800, %v2798
    %v3054 = vsel %vm74, %v3052, 0
    %3056 = vmatprep.subr.mxu0 %v3030
    %3057 = vmatpush1.msra.mxu0 %v3029
    %3058 = vmatprep.subr.mxu0 %v3028
    %3059 = vmatpush1.msra.mxu0 %v3027
    %3060 = vmatprep.subr.mxu0 %v3026
    %3061 = vmatpush1.msra.mxu0 %v3025
    %3062 = vmatprep.subr.mxu0 %v3024
    %3063 = vmatpush1.msra.mxu0 %v3023
    %3064 = vmatprep.subr.mxu0 %v3022
    %3065 = vmatpush1.msra.mxu0 %v3021
    %3066 = vmatprep.subr.mxu0 %v3020
    %3067 = vmatpush1.msra.mxu0 %v3019
    %3068 = vmatprep.subr.mxu0 %v3018
    %3069 = vmatpush1.msra.mxu0 %v3017
    %3070 = vmatprep.subr.mxu0 %v3016
    %3071 = vmatpush1.msra.mxu0 %v3015
    %3072 = vmatprep.subr.mxu0 %v3014
    %3073 = vmatpush1.msra.mxu0 %v3013
    %3074 = vmatprep.subr.mxu0 %v3012
    %3075 = vmatpush1.msra.mxu0 %v3011
    %3076 = vmatprep.subr.mxu0 %v3010
    %3077 = vmatpush1.msra.mxu0 %v3009
    %3078 = vmatprep.subr.mxu0 %v3008
    %3079 = vmatpush1.msra.mxu0 %v3007
    %3080 = vmatprep.subr.mxu0 %v3006
    %3081 = vmatpush1.msra.mxu0 %v3005
    %3082 = vmatprep.subr.mxu0 %v3004
    %3083 = vmatpush1.msra.mxu0 %v3003
    %3084 = vmatprep.subr.mxu0 %v3002
    %3085 = vmatpush1.msra.mxu0 %v3001
    %3086 = vmatprep.subr.mxu0 %v3000
    %3087 = vmatpush1.msra.mxu0 %v2999
    %3088 = vmatprep.subr.mxu0 0.0
    %3089 = vmatpush2.msra.mxu0 0.0
    %3090 = vmatprep.subr.mxu0 0.0
    %3091 = vmatpush2.msra.mxu0 0.0
    %3092 = vmatprep.subr.mxu0 0.0
    %3093 = vmatpush2.msra.mxu0 0.0
    %3094 = vmatprep.subr.mxu0 0.0
    %3095 = vmatpush2.msra.mxu0 0.0
    %3096 = vmatprep.subr.mxu0 0.0
    %3097 = vmatpush2.msra.mxu0 0.0
    %3098 = vmatprep.subr.mxu0 0.0
    %3099 = vmatpush2.msra.mxu0 0.0
    %3100 = vmatprep.subr.mxu0 0.0
    %3101 = vmatpush2.msra.mxu0 0.0
    %3102 = vmatprep.subr.mxu0 0.0
    %3103 = vmatpush2.msra.mxu0 0.0
    %3104 = vmatprep.subr.mxu0 %v3046
    %3105 = vmatpush2.msra.mxu0 %v3045
    %3106 = vmatprep.subr.mxu0 %v3044
    %3107 = vmatpush2.msra.mxu0 %v3043
    %3108 = vmatprep.subr.mxu0 %v3042
    %3109 = vmatpush2.msra.mxu0 %v3041
    %3110 = vmatprep.subr.mxu0 %v3040
    %3111 = vmatpush2.msra.mxu0 %v3039
    %3112 = vmatprep.subr.mxu0 %v3038
    %3113 = vmatpush2.msra.mxu0 %v3037
    %3114 = vmatprep.subr.mxu0 %v3036
    %3115 = vmatpush2.msra.mxu0 %v3035
    %3116 = vmatprep.subr.mxu0 %v3034
    %3117 = vmatpush2.msra.mxu0 %v3033
    %3118 = vmatprep.subr.mxu0 %v3032
    %3119 = vmatpush2.msra.mxu0 %v3031
    %3120 = vmatprep.mubr.f32.mxu0 %v3054
    %3121 = vmatmul.mubr.f32.gmra.mxu0 %v3051
    %v3122 = vpop.f32.mrf.mxu0
    %v3123 = vadd.f32 0.0, %v3122
    %v3124 = vpop.f32.mrf.mxu0
    %v3125 = vadd.f32 0.0, %v3124
    %3126 = vdwg.mxu0
    %v3127 = vxor.u32 %v3123, 2147483648
    %v3128 = vxor.u32 %v3125, 2147483648
    %v3129 = vmul.f32 %v3127, 1.442695
    %v3130 = vpow.pop %v3129
    %v3131 = vmul.f32 %v3128, 1.442695
    %v3132 = vpow.pop %v3131
    %v3133 = vadd.f32 %v3130, 1.0
    %v3134 = vadd.f32 %v3132, 1.0
    %v3135 = vrcp.pop %v3133
    %v3136 = vmul.f32 1.0, %v3135
    %v3137 = vrcp.pop %v3134
    %v3138 = vmul.f32 1.0, %v3137
    %v3141 = vrot.slane %v3136, 1
    %v3142 = vrot.slane %v3138, 1
    %v3147 = vmul.f32 %v2797, %v3136
    %v3148 = vmul.f32 %v2798, %v3138
    %v3149 = vmul.f32 %v2799, %v3141
    %v3150 = vmul.f32 %v2800, %v3142
    %v3151 = vpack.c.bf16 %v3147, %v3147
    %v3152 = vpack.c.bf16 %v3148, %v3148
    %v3153 = vpack.c.bf16 %v3149, %v3149
    %v3154 = vpack.c.bf16 %v3150, %v3150
    %s3155 = scalar_lea.vmem %s2, 576
    %v3156 = vld [vmem:[%s3155] sm:$0xff]
    %v3157 = vld [vmem:[%s3155 + $0x8] sm:$0xff]
    %v3158 = vld [vmem:[%s3155 + $0x10] sm:$0xff]
    %v3159 = vld [vmem:[%s3155 + $0x18] sm:$0xff]
    %v3160 = vld [vmem:[%s3155 + $0x20] sm:$0xff]
    %v3161 = vld [vmem:[%s3155 + $0x28] sm:$0xff]
    %v3162 = vld [vmem:[%s3155 + $0x30] sm:$0xff]
    %v3163 = vld [vmem:[%s3155 + $0x38] sm:$0xff]
    %v3164 = vld [vmem:[%s3155 + $0x40] sm:$0xff]
    %v3165 = vld [vmem:[%s3155 + $0x48] sm:$0xff]
    %v3166 = vld [vmem:[%s3155 + $0x50] sm:$0xff]
    %v3167 = vld [vmem:[%s3155 + $0x58] sm:$0xff]
    %v3168 = vld [vmem:[%s3155 + $0x60] sm:$0xff]
    %v3169 = vld [vmem:[%s3155 + $0x68] sm:$0xff]
    %v3170 = vld [vmem:[%s3155 + $0x70] sm:$0xff]
    %v3171 = vld [vmem:[%s3155 + $0x78] sm:$0xff]
    %v3172 = vld [vmem:[%s3155 + $0x80] sm:$0xff]
    %v3173 = vld [vmem:[%s3155 + $0x88] sm:$0xff]
    %v3174 = vld [vmem:[%s3155 + $0x90] sm:$0xff]
    %v3175 = vld [vmem:[%s3155 + $0x98] sm:$0xff]
    %v3176 = vld [vmem:[%s3155 + $0xa0] sm:$0xff]
    %v3177 = vld [vmem:[%s3155 + $0xa8] sm:$0xff]
    %v3178 = vld [vmem:[%s3155 + $0xb0] sm:$0xff]
    %v3179 = vld [vmem:[%s3155 + $0xb8] sm:$0xff]
    %s3180 = scalar_lea.vmem %s3, 6
    %v3181 = vld [vmem:[%s3180] sm:$0x3]
    %v3183 = vlaneseq
    %v3184 = vshrl.u32 %v3183, 7
    %v3185 = vsub.s32 0, %v3184
    %v3186 = vrot.slane %v3181, %v3185
    %v3187 = vlaneseq
    %v3188 = vshrl.u32 %v3187, 7
    %v3189 = vsub.s32 1, %v3188
    %v3190 = vrot.slane %v3181, %v3189
    %v3197 = vunpack.c.l.b16 %v3151
    %v3198 = vunpack.c.l.b16 %v3152
    %v3199 = vunpack.c.l.b16 %v3153
    %v3200 = vunpack.c.l.b16 %v3154
    %v3201 = vrot.slane %v3199, 7
    %v3202 = vsel %vm970, %v3201, %v3197
    %v3203 = vrot.slane %v3200, 7
    %v3204 = vsel %vm970, %v3203, %v3198
    %v3205 = vpack.c.b16 %v3202, %v3202
    %v3206 = vpack.c.b16 %v3204, %v3204
    %v3232 = vunpack.c.l.b16 %v3156
    %v3233 = vunpack.c.h.b16 %v3156
    %v3234 = vunpack.c.l.b16 %v3157
    %v3235 = vunpack.c.h.b16 %v3157
    %v3236 = vunpack.c.l.b16 %v3158
    %v3237 = vunpack.c.h.b16 %v3158
    %v3238 = vunpack.c.l.b16 %v3159
    %v3239 = vunpack.c.h.b16 %v3159
    %v3240 = vunpack.c.l.b16 %v3160
    %v3241 = vunpack.c.h.b16 %v3160
    %v3242 = vunpack.c.l.b16 %v3161
    %v3243 = vunpack.c.h.b16 %v3161
    %v3244 = vunpack.c.l.b16 %v3162
    %v3245 = vunpack.c.h.b16 %v3162
    %v3246 = vunpack.c.l.b16 %v3163
    %v3247 = vunpack.c.h.b16 %v3163
    %v3248 = vunpack.c.l.b16 %v3164
    %v3249 = vunpack.c.h.b16 %v3164
    %v3250 = vunpack.c.l.b16 %v3165
    %v3251 = vunpack.c.h.b16 %v3165
    %v3252 = vunpack.c.l.b16 %v3166
    %v3253 = vunpack.c.h.b16 %v3166
    %v3254 = vunpack.c.l.b16 %v3167
    %v3255 = vunpack.c.h.b16 %v3167
    %v3256 = vunpack.c.l.b16 %v3168
    %v3257 = vunpack.c.h.b16 %v3168
    %v3258 = vunpack.c.l.b16 %v3169
    %v3259 = vunpack.c.h.b16 %v3169
    %v3260 = vunpack.c.l.b16 %v3170
    %v3261 = vunpack.c.h.b16 %v3170
    %v3262 = vunpack.c.l.b16 %v3171
    %v3263 = vunpack.c.h.b16 %v3171
    %v3264 = vunpack.c.l.b16 %v3172
    %v3265 = vunpack.c.h.b16 %v3172
    %v3266 = vunpack.c.l.b16 %v3173
    %v3267 = vunpack.c.h.b16 %v3173
    %v3268 = vunpack.c.l.b16 %v3174
    %v3269 = vunpack.c.h.b16 %v3174
    %v3270 = vunpack.c.l.b16 %v3175
    %v3271 = vunpack.c.h.b16 %v3175
    %v3272 = vunpack.c.l.b16 %v3176
    %v3273 = vunpack.c.h.b16 %v3176
    %v3274 = vunpack.c.l.b16 %v3177
    %v3275 = vunpack.c.h.b16 %v3177
    %v3276 = vunpack.c.l.b16 %v3178
    %v3277 = vunpack.c.h.b16 %v3178
    %v3278 = vunpack.c.l.b16 %v3179
    %v3279 = vunpack.c.h.b16 %v3179
    %v3280 = vpack.c.b16 %v3234, %v3232
    %v3281 = vpack.c.b16 %v3235, %v3233
    %v3282 = vpack.c.b16 %v3238, %v3236
    %v3283 = vpack.c.b16 %v3239, %v3237
    %v3284 = vpack.c.b16 %v3242, %v3240
    %v3285 = vpack.c.b16 %v3243, %v3241
    %v3286 = vpack.c.b16 %v3246, %v3244
    %v3287 = vpack.c.b16 %v3247, %v3245
    %v3288 = vpack.c.b16 %v3250, %v3248
    %v3289 = vpack.c.b16 %v3251, %v3249
    %v3290 = vpack.c.b16 %v3254, %v3252
    %v3291 = vpack.c.b16 %v3255, %v3253
    %v3292 = vpack.c.b16 %v3258, %v3256
    %v3293 = vpack.c.b16 %v3259, %v3257
    %v3294 = vpack.c.b16 %v3262, %v3260
    %v3295 = vpack.c.b16 %v3263, %v3261
    %v3296 = vpack.c.b16 %v3266, %v3264
    %v3297 = vpack.c.b16 %v3267, %v3265
    %v3298 = vpack.c.b16 %v3270, %v3268
    %v3299 = vpack.c.b16 %v3271, %v3269
    %v3300 = vpack.c.b16 %v3274, %v3272
    %v3301 = vpack.c.b16 %v3275, %v3273
    %v3302 = vpack.c.b16 %v3278, %v3276
    %v3303 = vpack.c.b16 %v3279, %v3277
    %v3329 = vsel %vm74, %v3206, 0
    %3331 = vmatprep.subr.bf16.mxu0 %v3295
    %3332 = vmatpush1.bf16.msra.mxu0 %v3294
    %3333 = vmatprep.subr.bf16.mxu0 %v3293
    %3334 = vmatpush1.bf16.msra.mxu0 %v3292
    %3335 = vmatprep.subr.bf16.mxu0 %v3291
    %3336 = vmatpush1.bf16.msra.mxu0 %v3290
    %3337 = vmatprep.subr.bf16.mxu0 %v3289
    %3338 = vmatpush1.bf16.msra.mxu0 %v3288
    %3339 = vmatprep.subr.bf16.mxu0 %v3287
    %3340 = vmatpush1.bf16.msra.mxu0 %v3286
    %3341 = vmatprep.subr.bf16.mxu0 %v3285
    %3342 = vmatpush1.bf16.msra.mxu0 %v3284
    %3343 = vmatprep.subr.bf16.mxu0 %v3283
    %3344 = vmatpush1.bf16.msra.mxu0 %v3282
    %3345 = vmatprep.subr.bf16.mxu0 %v3281
    %3346 = vmatpush1.bf16.msra.mxu0 %v3280
    %3347 = vmatprep.subr.bf16.mxu0 0
    %3348 = vmatpush2.bf16.msra.mxu0 0
    %3349 = vmatprep.subr.bf16.mxu0 0
    %3350 = vmatpush2.bf16.msra.mxu0 0
    %3351 = vmatprep.subr.bf16.mxu0 0
    %3352 = vmatpush2.bf16.msra.mxu0 0
    %3353 = vmatprep.subr.bf16.mxu0 0
    %3354 = vmatpush2.bf16.msra.mxu0 0
    %3355 = vmatprep.subr.bf16.mxu0 %v3303
    %3356 = vmatpush2.bf16.msra.mxu0 %v3302
    %3357 = vmatprep.subr.bf16.mxu0 %v3301
    %3358 = vmatpush2.bf16.msra.mxu0 %v3300
    %3359 = vmatprep.subr.bf16.mxu0 %v3299
    %3360 = vmatpush2.bf16.msra.mxu0 %v3298
    %3361 = vmatprep.subr.bf16.mxu0 %v3297
    %3362 = vmatpush2.bf16.msra.mxu0 %v3296
    %3363 = vmatprep.mubr.bf16.mxu0 %v3329
    %3364 = vmatmul.mubr.bf16.gmra.mxu0 %v3205
    %v3365 = vpop.f32.mrf.mxu0
    %v3366 = vadd.f32 %v3186, %v3365
    %v3367 = vpop.f32.mrf.mxu0
    %v3368 = vadd.f32 %v3190, %v3367
    %v3369 = vpop.f32.mrf.mxu0
    %v3370 = vpop.f32.mrf.mxu0
    %3371 = vdwg.mxu0
    %v3372 = vmax.f32 %v3366, 0.0
    %v3373 = vmax.f32 %v3368, 0.0
    %v3374 = vmul.f32 %v3372, %v3372
    %v3375 = vmul.f32 %v3373, %v3373
    %v3376 = vsel %vm1294, %v3374, 0.0
    %v3377 = vsel %vm1294, %v3375, 0.0
    %v3378 = vadd.f32 %v3376, %v3377
    %3379 = vadd.xlane.f32.xlu0 %v3378
    %v3380 = vpop.xlane.xlu0 %3379
    %v3381 = vmax.f32 %v3380, 1e-24
    %v3382 = vrsqrt.pop %v3381
    %v3383 = vmul.f32 %v3372, %v3382
    %v3384 = vmul.f32 %v3373, %v3382
    %s3385 = scalar_lea.vmem %s4, 768
    %v3386 = vld [vmem:[%s3385] sm:$0xff]
    %v3387 = vld [vmem:[%s3385 + $0x8] sm:$0xff]
    %v3388 = vld [vmem:[%s3385 + $0x10] sm:$0xff]
    %v3389 = vld [vmem:[%s3385 + $0x18] sm:$0xff]
    %v3390 = vld [vmem:[%s3385 + $0x20] sm:$0xff]
    %v3391 = vld [vmem:[%s3385 + $0x28] sm:$0xff]
    %v3392 = vld [vmem:[%s3385 + $0x30] sm:$0xff]
    %v3393 = vld [vmem:[%s3385 + $0x38] sm:$0xff]
    %v3394 = vld [vmem:[%s3385 + $0x40] sm:$0xff]
    %v3395 = vld [vmem:[%s3385 + $0x48] sm:$0xff]
    %v3396 = vld [vmem:[%s3385 + $0x50] sm:$0xff]
    %v3397 = vld [vmem:[%s3385 + $0x58] sm:$0xff]
    %v3398 = vld [vmem:[%s3385 + $0x60] sm:$0xff]
    %v3399 = vld [vmem:[%s3385 + $0x68] sm:$0xff]
    %v3400 = vld [vmem:[%s3385 + $0x70] sm:$0xff]
    %v3401 = vld [vmem:[%s3385 + $0x78] sm:$0xff]
    %v3402 = vld [vmem:[%s3385 + $0x80] sm:$0xff]
    %v3403 = vld [vmem:[%s3385 + $0x88] sm:$0xff]
    %v3404 = vld [vmem:[%s3385 + $0x90] sm:$0xff]
    %v3405 = vld [vmem:[%s3385 + $0x98] sm:$0xff]
    %v3406 = vld [vmem:[%s3385 + $0xa0] sm:$0xff]
    %v3407 = vld [vmem:[%s3385 + $0xa8] sm:$0xff]
    %v3408 = vld [vmem:[%s3385 + $0xb0] sm:$0xff]
    %v3409 = vld [vmem:[%s3385 + $0xb8] sm:$0xff]
    %v3410 = vld [vmem:[%s3385 + $0xc0] sm:$0xff]
    %v3411 = vld [vmem:[%s3385 + $0xc8] sm:$0xff]
    %v3412 = vld [vmem:[%s3385 + $0xd0] sm:$0xff]
    %v3413 = vld [vmem:[%s3385 + $0xd8] sm:$0xff]
    %v3414 = vld [vmem:[%s3385 + $0xe0] sm:$0xff]
    %v3415 = vld [vmem:[%s3385 + $0xe8] sm:$0xff]
    %v3416 = vld [vmem:[%s3385 + $0xf0] sm:$0xff]
    %v3417 = vld [vmem:[%s3385 + $0xf8] sm:$0xff]
    %3418 = vmatprep.subr.mxu0 0.0
    %3419 = vmatpush1.msra.mxu0 %v3401
    %3420 = vmatprep.subr.mxu0 0.0
    %3421 = vmatpush1.msra.mxu0 %v3400
    %3422 = vmatprep.subr.mxu0 0.0
    %3423 = vmatpush1.msra.mxu0 %v3399
    %3424 = vmatprep.subr.mxu0 0.0
    %3425 = vmatpush1.msra.mxu0 %v3398
    %3426 = vmatprep.subr.mxu0 0.0
    %3427 = vmatpush1.msra.mxu0 %v3397
    %3428 = vmatprep.subr.mxu0 0.0
    %3429 = vmatpush1.msra.mxu0 %v3396
    %3430 = vmatprep.subr.mxu0 0.0
    %3431 = vmatpush1.msra.mxu0 %v3395
    %3432 = vmatprep.subr.mxu0 0.0
    %3433 = vmatpush1.msra.mxu0 %v3394
    %3434 = vmatprep.subr.mxu0 0.0
    %3435 = vmatpush1.msra.mxu0 %v3393
    %3436 = vmatprep.subr.mxu0 0.0
    %3437 = vmatpush1.msra.mxu0 %v3392
    %3438 = vmatprep.subr.mxu0 0.0
    %3439 = vmatpush1.msra.mxu0 %v3391
    %3440 = vmatprep.subr.mxu0 0.0
    %3441 = vmatpush1.msra.mxu0 %v3390
    %3442 = vmatprep.subr.mxu0 0.0
    %3443 = vmatpush1.msra.mxu0 %v3389
    %3444 = vmatprep.subr.mxu0 0.0
    %3445 = vmatpush1.msra.mxu0 %v3388
    %3446 = vmatprep.subr.mxu0 0.0
    %3447 = vmatpush1.msra.mxu0 %v3387
    %3448 = vmatprep.subr.mxu0 0.0
    %3449 = vmatpush1.msra.mxu0 %v3386
    %3450 = vmatprep.subr.mxu0 0.0
    %3451 = vmatpush2.msra.mxu0 %v3417
    %3452 = vmatprep.subr.mxu0 0.0
    %3453 = vmatpush2.msra.mxu0 %v3416
    %3454 = vmatprep.subr.mxu0 0.0
    %3455 = vmatpush2.msra.mxu0 %v3415
    %3456 = vmatprep.subr.mxu0 0.0
    %3457 = vmatpush2.msra.mxu0 %v3414
    %3458 = vmatprep.subr.mxu0 0.0
    %3459 = vmatpush2.msra.mxu0 %v3413
    %3460 = vmatprep.subr.mxu0 0.0
    %3461 = vmatpush2.msra.mxu0 %v3412
    %3462 = vmatprep.subr.mxu0 0.0
    %3463 = vmatpush2.msra.mxu0 %v3411
    %3464 = vmatprep.subr.mxu0 0.0
    %3465 = vmatpush2.msra.mxu0 %v3410
    %3466 = vmatprep.subr.mxu0 0.0
    %3467 = vmatpush2.msra.mxu0 %v3409
    %3468 = vmatprep.subr.mxu0 0.0
    %3469 = vmatpush2.msra.mxu0 %v3408
    %3470 = vmatprep.subr.mxu0 0.0
    %3471 = vmatpush2.msra.mxu0 %v3407
    %3472 = vmatprep.subr.mxu0 0.0
    %3473 = vmatpush2.msra.mxu0 %v3406
    %3474 = vmatprep.subr.mxu0 0.0
    %3475 = vmatpush2.msra.mxu0 %v3405
    %3476 = vmatprep.subr.mxu0 0.0
    %3477 = vmatpush2.msra.mxu0 %v3404
    %3478 = vmatprep.subr.mxu0 0.0
    %3479 = vmatpush2.msra.mxu0 %v3403
    %3480 = vmatprep.subr.mxu0 0.0
    %3481 = vmatpush2.msra.mxu0 %v3402
    %3482 = vmatprep.mubr.f32.mxu0 %v3384
    %3483 = vmatmul.mubr.f32.gmra.mxu0 %v3383
    %v3484 = vpop.f32.mrf.mxu0
    %v3485 = vadd.f32 0.0, %v3484
    %v3486 = vpop.f32.mrf.mxu0
    %3487 = vdwg.mxu0
    %v3488 = vmul.f32 %v3485, 30.0
    %s3489 = scalar_lea.vmem [#allocation5], 6
    %3490 = vst.msk [vmem:[%s3489] sm:$0x3] %vm1407, %v3488
    %v3491 = vmul.f32 %v204, 0.015625
    %v3492 = vmul.f32 %v205, 0.015625
    %v3493 = vmul.f32 %v206, 0.015625
    %v3494 = vmul.f32 %v207, 0.015625
    %s3495 = sld [smem:[#allocation2 + $0x200]]
    %v3496 = vstv %s3495
    %v3497 = vmul.f32 %v3496, %v356
    %v3498 = vmul.f32 %v3496, %v357
    %v3499 = vmul.f32 %v3496, %v358
    %v3500 = vmul.f32 %v3496, %v359
    %v3501 = vmul.f32 %v3496, %v360
    %v3502 = vmul.f32 %v3496, %v361
    %v3503 = vmul.f32 %v3496, %v362
    %v3504 = vmul.f32 %v3496, %v363
    %v3505 = vmul.f32 %v3496, %v364
    %v3506 = vmul.f32 %v3496, %v365
    %v3507 = vmul.f32 %v3496, %v366
    %v3508 = vmul.f32 %v3496, %v367
    %v3509 = vmul.f32 %v3496, %v368
    %v3510 = vmul.f32 %v3496, %v369
    %v3511 = vmul.f32 %v3496, %v370
    %v3512 = vmul.f32 %v3496, %v371
    %v3513 = vmul.f32 %v3496, %v372
    %v3514 = vmul.f32 %v3496, %v373
    %v3515 = vmul.f32 %v3496, %v374
    %v3516 = vmul.f32 %v3496, %v375
    %v3517 = vmul.f32 %v3496, %v376
    %v3518 = vmul.f32 %v3496, %v377
    %v3519 = vmul.f32 %v3496, %v378
    %v3520 = vmul.f32 %v3496, %v379
    %v3521 = vmul.f32 %v3496, %v380
    %v3522 = vmul.f32 %v3496, %v381
    %v3523 = vmul.f32 %v3496, %v382
    %v3524 = vmul.f32 %v3496, %v383
    %v3525 = vmul.f32 %v3496, %v384
    %v3526 = vmul.f32 %v3496, %v385
    %v3527 = vmul.f32 %v3496, %v386
    %v3528 = vmul.f32 %v3496, %v387
    %v3529 = vmul.f32 %v3496, %v388
    %v3530 = vmul.f32 %v3496, %v389
    %v3531 = vmul.f32 %v3496, %v390
    %v3532 = vmul.f32 %v3496, %v391
    %v3533 = vmul.f32 %v3496, %v392
    %v3534 = vmul.f32 %v3496, %v393
    %v3535 = vmul.f32 %v3496, %v394
    %v3536 = vmul.f32 %v3496, %v395
    %v3537 = vmul.f32 %v3496, %v396
    %v3538 = vmul.f32 %v3496, %v397
    %v3539 = vmul.f32 %v3496, %v398
    %v3540 = vmul.f32 %v3496, %v399
    %v3541 = vmul.f32 %v3496, %v400
    %v3542 = vmul.f32 %v3496, %v401
    %v3543 = vmul.f32 %v3496, %v402
    %v3544 = vmul.f32 %v3496, %v403
    %s3545 = sld [smem:[#allocation2 + $0x201]]
    %v3546 = vstv %s3545
    %v3547 = vmul.f32 %v3546, %v500
    %v3548 = vmul.f32 %v3546, %v501
    %v3549 = vmul.f32 %v3546, %v502
    %v3550 = vmul.f32 %v3546, %v503
    %v3551 = vmul.f32 %v3546, %v504
    %v3552 = vmul.f32 %v3546, %v505
    %v3553 = vmul.f32 %v3546, %v506
    %v3554 = vmul.f32 %v3546, %v507
    %v3555 = vmul.f32 %v3546, %v508
    %v3556 = vmul.f32 %v3546, %v509
    %v3557 = vmul.f32 %v3546, %v510
    %v3558 = vmul.f32 %v3546, %v511
    %v3559 = vmul.f32 %v3546, %v512
    %v3560 = vmul.f32 %v3546, %v513
    %v3561 = vmul.f32 %v3546, %v514
    %v3562 = vmul.f32 %v3546, %v515
    %v3563 = vmul.f32 %v3546, %v516
    %v3564 = vmul.f32 %v3546, %v517
    %v3565 = vmul.f32 %v3546, %v518
    %v3566 = vmul.f32 %v3546, %v519
    %v3567 = vmul.f32 %v3546, %v520
    %v3568 = vmul.f32 %v3546, %v521
    %v3569 = vmul.f32 %v3546, %v522
    %v3570 = vmul.f32 %v3546, %v523
    %v3571 = vmul.f32 %v3546, %v524
    %v3572 = vmul.f32 %v3546, %v525
    %v3573 = vmul.f32 %v3546, %v526
    %v3574 = vmul.f32 %v3546, %v527
    %v3575 = vmul.f32 %v3546, %v528
    %v3576 = vmul.f32 %v3546, %v529
    %v3577 = vmul.f32 %v3546, %v530
    %v3578 = vmul.f32 %v3546, %v531
    %v3579 = vmul.f32 %v3546, %v532
    %v3580 = vmul.f32 %v3546, %v533
    %v3581 = vmul.f32 %v3546, %v534
    %v3582 = vmul.f32 %v3546, %v535
    %v3583 = vmul.f32 %v3546, %v536
    %v3584 = vmul.f32 %v3546, %v537
    %v3585 = vmul.f32 %v3546, %v538
    %v3586 = vmul.f32 %v3546, %v539
    %v3587 = vmul.f32 %v3546, %v540
    %v3588 = vmul.f32 %v3546, %v541
    %v3589 = vmul.f32 %v3546, %v542
    %v3590 = vmul.f32 %v3546, %v543
    %v3591 = vmul.f32 %v3546, %v544
    %v3592 = vmul.f32 %v3546, %v545
    %v3593 = vmul.f32 %v3546, %v546
    %v3594 = vmul.f32 %v3546, %v547
    %v3595 = vadd.f32 %v3497, %v3547
    %v3596 = vadd.f32 %v3498, %v3548
    %v3597 = vadd.f32 %v3499, %v3549
    %v3598 = vadd.f32 %v3500, %v3550
    %v3599 = vadd.f32 %v3501, %v3551
    %v3600 = vadd.f32 %v3502, %v3552
    %v3601 = vadd.f32 %v3503, %v3553
    %v3602 = vadd.f32 %v3504, %v3554
    %v3603 = vadd.f32 %v3505, %v3555
    %v3604 = vadd.f32 %v3506, %v3556
    %v3605 = vadd.f32 %v3507, %v3557
    %v3606 = vadd.f32 %v3508, %v3558
    %v3607 = vadd.f32 %v3509, %v3559
    %v3608 = vadd.f32 %v3510, %v3560
    %v3609 = vadd.f32 %v3511, %v3561
    %v3610 = vadd.f32 %v3512, %v3562
    %v3611 = vadd.f32 %v3513, %v3563
    %v3612 = vadd.f32 %v3514, %v3564
    %v3613 = vadd.f32 %v3515, %v3565
    %v3614 = vadd.f32 %v3516, %v3566
    %v3615 = vadd.f32 %v3517, %v3567
    %v3616 = vadd.f32 %v3518, %v3568
    %v3617 = vadd.f32 %v3519, %v3569
    %v3618 = vadd.f32 %v3520, %v3570
    %v3619 = vadd.f32 %v3521, %v3571
    %v3620 = vadd.f32 %v3522, %v3572
    %v3621 = vadd.f32 %v3523, %v3573
    %v3622 = vadd.f32 %v3524, %v3574
    %v3623 = vadd.f32 %v3525, %v3575
    %v3624 = vadd.f32 %v3526, %v3576
    %v3625 = vadd.f32 %v3527, %v3577
    %v3626 = vadd.f32 %v3528, %v3578
    %v3627 = vadd.f32 %v3529, %v3579
    %v3628 = vadd.f32 %v3530, %v3580
    %v3629 = vadd.f32 %v3531, %v3581
    %v3630 = vadd.f32 %v3532, %v3582
    %v3631 = vadd.f32 %v3533, %v3583
    %v3632 = vadd.f32 %v3534, %v3584
    %v3633 = vadd.f32 %v3535, %v3585
    %v3634 = vadd.f32 %v3536, %v3586
    %v3635 = vadd.f32 %v3537, %v3587
    %v3636 = vadd.f32 %v3538, %v3588
    %v3637 = vadd.f32 %v3539, %v3589
    %v3638 = vadd.f32 %v3540, %v3590
    %v3639 = vadd.f32 %v3541, %v3591
    %v3640 = vadd.f32 %v3542, %v3592
    %v3641 = vadd.f32 %v3543, %v3593
    %v3642 = vadd.f32 %v3544, %v3594
    %s3643 = sld [smem:[#allocation2 + $0x202]]
    %v3644 = vstv %s3643
    %v3645 = vmul.f32 %v3644, %v668
    %v3646 = vmul.f32 %v3644, %v669
    %v3647 = vmul.f32 %v3644, %v670
    %v3648 = vmul.f32 %v3644, %v671
    %v3649 = vmul.f32 %v3644, %v672
    %v3650 = vmul.f32 %v3644, %v673
    %v3651 = vmul.f32 %v3644, %v674
    %v3652 = vmul.f32 %v3644, %v675
    %v3653 = vmul.f32 %v3644, %v676
    %v3654 = vmul.f32 %v3644, %v677
    %v3655 = vmul.f32 %v3644, %v678
    %v3656 = vmul.f32 %v3644, %v679
    %v3657 = vmul.f32 %v3644, %v680
    %v3658 = vmul.f32 %v3644, %v681
    %v3659 = vmul.f32 %v3644, %v682
    %v3660 = vmul.f32 %v3644, %v683
    %v3661 = vmul.f32 %v3644, %v684
    %v3662 = vmul.f32 %v3644, %v685
    %v3663 = vmul.f32 %v3644, %v686
    %v3664 = vmul.f32 %v3644, %v687
    %v3665 = vmul.f32 %v3644, %v688
    %v3666 = vmul.f32 %v3644, %v689
    %v3667 = vmul.f32 %v3644, %v690
    %v3668 = vmul.f32 %v3644, %v691
    %v3669 = vmul.f32 %v3644, %v692
    %v3670 = vmul.f32 %v3644, %v693
    %v3671 = vmul.f32 %v3644, %v694
    %v3672 = vmul.f32 %v3644, %v695
    %v3673 = vmul.f32 %v3644, %v696
    %v3674 = vmul.f32 %v3644, %v697
    %v3675 = vmul.f32 %v3644, %v698
    %v3676 = vmul.f32 %v3644, %v699
    %v3677 = vmul.f32 %v3644, %v700
    %v3678 = vmul.f32 %v3644, %v701
    %v3679 = vmul.f32 %v3644, %v702
    %v3680 = vmul.f32 %v3644, %v703
    %v3681 = vmul.f32 %v3644, %v704
    %v3682 = vmul.f32 %v3644, %v705
    %v3683 = vmul.f32 %v3644, %v706
    %v3684 = vmul.f32 %v3644, %v707
    %v3685 = vmul.f32 %v3644, %v708
    %v3686 = vmul.f32 %v3644, %v709
    %v3687 = vmul.f32 %v3644, %v710
    %v3688 = vmul.f32 %v3644, %v711
    %v3689 = vmul.f32 %v3644, %v712
    %v3690 = vmul.f32 %v3644, %v713
    %v3691 = vmul.f32 %v3644, %v714
    %v3692 = vmul.f32 %v3644, %v715
    %v3693 = vadd.f32 %v3595, %v3645
    %v3694 = vadd.f32 %v3596, %v3646
    %v3695 = vadd.f32 %v3597, %v3647
    %v3696 = vadd.f32 %v3598, %v3648
    %v3697 = vadd.f32 %v3599, %v3649
    %v3698 = vadd.f32 %v3600, %v3650
    %v3699 = vadd.f32 %v3601, %v3651
    %v3700 = vadd.f32 %v3602, %v3652
    %v3701 = vadd.f32 %v3603, %v3653
    %v3702 = vadd.f32 %v3604, %v3654
    %v3703 = vadd.f32 %v3605, %v3655
    %v3704 = vadd.f32 %v3606, %v3656
    %v3705 = vadd.f32 %v3607, %v3657
    %v3706 = vadd.f32 %v3608, %v3658
    %v3707 = vadd.f32 %v3609, %v3659
    %v3708 = vadd.f32 %v3610, %v3660
    %v3709 = vadd.f32 %v3611, %v3661
    %v3710 = vadd.f32 %v3612, %v3662
    %v3711 = vadd.f32 %v3613, %v3663
    %v3712 = vadd.f32 %v3614, %v3664
    %v3713 = vadd.f32 %v3615, %v3665
    %v3714 = vadd.f32 %v3616, %v3666
    %v3715 = vadd.f32 %v3617, %v3667
    %v3716 = vadd.f32 %v3618, %v3668
    %v3717 = vadd.f32 %v3619, %v3669
    %v3718 = vadd.f32 %v3620, %v3670
    %v3719 = vadd.f32 %v3621, %v3671
    %v3720 = vadd.f32 %v3622, %v3672
    %v3721 = vadd.f32 %v3623, %v3673
    %v3722 = vadd.f32 %v3624, %v3674
    %v3723 = vadd.f32 %v3625, %v3675
    %v3724 = vadd.f32 %v3626, %v3676
    %v3725 = vadd.f32 %v3627, %v3677
    %v3726 = vadd.f32 %v3628, %v3678
    %v3727 = vadd.f32 %v3629, %v3679
    %v3728 = vadd.f32 %v3630, %v3680
    %v3729 = vadd.f32 %v3631, %v3681
    %v3730 = vadd.f32 %v3632, %v3682
    %v3731 = vadd.f32 %v3633, %v3683
    %v3732 = vadd.f32 %v3634, %v3684
    %v3733 = vadd.f32 %v3635, %v3685
    %v3734 = vadd.f32 %v3636, %v3686
    %v3735 = vadd.f32 %v3637, %v3687
    %v3736 = vadd.f32 %v3638, %v3688
    %v3737 = vadd.f32 %v3639, %v3689
    %v3738 = vadd.f32 %v3640, %v3690
    %v3739 = vadd.f32 %v3641, %v3691
    %v3740 = vadd.f32 %v3642, %v3692
    %v3745 = vsel %vm970, %v3493, %v3491
    %v3746 = vsel %vm970, %v3494, %v3492
    %v3748 = vsel %vm74, %v3746, 0
    %3750 = vmatprep.subr.mxu0 %v3724
    %3751 = vmatpush1.msra.mxu0 %v3723
    %3752 = vmatprep.subr.mxu0 %v3722
    %3753 = vmatpush1.msra.mxu0 %v3721
    %3754 = vmatprep.subr.mxu0 %v3720
    %3755 = vmatpush1.msra.mxu0 %v3719
    %3756 = vmatprep.subr.mxu0 %v3718
    %3757 = vmatpush1.msra.mxu0 %v3717
    %3758 = vmatprep.subr.mxu0 %v3716
    %3759 = vmatpush1.msra.mxu0 %v3715
    %3760 = vmatprep.subr.mxu0 %v3714
    %3761 = vmatpush1.msra.mxu0 %v3713
    %3762 = vmatprep.subr.mxu0 %v3712
    %3763 = vmatpush1.msra.mxu0 %v3711
    %3764 = vmatprep.subr.mxu0 %v3710
    %3765 = vmatpush1.msra.mxu0 %v3709
    %3766 = vmatprep.subr.mxu0 %v3708
    %3767 = vmatpush1.msra.mxu0 %v3707
    %3768 = vmatprep.subr.mxu0 %v3706
    %3769 = vmatpush1.msra.mxu0 %v3705
    %3770 = vmatprep.subr.mxu0 %v3704
    %3771 = vmatpush1.msra.mxu0 %v3703
    %3772 = vmatprep.subr.mxu0 %v3702
    %3773 = vmatpush1.msra.mxu0 %v3701
    %3774 = vmatprep.subr.mxu0 %v3700
    %3775 = vmatpush1.msra.mxu0 %v3699
    %3776 = vmatprep.subr.mxu0 %v3698
    %3777 = vmatpush1.msra.mxu0 %v3697
    %3778 = vmatprep.subr.mxu0 %v3696
    %3779 = vmatpush1.msra.mxu0 %v3695
    %3780 = vmatprep.subr.mxu0 %v3694
    %3781 = vmatpush1.msra.mxu0 %v3693
    %3782 = vmatprep.subr.mxu0 0.0
    %3783 = vmatpush2.msra.mxu0 0.0
    %3784 = vmatprep.subr.mxu0 0.0
    %3785 = vmatpush2.msra.mxu0 0.0
    %3786 = vmatprep.subr.mxu0 0.0
    %3787 = vmatpush2.msra.mxu0 0.0
    %3788 = vmatprep.subr.mxu0 0.0
    %3789 = vmatpush2.msra.mxu0 0.0
    %3790 = vmatprep.subr.mxu0 0.0
    %3791 = vmatpush2.msra.mxu0 0.0
    %3792 = vmatprep.subr.mxu0 0.0
    %3793 = vmatpush2.msra.mxu0 0.0
    %3794 = vmatprep.subr.mxu0 0.0
    %3795 = vmatpush2.msra.mxu0 0.0
    %3796 = vmatprep.subr.mxu0 0.0
    %3797 = vmatpush2.msra.mxu0 0.0
    %3798 = vmatprep.subr.mxu0 %v3740
    %3799 = vmatpush2.msra.mxu0 %v3739
    %3800 = vmatprep.subr.mxu0 %v3738
    %3801 = vmatpush2.msra.mxu0 %v3737
    %3802 = vmatprep.subr.mxu0 %v3736
    %3803 = vmatpush2.msra.mxu0 %v3735
    %3804 = vmatprep.subr.mxu0 %v3734
    %3805 = vmatpush2.msra.mxu0 %v3733
    %3806 = vmatprep.subr.mxu0 %v3732
    %3807 = vmatpush2.msra.mxu0 %v3731
    %3808 = vmatprep.subr.mxu0 %v3730
    %3809 = vmatpush2.msra.mxu0 %v3729
    %3810 = vmatprep.subr.mxu0 %v3728
    %3811 = vmatpush2.msra.mxu0 %v3727
    %3812 = vmatprep.subr.mxu0 %v3726
    %3813 = vmatpush2.msra.mxu0 %v3725
    %3814 = vmatprep.mubr.f32.mxu0 %v3748
    %3815 = vmatmul.mubr.f32.gmra.mxu0 %v3745
    %v3816 = vpop.f32.mrf.mxu0
    %v3817 = vadd.f32 0.0, %v3816
    %v3818 = vpop.f32.mrf.mxu0
    %v3819 = vadd.f32 0.0, %v3818
    %3820 = vdwg.mxu0
    %v3821 = vxor.u32 %v3817, 2147483648
    %v3822 = vxor.u32 %v3819, 2147483648
    %v3823 = vmul.f32 %v3821, 1.442695
    %v3824 = vpow.pop %v3823
    %v3825 = vmul.f32 %v3822, 1.442695
    %v3826 = vpow.pop %v3825
    %v3827 = vadd.f32 %v3824, 1.0
    %v3828 = vadd.f32 %v3826, 1.0
    %v3829 = vrcp.pop %v3827
    %v3830 = vmul.f32 1.0, %v3829
    %v3831 = vrcp.pop %v3828
    %v3832 = vmul.f32 1.0, %v3831
    %v3835 = vrot.slane %v3830, 1
    %v3836 = vrot.slane %v3832, 1
    %v3841 = vmul.f32 %v3491, %v3830
    %v3842 = vmul.f32 %v3492, %v3832
    %v3843 = vmul.f32 %v3493, %v3835
    %v3844 = vmul.f32 %v3494, %v3836
    %v3845 = vpack.c.bf16 %v3841, %v3841
    %v3846 = vpack.c.bf16 %v3842, %v3842
    %v3847 = vpack.c.bf16 %v3843, %v3843
    %v3848 = vpack.c.bf16 %v3844, %v3844
    %s3849 = scalar_lea.vmem %s2, 768
    %v3850 = vld [vmem:[%s3849] sm:$0xff]
    %v3851 = vld [vmem:[%s3849 + $0x8] sm:$0xff]
    %v3852 = vld [vmem:[%s3849 + $0x10] sm:$0xff]
    %v3853 = vld [vmem:[%s3849 + $0x18] sm:$0xff]
    %v3854 = vld [vmem:[%s3849 + $0x20] sm:$0xff]
    %v3855 = vld [vmem:[%s3849 + $0x28] sm:$0xff]
    %v3856 = vld [vmem:[%s3849 + $0x30] sm:$0xff]
    %v3857 = vld [vmem:[%s3849 + $0x38] sm:$0xff]
    %v3858 = vld [vmem:[%s3849 + $0x40] sm:$0xff]
    %v3859 = vld [vmem:[%s3849 + $0x48] sm:$0xff]
    %v3860 = vld [vmem:[%s3849 + $0x50] sm:$0xff]
    %v3861 = vld [vmem:[%s3849 + $0x58] sm:$0xff]
    %v3862 = vld [vmem:[%s3849 + $0x60] sm:$0xff]
    %v3863 = vld [vmem:[%s3849 + $0x68] sm:$0xff]
    %v3864 = vld [vmem:[%s3849 + $0x70] sm:$0xff]
    %v3865 = vld [vmem:[%s3849 + $0x78] sm:$0xff]
    %v3866 = vld [vmem:[%s3849 + $0x80] sm:$0xff]
    %v3867 = vld [vmem:[%s3849 + $0x88] sm:$0xff]
    %v3868 = vld [vmem:[%s3849 + $0x90] sm:$0xff]
    %v3869 = vld [vmem:[%s3849 + $0x98] sm:$0xff]
    %v3870 = vld [vmem:[%s3849 + $0xa0] sm:$0xff]
    %v3871 = vld [vmem:[%s3849 + $0xa8] sm:$0xff]
    %v3872 = vld [vmem:[%s3849 + $0xb0] sm:$0xff]
    %v3873 = vld [vmem:[%s3849 + $0xb8] sm:$0xff]
    %s3874 = scalar_lea.vmem %s3, 8
    %v3875 = vld [vmem:[%s3874] sm:$0x3]
    %v3877 = vlaneseq
    %v3878 = vshrl.u32 %v3877, 7
    %v3879 = vsub.s32 0, %v3878
    %v3880 = vrot.slane %v3875, %v3879
    %v3881 = vlaneseq
    %v3882 = vshrl.u32 %v3881, 7
    %v3883 = vsub.s32 1, %v3882
    %v3884 = vrot.slane %v3875, %v3883
    %v3891 = vunpack.c.l.b16 %v3845
    %v3892 = vunpack.c.l.b16 %v3846
    %v3893 = vunpack.c.l.b16 %v3847
    %v3894 = vunpack.c.l.b16 %v3848
    %v3895 = vrot.slane %v3893, 7
    %v3896 = vsel %vm970, %v3895, %v3891
    %v3897 = vrot.slane %v3894, 7
    %v3898 = vsel %vm970, %v3897, %v3892
    %v3899 = vpack.c.b16 %v3896, %v3896
    %v3900 = vpack.c.b16 %v3898, %v3898
    %v3926 = vunpack.c.l.b16 %v3850
    %v3927 = vunpack.c.h.b16 %v3850
    %v3928 = vunpack.c.l.b16 %v3851
    %v3929 = vunpack.c.h.b16 %v3851
    %v3930 = vunpack.c.l.b16 %v3852
    %v3931 = vunpack.c.h.b16 %v3852
    %v3932 = vunpack.c.l.b16 %v3853
    %v3933 = vunpack.c.h.b16 %v3853
    %v3934 = vunpack.c.l.b16 %v3854
    %v3935 = vunpack.c.h.b16 %v3854
    %v3936 = vunpack.c.l.b16 %v3855
    %v3937 = vunpack.c.h.b16 %v3855
    %v3938 = vunpack.c.l.b16 %v3856
    %v3939 = vunpack.c.h.b16 %v3856
    %v3940 = vunpack.c.l.b16 %v3857
    %v3941 = vunpack.c.h.b16 %v3857
    %v3942 = vunpack.c.l.b16 %v3858
    %v3943 = vunpack.c.h.b16 %v3858
    %v3944 = vunpack.c.l.b16 %v3859
    %v3945 = vunpack.c.h.b16 %v3859
    %v3946 = vunpack.c.l.b16 %v3860
    %v3947 = vunpack.c.h.b16 %v3860
    %v3948 = vunpack.c.l.b16 %v3861
    %v3949 = vunpack.c.h.b16 %v3861
    %v3950 = vunpack.c.l.b16 %v3862
    %v3951 = vunpack.c.h.b16 %v3862
    %v3952 = vunpack.c.l.b16 %v3863
    %v3953 = vunpack.c.h.b16 %v3863
    %v3954 = vunpack.c.l.b16 %v3864
    %v3955 = vunpack.c.h.b16 %v3864
    %v3956 = vunpack.c.l.b16 %v3865
    %v3957 = vunpack.c.h.b16 %v3865
    %v3958 = vunpack.c.l.b16 %v3866
    %v3959 = vunpack.c.h.b16 %v3866
    %v3960 = vunpack.c.l.b16 %v3867
    %v3961 = vunpack.c.h.b16 %v3867
    %v3962 = vunpack.c.l.b16 %v3868
    %v3963 = vunpack.c.h.b16 %v3868
    %v3964 = vunpack.c.l.b16 %v3869
    %v3965 = vunpack.c.h.b16 %v3869
    %v3966 = vunpack.c.l.b16 %v3870
    %v3967 = vunpack.c.h.b16 %v3870
    %v3968 = vunpack.c.l.b16 %v3871
    %v3969 = vunpack.c.h.b16 %v3871
    %v3970 = vunpack.c.l.b16 %v3872
    %v3971 = vunpack.c.h.b16 %v3872
    %v3972 = vunpack.c.l.b16 %v3873
    %v3973 = vunpack.c.h.b16 %v3873
    %v3974 = vpack.c.b16 %v3928, %v3926
    %v3975 = vpack.c.b16 %v3929, %v3927
    %v3976 = vpack.c.b16 %v3932, %v3930
    %v3977 = vpack.c.b16 %v3933, %v3931
    %v3978 = vpack.c.b16 %v3936, %v3934
    %v3979 = vpack.c.b16 %v3937, %v3935
    %v3980 = vpack.c.b16 %v3940, %v3938
    %v3981 = vpack.c.b16 %v3941, %v3939
    %v3982 = vpack.c.b16 %v3944, %v3942
    %v3983 = vpack.c.b16 %v3945, %v3943
    %v3984 = vpack.c.b16 %v3948, %v3946
    %v3985 = vpack.c.b16 %v3949, %v3947
    %v3986 = vpack.c.b16 %v3952, %v3950
    %v3987 = vpack.c.b16 %v3953, %v3951
    %v3988 = vpack.c.b16 %v3956, %v3954
    %v3989 = vpack.c.b16 %v3957, %v3955
    %v3990 = vpack.c.b16 %v3960, %v3958
    %v3991 = vpack.c.b16 %v3961, %v3959
    %v3992 = vpack.c.b16 %v3964, %v3962
    %v3993 = vpack.c.b16 %v3965, %v3963
    %v3994 = vpack.c.b16 %v3968, %v3966
    %v3995 = vpack.c.b16 %v3969, %v3967
    %v3996 = vpack.c.b16 %v3972, %v3970
    %v3997 = vpack.c.b16 %v3973, %v3971
    %v4023 = vsel %vm74, %v3900, 0
    %4025 = vmatprep.subr.bf16.mxu0 %v3989
    %4026 = vmatpush1.bf16.msra.mxu0 %v3988
    %4027 = vmatprep.subr.bf16.mxu0 %v3987
    %4028 = vmatpush1.bf16.msra.mxu0 %v3986
    %4029 = vmatprep.subr.bf16.mxu0 %v3985
    %4030 = vmatpush1.bf16.msra.mxu0 %v3984
    %4031 = vmatprep.subr.bf16.mxu0 %v3983
    %4032 = vmatpush1.bf16.msra.mxu0 %v3982
    %4033 = vmatprep.subr.bf16.mxu0 %v3981
    %4034 = vmatpush1.bf16.msra.mxu0 %v3980
    %4035 = vmatprep.subr.bf16.mxu0 %v3979
    %4036 = vmatpush1.bf16.msra.mxu0 %v3978
    %4037 = vmatprep.subr.bf16.mxu0 %v3977
    %4038 = vmatpush1.bf16.msra.mxu0 %v3976
    %4039 = vmatprep.subr.bf16.mxu0 %v3975
    %4040 = vmatpush1.bf16.msra.mxu0 %v3974
    %4041 = vmatprep.subr.bf16.mxu0 0
    %4042 = vmatpush2.bf16.msra.mxu0 0
    %4043 = vmatprep.subr.bf16.mxu0 0
    %4044 = vmatpush2.bf16.msra.mxu0 0
    %4045 = vmatprep.subr.bf16.mxu0 0
    %4046 = vmatpush2.bf16.msra.mxu0 0
    %4047 = vmatprep.subr.bf16.mxu0 0
    %4048 = vmatpush2.bf16.msra.mxu0 0
    %4049 = vmatprep.subr.bf16.mxu0 %v3997
    %4050 = vmatpush2.bf16.msra.mxu0 %v3996
    %4051 = vmatprep.subr.bf16.mxu0 %v3995
    %4052 = vmatpush2.bf16.msra.mxu0 %v3994
    %4053 = vmatprep.subr.bf16.mxu0 %v3993
    %4054 = vmatpush2.bf16.msra.mxu0 %v3992
    %4055 = vmatprep.subr.bf16.mxu0 %v3991
    %4056 = vmatpush2.bf16.msra.mxu0 %v3990
    %4057 = vmatprep.mubr.bf16.mxu0 %v4023
    %4058 = vmatmul.mubr.bf16.gmra.mxu0 %v3899
    %v4059 = vpop.f32.mrf.mxu0
    %v4060 = vadd.f32 %v3880, %v4059
    %v4061 = vpop.f32.mrf.mxu0
    %v4062 = vadd.f32 %v3884, %v4061
    %v4063 = vpop.f32.mrf.mxu0
    %v4064 = vpop.f32.mrf.mxu0
    %4065 = vdwg.mxu0
    %v4066 = vmax.f32 %v4060, 0.0
    %v4067 = vmax.f32 %v4062, 0.0
    %v4068 = vmul.f32 %v4066, %v4066
    %v4069 = vmul.f32 %v4067, %v4067
    %v4070 = vsel %vm1294, %v4068, 0.0
    %v4071 = vsel %vm1294, %v4069, 0.0
    %v4072 = vadd.f32 %v4070, %v4071
    %4073 = vadd.xlane.f32.xlu0 %v4072
    %v4074 = vpop.xlane.xlu0 %4073
    %v4075 = vmax.f32 %v4074, 1e-24
    %v4076 = vrsqrt.pop %v4075
    %v4077 = vmul.f32 %v4066, %v4076
    %v4078 = vmul.f32 %v4067, %v4076
    %s4079 = scalar_lea.vmem %s4, 1024
    %v4080 = vld [vmem:[%s4079] sm:$0xff]
    %v4081 = vld [vmem:[%s4079 + $0x8] sm:$0xff]
    %v4082 = vld [vmem:[%s4079 + $0x10] sm:$0xff]
    %v4083 = vld [vmem:[%s4079 + $0x18] sm:$0xff]
    %v4084 = vld [vmem:[%s4079 + $0x20] sm:$0xff]
    %v4085 = vld [vmem:[%s4079 + $0x28] sm:$0xff]
    %v4086 = vld [vmem:[%s4079 + $0x30] sm:$0xff]
    %v4087 = vld [vmem:[%s4079 + $0x38] sm:$0xff]
    %v4088 = vld [vmem:[%s4079 + $0x40] sm:$0xff]
    %v4089 = vld [vmem:[%s4079 + $0x48] sm:$0xff]
    %v4090 = vld [vmem:[%s4079 + $0x50] sm:$0xff]
    %v4091 = vld [vmem:[%s4079 + $0x58] sm:$0xff]
    %v4092 = vld [vmem:[%s4079 + $0x60] sm:$0xff]
    %v4093 = vld [vmem:[%s4079 + $0x68] sm:$0xff]
    %v4094 = vld [vmem:[%s4079 + $0x70] sm:$0xff]
    %v4095 = vld [vmem:[%s4079 + $0x78] sm:$0xff]
    %v4096 = vld [vmem:[%s4079 + $0x80] sm:$0xff]
    %v4097 = vld [vmem:[%s4079 + $0x88] sm:$0xff]
    %v4098 = vld [vmem:[%s4079 + $0x90] sm:$0xff]
    %v4099 = vld [vmem:[%s4079 + $0x98] sm:$0xff]
    %v4100 = vld [vmem:[%s4079 + $0xa0] sm:$0xff]
    %v4101 = vld [vmem:[%s4079 + $0xa8] sm:$0xff]
    %v4102 = vld [vmem:[%s4079 + $0xb0] sm:$0xff]
    %v4103 = vld [vmem:[%s4079 + $0xb8] sm:$0xff]
    %v4104 = vld [vmem:[%s4079 + $0xc0] sm:$0xff]
    %v4105 = vld [vmem:[%s4079 + $0xc8] sm:$0xff]
    %v4106 = vld [vmem:[%s4079 + $0xd0] sm:$0xff]
    %v4107 = vld [vmem:[%s4079 + $0xd8] sm:$0xff]
    %v4108 = vld [vmem:[%s4079 + $0xe0] sm:$0xff]
    %v4109 = vld [vmem:[%s4079 + $0xe8] sm:$0xff]
    %v4110 = vld [vmem:[%s4079 + $0xf0] sm:$0xff]
    %v4111 = vld [vmem:[%s4079 + $0xf8] sm:$0xff]
    %4112 = vmatprep.subr.mxu0 0.0
    %4113 = vmatpush1.msra.mxu0 %v4095
    %4114 = vmatprep.subr.mxu0 0.0
    %4115 = vmatpush1.msra.mxu0 %v4094
    %4116 = vmatprep.subr.mxu0 0.0
    %4117 = vmatpush1.msra.mxu0 %v4093
    %4118 = vmatprep.subr.mxu0 0.0
    %4119 = vmatpush1.msra.mxu0 %v4092
    %4120 = vmatprep.subr.mxu0 0.0
    %4121 = vmatpush1.msra.mxu0 %v4091
    %4122 = vmatprep.subr.mxu0 0.0
    %4123 = vmatpush1.msra.mxu0 %v4090
    %4124 = vmatprep.subr.mxu0 0.0
    %4125 = vmatpush1.msra.mxu0 %v4089
    %4126 = vmatprep.subr.mxu0 0.0
    %4127 = vmatpush1.msra.mxu0 %v4088
    %4128 = vmatprep.subr.mxu0 0.0
    %4129 = vmatpush1.msra.mxu0 %v4087
    %4130 = vmatprep.subr.mxu0 0.0
    %4131 = vmatpush1.msra.mxu0 %v4086
    %4132 = vmatprep.subr.mxu0 0.0
    %4133 = vmatpush1.msra.mxu0 %v4085
    %4134 = vmatprep.subr.mxu0 0.0
    %4135 = vmatpush1.msra.mxu0 %v4084
    %4136 = vmatprep.subr.mxu0 0.0
    %4137 = vmatpush1.msra.mxu0 %v4083
    %4138 = vmatprep.subr.mxu0 0.0
    %4139 = vmatpush1.msra.mxu0 %v4082
    %4140 = vmatprep.subr.mxu0 0.0
    %4141 = vmatpush1.msra.mxu0 %v4081
    %4142 = vmatprep.subr.mxu0 0.0
    %4143 = vmatpush1.msra.mxu0 %v4080
    %4144 = vmatprep.subr.mxu0 0.0
    %4145 = vmatpush2.msra.mxu0 %v4111
    %4146 = vmatprep.subr.mxu0 0.0
    %4147 = vmatpush2.msra.mxu0 %v4110
    %4148 = vmatprep.subr.mxu0 0.0
    %4149 = vmatpush2.msra.mxu0 %v4109
    %4150 = vmatprep.subr.mxu0 0.0
    %4151 = vmatpush2.msra.mxu0 %v4108
    %4152 = vmatprep.subr.mxu0 0.0
    %4153 = vmatpush2.msra.mxu0 %v4107
    %4154 = vmatprep.subr.mxu0 0.0
    %4155 = vmatpush2.msra.mxu0 %v4106
    %4156 = vmatprep.subr.mxu0 0.0
    %4157 = vmatpush2.msra.mxu0 %v4105
    %4158 = vmatprep.subr.mxu0 0.0
    %4159 = vmatpush2.msra.mxu0 %v4104
    %4160 = vmatprep.subr.mxu0 0.0
    %4161 = vmatpush2.msra.mxu0 %v4103
    %4162 = vmatprep.subr.mxu0 0.0
    %4163 = vmatpush2.msra.mxu0 %v4102
    %4164 = vmatprep.subr.mxu0 0.0
    %4165 = vmatpush2.msra.mxu0 %v4101
    %4166 = vmatprep.subr.mxu0 0.0
    %4167 = vmatpush2.msra.mxu0 %v4100
    %4168 = vmatprep.subr.mxu0 0.0
    %4169 = vmatpush2.msra.mxu0 %v4099
    %4170 = vmatprep.subr.mxu0 0.0
    %4171 = vmatpush2.msra.mxu0 %v4098
    %4172 = vmatprep.subr.mxu0 0.0
    %4173 = vmatpush2.msra.mxu0 %v4097
    %4174 = vmatprep.subr.mxu0 0.0
    %4175 = vmatpush2.msra.mxu0 %v4096
    %4176 = vmatprep.mubr.f32.mxu0 %v4078
    %4177 = vmatmul.mubr.f32.gmra.mxu0 %v4077
    %v4178 = vpop.f32.mrf.mxu0
    %v4179 = vadd.f32 0.0, %v4178
    %v4180 = vpop.f32.mrf.mxu0
    %4181 = vdwg.mxu0
    %s4182 = scalar_lea.vmem [#allocation5], 8
    %4183 = vst.msk [vmem:[%s4182] sm:$0x3] %vm1407, %v4179
    // Predicated region
    $region26: #{fernet_heads.1} parent=1 // pred_check
      _
    $region27: #{fernet_heads.1} parent=1 // pred_check_branch
      %4185 = sbr.rel (0) target = $region29
    $region28: #{fernet_heads.1} parent=1 // pred_region
      %s4187 = ssub.s32 160, 160
      %4188 = vsyncadd [#allocation3], %s4187
      %s4189 = sshll.u32 [#allocation5], 4
      %s4190 = int_to_ptr.vmem [resolvable:$true] %s4189
      %4195 = dma.vmem_to_hbm [thread:$0]  %s4190, 160, %s5, [#allocation3], 32, 32, 2
    $region29: #{fernet_heads.1} parent=1 // pred_fallthru
      _
    // Predicated region
    $region30: #{fernet_heads.1} parent=1 // pred_check
      _
    $region31: #{fernet_heads.1} parent=1 // pred_check_branch
      %4197 = sbr.rel (0) target = $region33
    $region32: #{fernet_heads.1} parent=1 // pred_region
      %4198 = dma.done [#allocation3], 160
    $region33: #{fernet_heads.1} parent=1 // pred_fallthru
      _
    %4199 = vsyncpa [#allocation3], 1
    %4200 = vsyncpa [#allocation4], 1

</llo_original>
